<compile_context>
chip_gen: v6e
topology: v6e:2x2x1
jax: 0.10.0
libtpu: 0.0.40
codegen_flags: <defaults>
</compile_context>

<pallas_src>
import functools
import numpy as np
import jax
import jax.numpy as jnp
from jax.experimental import pallas as pl
from jax.experimental.pallas import tpu as pltpu


# --------------------------------------------------------------------------
# Small helpers
# --------------------------------------------------------------------------
def _round_up(x, m):
    return ((x + m - 1) // m) * m


def _pick_tile(m, pref):
    """Lane tile for an axis of length m: pref if big enough, else 128, else full."""
    if m >= pref:
        return pref
    if m >= 128:
        return 128
    return m


_VMEM_LIMIT = 32 * 1024 * 1024  # safe on v5e(128M phys)/v6e(128M)/v7x(64M)


# --------------------------------------------------------------------------
# Pallas kernels
# --------------------------------------------------------------------------
def _convT_kernel(w_ref, b_ref, p_ref, o_ref, *, neg_slope):
    """out(Cout, tm) = leaky_relu(W(Cout,K) @ P(K,tm) + b);  bf16 in, f32 acc."""
    acc = jnp.dot(w_ref[...], p_ref[...], preferred_element_type=jnp.float32)
    acc = acc + b_ref[...]                       # (Cout,1) broadcasts over lanes
    acc = jnp.where(acc >= 0.0, acc, neg_slope * acc)
    o_ref[...] = acc.astype(o_ref.dtype)


def conv_gemm_T(w, b, p, *, neg_slope=0.01, tm_pref=512):
    """Transposed conv GEMM, tiled & pipelined over the big M axis.

    w: (Cout, Kp)  b: (Cout,)  p: (Kp, M)  ->  (Cout, M) bf16
    """
    cout, kp = w.shape
    kp2, m = p.shape
    assert kp == kp2
    tm = _pick_tile(m, tm_pref)
    mp = _round_up(m, tm)
    if mp != m:
        p = jnp.pad(p, ((0, 0), (0, mp - m)))
    b2 = b.reshape(cout, 1).astype(jnp.float32)

    out = pl.pallas_call(
        functools.partial(_convT_kernel, neg_slope=neg_slope),
        out_shape=jax.ShapeDtypeStruct((cout, mp), jnp.bfloat16),
        grid=(mp // tm,),
        in_specs=[
            pl.BlockSpec((cout, kp), lambda i: (0, 0)),
            pl.BlockSpec((cout, 1), lambda i: (0, 0)),
            pl.BlockSpec((kp, tm), lambda i: (0, i)),
        ],
        out_specs=pl.BlockSpec((cout, tm), lambda i: (0, i)),
        compiler_params=pltpu.CompilerParams(
            dimension_semantics=("parallel",),
            vmem_limit_bytes=_VMEM_LIMIT),
    )(w.astype(jnp.bfloat16), b2, p.astype(jnp.bfloat16))
    return out[:, :m]


def _conv_pool_kernel(w_ref, b_ref, p_ref, o_ref, *, neg_slope):
    """Fused conv2 + LeakyReLU + MaxPool3d(2).

    p_ref: (8, K, tm) — leading axis is the 2x2x2 pooling-window offset,
    tm indexes pooling windows.  Pooling = elementwise max over the 8
    per-offset GEMM results (pure VPU max, no lane shuffles).
    """
    w = w_ref[...]
    b = b_ref[...]
    res = None
    for off in range(8):
        y = jnp.dot(w, p_ref[off], preferred_element_type=jnp.float32) + b
        y = jnp.where(y >= 0.0, y, neg_slope * y)
        res = y if res is None else jnp.maximum(res, y)
    o_ref[...] = res.astype(o_ref.dtype)


def conv_pool_gemm_T(w, b, p8, *, neg_slope=0.01, tm_pref=256):
    """w: (Cout, Kp)  b: (Cout,)  p8: (8, Kp, M)  ->  pooled (Cout, M) bf16."""
    cout, kp = w.shape
    eight, kp2, m = p8.shape
    assert eight == 8 and kp2 == kp
    tm = _pick_tile(m, tm_pref)
    mp = _round_up(m, tm)
    if mp != m:
        p8 = jnp.pad(p8, ((0, 0), (0, 0), (0, mp - m)))
    b2 = b.reshape(cout, 1).astype(jnp.float32)

    out = pl.pallas_call(
        functools.partial(_conv_pool_kernel, neg_slope=neg_slope),
        out_shape=jax.ShapeDtypeStruct((cout, mp), jnp.bfloat16),
        grid=(mp // tm,),
        in_specs=[
            pl.BlockSpec((cout, kp), lambda i: (0, 0)),
            pl.BlockSpec((cout, 1), lambda i: (0, 0)),
            pl.BlockSpec((8, kp, tm), lambda i: (0, 0, i)),
        ],
        out_specs=pl.BlockSpec((cout, tm), lambda i: (0, i)),
        compiler_params=pltpu.CompilerParams(
            dimension_semantics=("parallel",),
            vmem_limit_bytes=_VMEM_LIMIT),
    )(w.astype(jnp.bfloat16), b2, p8.astype(jnp.bfloat16))
    return out[:, :m]


def _head_kernel(x_ref, w1_ref, b1_ref, w2_ref, b2_ref, o_ref):
    """Fused fc1 + ReLU + fc + tanh; the hidden h never leaves VMEM."""
    h = jnp.dot(x_ref[...], w1_ref[...], preferred_element_type=jnp.float32)
    h = jnp.maximum(h + b1_ref[...], 0.0)
    y = jnp.dot(h, w2_ref[...], preferred_element_type=jnp.float32) + b2_ref[...]
    o_ref[...] = jnp.tanh(y)


def head_fused(x, w1, b1, w2, b2, *, tb_pref=128):
    """x: (N, F) -> tanh(relu(x@w1+b1) @ w2 + b2), tiled over batch rows."""
    n, f = x.shape
    f2, hdim = w1.shape
    h2, odim = w2.shape
    assert f == f2 and hdim == h2
    tb = _pick_tile(n, tb_pref)
    npad = _round_up(n, tb)
    if npad != n:
        x = jnp.pad(x, ((0, npad - n), (0, 0)))

    out = pl.pallas_call(
        _head_kernel,
        out_shape=jax.ShapeDtypeStruct((npad, odim), jnp.float32),
        grid=(npad // tb,),
        in_specs=[
            pl.BlockSpec((tb, f), lambda i: (i, 0)),
            pl.BlockSpec((f, hdim), lambda i: (0, 0)),
            pl.BlockSpec((1, hdim), lambda i: (0, 0)),
            pl.BlockSpec((hdim, odim), lambda i: (0, 0)),
            pl.BlockSpec((1, odim), lambda i: (0, 0)),
        ],
        out_specs=pl.BlockSpec((tb, odim), lambda i: (i, 0)),
        compiler_params=pltpu.CompilerParams(
            dimension_semantics=("parallel",),
            vmem_limit_bytes=_VMEM_LIMIT),
    )(x.astype(jnp.bfloat16), w1.astype(jnp.bfloat16),
      b1.reshape(1, hdim).astype(jnp.float32),
      w2.astype(jnp.float32), b2.reshape(1, odim).astype(jnp.float32))
    return out[:n]


# --------------------------------------------------------------------------
# Glue: transposed im2col (pure gather/reshape in JAX, no FLOPs)
# --------------------------------------------------------------------------
def _im2col_T(x_cn, k, stride):
    """x: (C, N, D, H, W) -> (k^3*C, N*Do*Ho*Wo); K order = (kd, kh, kw, cin)."""
    c, n, d, h, w = x_cn.shape
    do = (d - k) // stride + 1
    ho = (h - k) // stride + 1
    wo = (w - k) // stride + 1
    cols = []
    for kd in range(k):
        for kh in range(k):
            for kw in range(k):
                cols.append(x_cn[:, :,
                                 kd:kd + stride * do:stride,
                                 kh:kh + stride * ho:stride,
                                 kw:kw + stride * wo:stride])
    p = jnp.stack(cols, axis=0)                      # (k^3, C, N, Do, Ho, Wo)
    return p.reshape(k * k * k * c, n * do * ho * wo), (n, do, ho, wo)


def _im2col_pool_T(y_cn, k):
    """Conv (kernel k, stride 1) patches regrouped per 2x2x2 pooling offset.

    y: (C, N, D, H, W) -> (8, k^3*C, N*Dp*Hp*Wp); leading axis = (dd, dh, dw).
    """
    c, n, d, h, w = y_cn.shape
    do, ho, wo = d - k + 1, h - k + 1, w - k + 1
    dp, hp, wp = do // 2, ho // 2, wo // 2           # MaxPool3d floor behaviour
    cols = []
    for kd in range(k):
        for kh in range(k):
            for kw in range(k):
                cols.append(y_cn[:, :, kd:kd + do, kh:kh + ho, kw:kw + wo])
    p = jnp.stack(cols, axis=0)                      # (k^3, C, N, Do, Ho, Wo)
    kk = k * k * k * c
    p = p.reshape(kk, n, do, ho, wo)
    p = p[:, :, :2 * dp, :2 * hp, :2 * wp]
    p = p.reshape(kk, n, dp, 2, hp, 2, wp, 2)
    p = jnp.transpose(p, (3, 5, 7, 0, 1, 2, 4, 6))   # (dd,dh,dw, K, N,Dp,Hp,Wp)
    return p.reshape(8, kk, n * dp * hp * wp), (n, dp, hp, wp)


# --------------------------------------------------------------------------
# Parameters (deterministic, mirrors weights_init shapes/stds)
# --------------------------------------------------------------------------
def _conv_out(d, k, s):
    return (d - k) // s + 1


def init_params(key, hash_bit, n_channels, input_dhw):
    din, hin, win = input_dhw
    d1, h1, w1o = _conv_out(din, 5, 2), _conv_out(hin, 5, 2), _conv_out(win, 5, 2)
    d2, h2o, w2o = d1 - 2, h1 - 2, w1o - 2
    dp, hp, wp = d2 // 2, h2o // 2, w2o // 2
    in_feats = 32 * dp * hp * wp                     # first_fc_in_features

    ks = jax.random.split(key, 7)
    std1 = float(np.sqrt(6.0 / (5 * 5 * 5 * (n_channels + 32))))
    std2 = float(np.sqrt(6.0 / (3 * 3 * 3 * (32 + 32))))
    stdf1 = float(np.sqrt(1.0 / (in_feats * 128)))
    stdf = float(np.sqrt(1.0 / (128 * hash_bit)))

    w1 = jax.random.normal(ks[0], (32, n_channels, 5, 5, 5), jnp.float32) * std1
    b1 = jax.random.normal(ks[1], (32,), jnp.float32) * 0.01
    w2 = jax.random.normal(ks[2], (32, 32, 3, 3, 3), jnp.float32) * std2
    b2 = jax.random.normal(ks[3], (32,), jnp.float32) * 0.01
    wfc1 = jax.random.normal(ks[4], (in_feats, 128), jnp.float32) * stdf1
    bfc1 = jax.random.normal(ks[5], (128,), jnp.float32) * 0.01
    wfc = jax.random.normal(ks[6], (128, hash_bit), jnp.float32) * stdf
    bfc = jnp.zeros((hash_bit,), jnp.float32)        # fc.bias.data.fill_(0.0)

    # Transposed GEMM-form conv weights: (cout, kd, kh, kw, cin) -> (32, K),
    # K zero-padded to a multiple of 128 for aligned lane loads / full MXU feed.
    k1 = 5 * 5 * 5 * n_channels
    k2 = 3 * 3 * 3 * 32
    k1p, k2p = _round_up(k1, 128), _round_up(k2, 128)
    w1g = jnp.pad(jnp.transpose(w1, (0, 2, 3, 4, 1)).reshape(32, k1),
                  ((0, 0), (0, k1p - k1)))
    w2g = jnp.pad(jnp.transpose(w2, (0, 2, 3, 4, 1)).reshape(32, k2),
                  ((0, 0), (0, k2p - k2)))

    return dict(w1=w1, b1=b1, w2=w2, b2=b2, w1g=w1g, w2g=w2g,
                wfc1=wfc1, bfc1=bfc1, wfc=wfc, bfc=bfc)


# --------------------------------------------------------------------------
# Forward pass (Pallas kernels for all FLOPs)
# --------------------------------------------------------------------------
def voxnet_forward(x_ncdhw, params):
    # Channel-first "transposed" layout (C, N, D, H, W) feeds the (Cout, M) GEMMs.
    x_t = jnp.transpose(x_ncdhw, (1, 0, 2, 3, 4))

    # body.conv1 (k=5, s=2) + LeakyReLU   (drop1 = identity, inference)
    p1, (n, d1, h1, w1o) = _im2col_T(x_t, 5, 2)
    k1p = params["w1g"].shape[1]
    if p1.shape[0] != k1p:
        p1 = jnp.pad(p1, ((0, k1p - p1.shape[0]), (0, 0)))
    y1 = conv_gemm_T(params["w1g"], params["b1"], p1)          # (32, N*D1*H1*W1)
    y1 = y1.reshape(32, n, d1, h1, w1o)

    # body.conv2 (k=3) + LeakyReLU + pool2 MaxPool3d(2) fused  (drop2 = identity)
    p2, (_, dp, hp, wp) = _im2col_pool_T(y1, 3)
    k2p = params["w2g"].shape[1]
    if p2.shape[1] != k2p:
        p2 = jnp.pad(p2, ((0, 0), (0, k2p - p2.shape[1]), (0, 0)))
    yp = conv_pool_gemm_T(params["w2g"], params["b2"], p2)      # (32, N*Dp*Hp*Wp)

    # Flatten in PyTorch NCDHW order: (N, C, D, H, W) -> (N, C*D*H*W)
    flat = jnp.transpose(yp.reshape(32, n, dp, hp, wp),
                         (1, 0, 2, 3, 4)).reshape(n, -1)

    # head.fc1 + ReLU (+drop3 identity) + fc + Tanh — one fused Pallas call.
    return head_fused(flat, params["wfc1"], params["bfc1"],
                      params["wfc"], params["bfc"])


# --------------------------------------------------------------------------
# Pure-JAX f32 reference (for sanity check)
# --------------------------------------------------------------------------
def reference_forward(x_ncdhw, params):
    hi = jax.lax.Precision.HIGHEST
    dn = ("NCDHW", "OIDHW", "NCDHW")
    y = jax.lax.conv_general_dilated(x_ncdhw, params["w1"], (2, 2, 2), "VALID",
                                     dimension_numbers=dn, precision=hi)
    y = y + params["b1"][None, :, None, None, None]
    y = jnp.where(y >= 0, y, 0.01 * y)
    y = jax.lax.conv_general_dilated(y, params["w2"], (1, 1, 1), "VALID",
                                     dimension_numbers=dn, precision=hi)
    y = y + params["b2"][None, :, None, None, None]
    y = jnp.where(y >= 0, y, 0.01 * y)
    y = jax.lax.reduce_window(y, -jnp.inf, jax.lax.max,
                              (1, 1, 2, 2, 2), (1, 1, 2, 2, 2), "VALID")
    y = y.reshape(y.shape[0], -1)
    y = jnp.maximum(jnp.dot(y, params["wfc1"], precision=hi) + params["bfc1"], 0.0)
    y = jnp.tanh(jnp.dot(y, params["wfc"], precision=hi) + params["bfc"])
    return y


# --------------------------------------------------------------------------
if __name__ == "__main__":
    key = jax.random.PRNGKey(0)
    kx, kp = jax.random.split(key)

    N, C, D = 2, 1, 16             # small shapes consistent with the module
    hash_bit = 16
    x = jax.random.normal(kx, (N, C, D, D, D), jnp.float32)    # NCDHW
    params = init_params(kp, hash_bit=hash_bit, n_channels=C, input_dhw=(D, D, D))

    fwd = jax.jit(voxnet_forward)
    out = jax.block_until_ready(fwd(x, params))
    assert out.shape == (N, hash_bit), out.shape

    ref = reference_forward(x, params)
    # bf16 operands (f32 accumulation) -> loosened tolerance vs the f32 reference.
    np.testing.assert_allclose(np.asarray(out, dtype=np.float32), np.asarray(ref),
                               rtol=3e-2, atol=3e-3)

    print("KERNEL_OK")
</pallas_src>

<mosaic_0001>
module attributes {stable_mosaic.version = 11 : i64} {
  func.func @_convT_kernel(%arg0: i32, %arg1: memref<32x128xbf16, #tpu.memory_space<vmem>>, %arg2: memref<32x1xf32, #tpu.memory_space<vmem>>, %arg3: memref<128x128xbf16, #tpu.memory_space<vmem>>, %arg4: memref<32x128xbf16, #tpu.memory_space<vmem>>) attributes {dimension_semantics = [#tpu.dimension_semantics<parallel>], iteration_bounds = array<i64: 4>, scalar_prefetch = 0 : i64, scratch_operands = 0 : i64, tpu.core_type = #tpu.core_type<tc>, window_params = [{pipeline_mode = #tpu.pipeline_mode<synchronous>, transform_indices = @transform_0, window_bounds = array<i64: 32, 128>}, {pipeline_mode = #tpu.pipeline_mode<synchronous>, transform_indices = @transform_1, window_bounds = array<i64: 32, 1>}, {transform_indices = @transform_2, window_bounds = array<i64: 128, 128>}, {transform_indices = @transform_3, window_bounds = array<i64: 32, 128>}]} {
    %c0 = arith.constant 0 : index
    %c0_0 = arith.constant 0 : index
    %0 = vector.load %arg1[%c0, %c0_0] : memref<32x128xbf16, #tpu.memory_space<vmem>>, vector<32x128xbf16>
    %c0_1 = arith.constant 0 : index
    %c0_2 = arith.constant 0 : index
    %1 = vector.load %arg3[%c0_1, %c0_2] : memref<128x128xbf16, #tpu.memory_space<vmem>>, vector<128x128xbf16>
    %cst = arith.constant dense<0.000000e+00> : vector<32x128xf32>
    %2 = tpu.matmul %0, %1, %cst {dimension_numbers = #tpu.dot_dimension_numbers<[1], [0], [0], [1], [0, 0, 1, 1], [], []>} : vector<32x128xbf16>, vector<128x128xbf16>, vector<32x128xf32> -> vector<32x128xf32>
    %c0_3 = arith.constant 0 : index
    %c0_4 = arith.constant 0 : index
    %3 = vector.load %arg2[%c0_3, %c0_4] : memref<32x1xf32, #tpu.memory_space<vmem>>, vector<32x1xf32>
    %4 = vector.broadcast %3 : vector<32x1xf32> to vector<32x128xf32>
    %5 = arith.addf %2, %4 : vector<32x128xf32>
    %cst_5 = arith.constant 0.000000e+00 : f32
    %6 = vector.broadcast %cst_5 : f32 to vector<32x128xf32>
    %7 = arith.cmpf oge, %5, %6 : vector<32x128xf32>
    %cst_6 = arith.constant 0.00999999977 : f32
    %8 = vector.broadcast %cst_6 : f32 to vector<32x128xf32>
    %9 = arith.mulf %8, %5 : vector<32x128xf32>
    %10 = arith.select %7, %5, %9 : vector<32x128xi1>, vector<32x128xf32>
    %11 = arith.truncf %10 : vector<32x128xf32> to vector<32x128xbf16>
    %c0_7 = arith.constant 0 : index
    %c0_8 = arith.constant 0 : index
    %12 = vector.load %arg4[%c0_7, %c0_8] : memref<32x128xbf16, #tpu.memory_space<vmem>>, vector<32x128xbf16>
    tpu.vector_store %arg4[%c0_7, %c0_8], %11 {strides = array<i32>} : memref<32x128xbf16, #tpu.memory_space<vmem>>, vector<32x128xbf16>,
    return
  }
  func.func @transform_0(%arg0: i32) -> (i32, i32) {
    %c0_i32 = arith.constant 0 : i32
    %c0_i32_0 = arith.constant 0 : i32
    %c0_i32_1 = arith.constant 0 : i32
    return %c0_i32, %c0_i32_0 : i32, i32
  }
  func.func @transform_1(%arg0: i32) -> (i32, i32) {
    %c0_i32 = arith.constant 0 : i32
    %c0_i32_0 = arith.constant 0 : i32
    %c0_i32_1 = arith.constant 0 : i32
    return %c0_i32, %c0_i32_0 : i32, i32
  }
  func.func @transform_2(%arg0: i32) -> (i32, i32) {
    %c0_i32 = arith.constant 0 : i32
    %c0_i32_0 = arith.constant 0 : i32
    return %c0_i32, %arg0 : i32, i32
  }
  func.func @transform_3(%arg0: i32) -> (i32, i32) {
    %c0_i32 = arith.constant 0 : i32
    %c0_i32_0 = arith.constant 0 : i32
    return %c0_i32, %arg0 : i32, i32
  }
}

module attributes {stable_mosaic.version = 11 : i64} {
  func.func @_conv_pool_kernel(%arg0: i32, %arg1: memref<32x896xbf16, #tpu.memory_space<vmem>>, %arg2: memref<32x1xf32, #tpu.memory_space<vmem>>, %arg3: memref<8x896x16xbf16, #tpu.memory_space<vmem>>, %arg4: memref<32x16xbf16, #tpu.memory_space<vmem>>) attributes {dimension_semantics = [#tpu.dimension_semantics<parallel>], iteration_bounds = array<i64: 1>, scalar_prefetch = 0 : i64, scratch_operands = 0 : i64, tpu.core_type = #tpu.core_type<tc>, window_params = [{pipeline_mode = #tpu.pipeline_mode<synchronous>, transform_indices = @transform_0, window_bounds = array<i64: 32, 896>}, {pipeline_mode = #tpu.pipeline_mode<synchronous>, transform_indices = @transform_1, window_bounds = array<i64: 32, 1>}, {transform_indices = @transform_2, window_bounds = array<i64: 8, 896, 16>}, {transform_indices = @transform_3, window_bounds = array<i64: 32, 16>}]} {
    %c0 = arith.constant 0 : index
    %c0_0 = arith.constant 0 : index
    %0 = vector.load %arg1[%c0, %c0_0] : memref<32x896xbf16, #tpu.memory_space<vmem>>, vector<32x896xbf16>
    %c0_1 = arith.constant 0 : index
    %c0_2 = arith.constant 0 : index
    %1 = vector.load %arg2[%c0_1, %c0_2] : memref<32x1xf32, #tpu.memory_space<vmem>>, vector<32x1xf32>
    %c0_3 = arith.constant 0 : index
    %c0_4 = arith.constant 0 : index
    %c0_5 = arith.constant 0 : index
    %2 = vector.load %arg3[%c0_3, %c0_4, %c0_5] : memref<8x896x16xbf16, #tpu.memory_space<vmem>>, vector<1x896x16xbf16>
    %3 = vector.shape_cast %2 : vector<1x896x16xbf16> to vector<896x16xbf16>
    %cst = arith.constant dense<0.000000e+00> : vector<32x16xf32>
    %4 = tpu.matmul %0, %3, %cst {dimension_numbers = #tpu.dot_dimension_numbers<[1], [0], [0], [1], [0, 0, 1, 1], [], []>} : vector<32x896xbf16>, vector<896x16xbf16>, vector<32x16xf32> -> vector<32x16xf32>
    %5 = vector.broadcast %1 : vector<32x1xf32> to vector<32x16xf32>
    %6 = arith.addf %4, %5 : vector<32x16xf32>
    %cst_6 = arith.constant 0.000000e+00 : f32
    %7 = vector.broadcast %cst_6 : f32 to vector<32x16xf32>
    %8 = arith.cmpf oge, %6, %7 : vector<32x16xf32>
    %cst_7 = arith.constant 0.00999999977 : f32
    %9 = vector.broadcast %cst_7 : f32 to vector<32x16xf32>
    %10 = arith.mulf %9, %6 : vector<32x16xf32>
    %11 = arith.select %8, %6, %10 : vector<32x16xi1>, vector<32x16xf32>
    %c1 = arith.constant 1 : index
    %c0_8 = arith.constant 0 : index
    %c0_9 = arith.constant 0 : index
    %12 = vector.load %arg3[%c1, %c0_8, %c0_9] : memref<8x896x16xbf16, #tpu.memory_space<vmem>>, vector<1x896x16xbf16>
    %13 = vector.shape_cast %12 : vector<1x896x16xbf16> to vector<896x16xbf16>
    %cst_10 = arith.constant dense<0.000000e+00> : vector<32x16xf32>
    %14 = tpu.matmul %0, %13, %cst_10 {dimension_numbers = #tpu.dot_dimension_numbers<[1], [0], [0], [1], [0, 0, 1, 1], [], []>} : vector<32x896xbf16>, vector<896x16xbf16>, vector<32x16xf32> -> vector<32x16xf32>
    %15 = vector.broadcast %1 : vector<32x1xf32> to vector<32x16xf32>
    %16 = arith.addf %14, %15 : vector<32x16xf32>
    %cst_11 = arith.constant 0.000000e+00 : f32
    %17 = vector.broadcast %cst_11 : f32 to vector<32x16xf32>
    %18 = arith.cmpf oge, %16, %17 : vector<32x16xf32>
    %cst_12 = arith.constant 0.00999999977 : f32
    %19 = vector.broadcast %cst_12 : f32 to vector<32x16xf32>
    %20 = arith.mulf %19, %16 : vector<32x16xf32>
    %21 = arith.select %18, %16, %20 : vector<32x16xi1>, vector<32x16xf32>
    %22 = arith.maximumf %11, %21 : vector<32x16xf32>
    %c2 = arith.constant 2 : index
    %c0_13 = arith.constant 0 : index
    %c0_14 = arith.constant 0 : index
    %23 = vector.load %arg3[%c2, %c0_13, %c0_14] : memref<8x896x16xbf16, #tpu.memory_space<vmem>>, vector<1x896x16xbf16>
    %24 = vector.shape_cast %23 : vector<1x896x16xbf16> to vector<896x16xbf16>
    %cst_15 = arith.constant dense<0.000000e+00> : vector<32x16xf32>
    %25 = tpu.matmul %0, %24, %cst_15 {dimension_numbers = #tpu.dot_dimension_numbers<[1], [0], [0], [1], [0, 0, 1, 1], [], []>} : vector<32x896xbf16>, vector<896x16xbf16>, vector<32x16xf32> -> vector<32x16xf32>
    %26 = vector.broadcast %1 : vector<32x1xf32> to vector<32x16xf32>
    %27 = arith.addf %25, %26 : vector<32x16xf32>
    %cst_16 = arith.constant 0.000000e+00 : f32
    %28 = vector.broadcast %cst_16 : f32 to vector<32x16xf32>
    %29 = arith.cmpf oge, %27, %28 : vector<32x16xf32>
    %cst_17 = arith.constant 0.00999999977 : f32
    %30 = vector.broadcast %cst_17 : f32 to vector<32x16xf32>
    %31 = arith.mulf %30, %27 : vector<32x16xf32>
    %32 = arith.select %29, %27, %31 : vector<32x16xi1>, vector<32x16xf32>
    %33 = arith.maximumf %22, %32 : vector<32x16xf32>
    %c3 = arith.constant 3 : index
    %c0_18 = arith.constant 0 : index
    %c0_19 = arith.constant 0 : index
    %34 = vector.load %arg3[%c3, %c0_18, %c0_19] : memref<8x896x16xbf16, #tpu.memory_space<vmem>>, vector<1x896x16xbf16>
    %35 = vector.shape_cast %34 : vector<1x896x16xbf16> to vector<896x16xbf16>
    %cst_20 = arith.constant dense<0.000000e+00> : vector<32x16xf32>
    %36 = tpu.matmul %0, %35, %cst_20 {dimension_numbers = #tpu.dot_dimension_numbers<[1], [0], [0], [1], [0, 0, 1, 1], [], []>} : vector<32x896xbf16>, vector<896x16xbf16>, vector<32x16xf32> -> vector<32x16xf32>
    %37 = vector.broadcast %1 : vector<32x1xf32> to vector<32x16xf32>
    %38 = arith.addf %36, %37 : vector<32x16xf32>
    %cst_21 = arith.constant 0.000000e+00 : f32
    %39 = vector.broadcast %cst_21 : f32 to vector<32x16xf32>
    %40 = arith.cmpf oge, %38, %39 : vector<32x16xf32>
    %cst_22 = arith.constant 0.00999999977 : f32
    %41 = vector.broadcast %cst_22 : f32 to vector<32x16xf32>
    %42 = arith.mulf %41, %38 : vector<32x16xf32>
    %43 = arith.select %40, %38, %42 : vector<32x16xi1>, vector<32x16xf32>
    %44 = arith.maximumf %33, %43 : vector<32x16xf32>
    %c4 = arith.constant 4 : index
    %c0_23 = arith.constant 0 : index
    %c0_24 = arith.constant 0 : index
    %45 = vector.load %arg3[%c4, %c0_23, %c0_24] : memref<8x896x16xbf16, #tpu.memory_space<vmem>>, vector<1x896x16xbf16>
    %46 = vector.shape_cast %45 : vector<1x896x16xbf16> to vector<896x16xbf16>
    %cst_25 = arith.constant dense<0.000000e+00> : vector<32x16xf32>
    %47 = tpu.matmul %0, %46, %cst_25 {dimension_numbers = #tpu.dot_dimension_numbers<[1], [0], [0], [1], [0, 0, 1, 1], [], []>} : vector<32x896xbf16>, vector<896x16xbf16>, vector<32x16xf32> -> vector<32x16xf32>
    %48 = vector.broadcast %1 : vector<32x1xf32> to vector<32x16xf32>
    %49 = arith.addf %47, %48 : vector<32x16xf32>
    %cst_26 = arith.constant 0.000000e+00 : f32
    %50 = vector.broadcast %cst_26 : f32 to vector<32x16xf32>
    %51 = arith.cmpf oge, %49, %50 : vector<32x16xf32>
    %cst_27 = arith.constant 0.00999999977 : f32
    %52 = vector.broadcast %cst_27 : f32 to vector<32x16xf32>
    %53 = arith.mulf %52, %49 : vector<32x16xf32>
    %54 = arith.select %51, %49, %53 : vector<32x16xi1>, vector<32x16xf32>
    %55 = arith.maximumf %44, %54 : vector<32x16xf32>
    %c5 = arith.constant 5 : index
    %c0_28 = arith.constant 0 : index
    %c0_29 = arith.constant 0 : index
    %56 = vector.load %arg3[%c5, %c0_28, %c0_29] : memref<8x896x16xbf16, #tpu.memory_space<vmem>>, vector<1x896x16xbf16>
    %57 = vector.shape_cast %56 : vector<1x896x16xbf16> to vector<896x16xbf16>
    %cst_30 = arith.constant dense<0.000000e+00> : vector<32x16xf32>
    %58 = tpu.matmul %0, %57, %cst_30 {dimension_numbers = #tpu.dot_dimension_numbers<[1], [0], [0], [1], [0, 0, 1, 1], [], []>} : vector<32x896xbf16>, vector<896x16xbf16>, vector<32x16xf32> -> vector<32x16xf32>
    %59 = vector.broadcast %1 : vector<32x1xf32> to vector<32x16xf32>
    %60 = arith.addf %58, %59 : vector<32x16xf32>
    %cst_31 = arith.constant 0.000000e+00 : f32
    %61 = vector.broadcast %cst_31 : f32 to vector<32x16xf32>
    %62 = arith.cmpf oge, %60, %61 : vector<32x16xf32>
    %cst_32 = arith.constant 0.00999999977 : f32
    %63 = vector.broadcast %cst_32 : f32 to vector<32x16xf32>
    %64 = arith.mulf %63, %60 : vector<32x16xf32>
    %65 = arith.select %62, %60, %64 : vector<32x16xi1>, vector<32x16xf32>
    %66 = arith.maximumf %55, %65 : vector<32x16xf32>
    %c6 = arith.constant 6 : index
    %c0_33 = arith.constant 0 : index
    %c0_34 = arith.constant 0 : index
    %67 = vector.load %arg3[%c6, %c0_33, %c0_34] : memref<8x896x16xbf16, #tpu.memory_space<vmem>>, vector<1x896x16xbf16>
    %68 = vector.shape_cast %67 : vector<1x896x16xbf16> to vector<896x16xbf16>
    %cst_35 = arith.constant dense<0.000000e+00> : vector<32x16xf32>
    %69 = tpu.matmul %0, %68, %cst_35 {dimension_numbers = #tpu.dot_dimension_numbers<[1], [0], [0], [1], [0, 0, 1, 1], [], []>} : vector<32x896xbf16>, vector<896x16xbf16>, vector<32x16xf32> -> vector<32x16xf32>
    %70 = vector.broadcast %1 : vector<32x1xf32> to vector<32x16xf32>
    %71 = arith.addf %69, %70 : vector<32x16xf32>
    %cst_36 = arith.constant 0.000000e+00 : f32
    %72 = vector.broadcast %cst_36 : f32 to vector<32x16xf32>
    %73 = arith.cmpf oge, %71, %72 : vector<32x16xf32>
    %cst_37 = arith.constant 0.00999999977 : f32
    %74 = vector.broadcast %cst_37 : f32 to vector<32x16xf32>
    %75 = arith.mulf %74, %71 : vector<32x16xf32>
    %76 = arith.select %73, %71, %75 : vector<32x16xi1>, vector<32x16xf32>
    %77 = arith.maximumf %66, %76 : vector<32x16xf32>
    %c7 = arith.constant 7 : index
    %c0_38 = arith.constant 0 : index
    %c0_39 = arith.constant 0 : index
    %78 = vector.load %arg3[%c7, %c0_38, %c0_39] : memref<8x896x16xbf16, #tpu.memory_space<vmem>>, vector<1x896x16xbf16>
    %79 = vector.shape_cast %78 : vector<1x896x16xbf16> to vector<896x16xbf16>
    %cst_40 = arith.constant dense<0.000000e+00> : vector<32x16xf32>
    %80 = tpu.matmul %0, %79, %cst_40 {dimension_numbers = #tpu.dot_dimension_numbers<[1], [0], [0], [1], [0, 0, 1, 1], [], []>} : vector<32x896xbf16>, vector<896x16xbf16>, vector<32x16xf32> -> vector<32x16xf32>
    %81 = vector.broadcast %1 : vector<32x1xf32> to vector<32x16xf32>
    %82 = arith.addf %80, %81 : vector<32x16xf32>
    %cst_41 = arith.constant 0.000000e+00 : f32
    %83 = vector.broadcast %cst_41 : f32 to vector<32x16xf32>
    %84 = arith.cmpf oge, %82, %83 : vector<32x16xf32>
    %cst_42 = arith.constant 0.00999999977 : f32
    %85 = vector.broadcast %cst_42 : f32 to vector<32x16xf32>
    %86 = arith.mulf %85, %82 : vector<32x16xf32>
    %87 = arith.select %84, %82, %86 : vector<32x16xi1>, vector<32x16xf32>
    %88 = arith.maximumf %77, %87 : vector<32x16xf32>
    %89 = arith.truncf %88 : vector<32x16xf32> to vector<32x16xbf16>
    %c0_43 = arith.constant 0 : index
    %c0_44 = arith.constant 0 : index
    %90 = vector.load %arg4[%c0_43, %c0_44] : memref<32x16xbf16, #tpu.memory_space<vmem>>, vector<32x16xbf16>
    tpu.vector_store %arg4[%c0_43, %c0_44], %89 {strides = array<i32>} : memref<32x16xbf16, #tpu.memory_space<vmem>>, vector<32x16xbf16>,
    return
  }
  func.func @transform_0(%arg0: i32) -> (i32, i32) {
    %c0_i32 = arith.constant 0 : i32
    %c0_i32_0 = arith.constant 0 : i32
    %c0_i32_1 = arith.constant 0 : i32
    return %c0_i32, %c0_i32_0 : i32, i32
  }
  func.func @transform_1(%arg0: i32) -> (i32, i32) {
    %c0_i32 = arith.constant 0 : i32
    %c0_i32_0 = arith.constant 0 : i32
    %c0_i32_1 = arith.constant 0 : i32
    return %c0_i32, %c0_i32_0 : i32, i32
  }
  func.func @transform_2(%arg0: i32) -> (i32, i32, i32) {
    %c0_i32 = arith.constant 0 : i32
    %c0_i32_0 = arith.constant 0 : i32
    %c0_i32_1 = arith.constant 0 : i32
    return %c0_i32, %c0_i32_0, %arg0 : i32, i32, i32
  }
  func.func @transform_3(%arg0: i32) -> (i32, i32) {
    %c0_i32 = arith.constant 0 : i32
    %c0_i32_0 = arith.constant 0 : i32
    return %c0_i32, %arg0 : i32, i32
  }
}

module attributes {stable_mosaic.version = 11 : i64} {
  func.func @_head_kernel(%arg0: i32, %arg1: memref<2x256xbf16, #tpu.memory_space<vmem>>, %arg2: memref<256x128xbf16, #tpu.memory_space<vmem>>, %arg3: memref<1x128xf32, #tpu.memory_space<vmem>>, %arg4: memref<128x16xf32, #tpu.memory_space<vmem>>, %arg5: memref<1x16xf32, #tpu.memory_space<vmem>>, %arg6: memref<2x16xf32, #tpu.memory_space<vmem>>) attributes {dimension_semantics = [#tpu.dimension_semantics<parallel>], iteration_bounds = array<i64: 1>, scalar_prefetch = 0 : i64, scratch_operands = 0 : i64, tpu.core_type = #tpu.core_type<tc>, window_params = [{transform_indices = @transform_0, window_bounds = array<i64: 2, 256>}, {pipeline_mode = #tpu.pipeline_mode<synchronous>, transform_indices = @transform_1, window_bounds = array<i64: 256, 128>}, {pipeline_mode = #tpu.pipeline_mode<synchronous>, transform_indices = @transform_2, window_bounds = array<i64: 1, 128>}, {pipeline_mode = #tpu.pipeline_mode<synchronous>, transform_indices = @transform_3, window_bounds = array<i64: 128, 16>}, {pipeline_mode = #tpu.pipeline_mode<synchronous>, transform_indices = @transform_4, window_bounds = array<i64: 1, 16>}, {transform_indices = @transform_5, window_bounds = array<i64: 2, 16>}]} {
    %c0 = arith.constant 0 : index
    %c0_0 = arith.constant 0 : index
    %0 = vector.load %arg1[%c0, %c0_0] : memref<2x256xbf16, #tpu.memory_space<vmem>>, vector<2x256xbf16>
    %c0_1 = arith.constant 0 : index
    %c0_2 = arith.constant 0 : index
    %1 = vector.load %arg2[%c0_1, %c0_2] : memref<256x128xbf16, #tpu.memory_space<vmem>>, vector<256x128xbf16>
    %cst = arith.constant dense<0.000000e+00> : vector<2x128xf32>
    %2 = tpu.matmul %0, %1, %cst {dimension_numbers = #tpu.dot_dimension_numbers<[1], [0], [0], [1], [0, 0, 1, 1], [], []>} : vector<2x256xbf16>, vector<256x128xbf16>, vector<2x128xf32> -> vector<2x128xf32>
    %c0_3 = arith.constant 0 : index
    %c0_4 = arith.constant 0 : index
    %3 = vector.load %arg3[%c0_3, %c0_4] : memref<1x128xf32, #tpu.memory_space<vmem>>, vector<1x128xf32>
    %4 = vector.broadcast %3 : vector<1x128xf32> to vector<2x128xf32>
    %5 = arith.addf %2, %4 : vector<2x128xf32>
    %cst_5 = arith.constant 0.000000e+00 : f32
    %6 = vector.broadcast %cst_5 : f32 to vector<2x128xf32>
    %7 = arith.maximumf %5, %6 : vector<2x128xf32>
    %c0_6 = arith.constant 0 : index
    %c0_7 = arith.constant 0 : index
    %8 = vector.load %arg4[%c0_6, %c0_7] : memref<128x16xf32, #tpu.memory_space<vmem>>, vector<128x16xf32>
    %cst_8 = arith.constant dense<0.000000e+00> : vector<2x16xf32>
    %9 = tpu.matmul %7, %8, %cst_8 {dimension_numbers = #tpu.dot_dimension_numbers<[1], [0], [0], [1], [0, 0, 1, 1], [], []>} : vector<2x128xf32>, vector<128x16xf32>, vector<2x16xf32> -> vector<2x16xf32>
    %c0_9 = arith.constant 0 : index
    %c0_10 = arith.constant 0 : index
    %10 = vector.load %arg5[%c0_9, %c0_10] : memref<1x16xf32, #tpu.memory_space<vmem>>, vector<1x16xf32>
    %11 = vector.broadcast %10 : vector<1x16xf32> to vector<2x16xf32>
    %12 = arith.addf %9, %11 : vector<2x16xf32>
    %13 = math.tanh %12 : vector<2x16xf32>
    %c0_11 = arith.constant 0 : index
    %c0_12 = arith.constant 0 : index
    %14 = vector.load %arg6[%c0_11, %c0_12] : memref<2x16xf32, #tpu.memory_space<vmem>>, vector<2x16xf32>
    tpu.vector_store %arg6[%c0_11, %c0_12], %13 {strides = array<i32>} : memref<2x16xf32, #tpu.memory_space<vmem>>, vector<2x16xf32>,
    return
  }
  func.func @transform_0(%arg0: i32) -> (i32, i32) {
    %c0_i32 = arith.constant 0 : i32
    %c0_i32_0 = arith.constant 0 : i32
    return %arg0, %c0_i32 : i32, i32
  }
  func.func @transform_1(%arg0: i32) -> (i32, i32) {
    %c0_i32 = arith.constant 0 : i32
    %c0_i32_0 = arith.constant 0 : i32
    %c0_i32_1 = arith.constant 0 : i32
    return %c0_i32, %c0_i32_0 : i32, i32
  }
  func.func @transform_2(%arg0: i32) -> (i32, i32) {
    %c0_i32 = arith.constant 0 : i32
    %c0_i32_0 = arith.constant 0 : i32
    %c0_i32_1 = arith.constant 0 : i32
    return %c0_i32, %c0_i32_0 : i32, i32
  }
  func.func @transform_3(%arg0: i32) -> (i32, i32) {
    %c0_i32 = arith.constant 0 : i32
    %c0_i32_0 = arith.constant 0 : i32
    %c0_i32_1 = arith.constant 0 : i32
    return %c0_i32, %c0_i32_0 : i32, i32
  }
  func.func @transform_4(%arg0: i32) -> (i32, i32) {
    %c0_i32 = arith.constant 0 : i32
    %c0_i32_0 = arith.constant 0 : i32
    %c0_i32_1 = arith.constant 0 : i32
    return %c0_i32, %c0_i32_0 : i32, i32
  }
  func.func @transform_5(%arg0: i32) -> (i32, i32) {
    %c0_i32 = arith.constant 0 : i32
    %c0_i32_0 = arith.constant 0 : i32
    return %arg0, %c0_i32 : i32, i32
  }
}

</mosaic_0001>

<llo_original>
// kernel: voxnet_forward.3
$region0: #{voxnet_forward.3}
  #allocation0 [shape = 'u32[]', space=smem, size = 0x4, offset = 0x4, fixed_abs, tag = 'smem constant byte address 0x4 - core index']
  #allocation1 [shape = 'u32[144,128]{1,0:T(1,128)}', space=vmem, size = 0x12000, scoped, tag = 'internal scratch']
  %s0 = inlined_call_operand.vmem [shape: bf16[32,128], index: 0, kind: input, shape index: {}]
  %s1 = inlined_call_operand.vmem [shape: f32[32,1], index: 1, kind: input, shape index: {}]
  %s2 = inlined_call_operand.vmem [shape: bf16[128,512], index: 2, kind: input, shape index: {}]
  %s3 = inlined_call_operand.vmem [shape: bf16[32,512], index: 3, kind: output, shape index: {}]
  %s4 = sld [smem:[#allocation0]]
  $region123: #{voxnet_forward.3} parent=0
    _
  %s6 = ssub.s32 1, %s4
  %s7 = scalar_select 0, %s6, %s4
  $region1: #{voxnet_forward.3} parent=0
    #allocation2 [shape = 'u8[65536]{0}', space=vmem, size = 0x10000, scoped, tag = 'input window, operand 2']
    #allocation3 [shape = 'u8[16384]{0}', space=vmem, size = 0x4000, scoped, tag = 'output window, operand 0']
    loop: start=0, step=1, limit=6
    $region2: #{voxnet_forward.3} parent=1 // loop_pre_header
      _
    $region3: #{voxnet_forward.3} parent=1 // loop_header
      %s9 = sphi 0, %s13
      %p10 = scmp.ge.s32.totalorder %s9, 6
      %s17 = sphi 0, %s17
      %s19 = sphi 0, %s17
      %s20 = sphi 0, %s19
      %s34 = sphi 0, %s20
      %s38 = sphi 0, %s38
      %s40 = sphi 0, %s38
      %s41 = sphi 0, %s40
      %s55 = sphi 0, %s41
      %s61 = sphi 0, %s63
      %s64 = sphi 0, %s61
      %s65 = sphi 0, %s64
      %s81 = sphi 0, %s65
      %s87 = sphi 0, %s89
      %s90 = sphi 0, %s87
      %s91 = sphi 0, %s90
      %s107 = sphi 0, %s91
    $region4: #{voxnet_forward.3} parent=1 // loop_header_branch
      %12 = sbr.rel (%p10) target = $region8
    $region5: #{voxnet_forward.3} parent=1 // loop_body
      %s14 = ssub.s32 %s9, 1
      %s15 = ssub.s32 %s9, 2
      %s16 = sadd.s32 %s9, 1
      %s18 = sadd.s32 %s17, 1
      %p21 = scmp.eq.s32.totalorder %s9, 3
      %p22 = scmp.ne.s32.totalorder %s17, %s19
      %p23 = scmp.eq.s32.totalorder %s9, 0
      %p24 = por %p22, %p23
      %p25 = scmp.ne.s32.totalorder %s17, %s19
      %p26 = scmp.eq.s32.totalorder %s14, 3
      %p27 = por %p25, %p26
      %p28 = scmp.ne.s32.totalorder %s19, %s20
      %p29 = scmp.eq.s32.totalorder %s14, 0
      %p30 = por %p28, %p29
      %p31 = scmp.ne.s32.totalorder %s19, %s20
      %p32 = scmp.eq.s32.totalorder %s15, 3
      %p33 = por %p31, %p32
      %p35 = scmp.ne.s32.totalorder %s20, %s34
      %p36 = scmp.eq.s32.totalorder %s15, 0
      %p37 = por %p35, %p36
      %s39 = sadd.s32 %s38, 1
      %p42 = scmp.eq.s32.totalorder %s9, 3
      %p43 = scmp.ne.s32.totalorder %s38, %s40
      %p44 = scmp.eq.s32.totalorder %s9, 0
      %p45 = por %p43, %p44
      %p46 = scmp.ne.s32.totalorder %s38, %s40
      %p47 = scmp.eq.s32.totalorder %s14, 3
      %p48 = por %p46, %p47
      %p49 = scmp.ne.s32.totalorder %s40, %s41
      %p50 = scmp.eq.s32.totalorder %s14, 0
      %p51 = por %p49, %p50
      %p52 = scmp.ne.s32.totalorder %s40, %s41
      %p53 = scmp.eq.s32.totalorder %s15, 3
      %p54 = por %p52, %p53
      %p56 = scmp.ne.s32.totalorder %s41, %s55
      %p57 = scmp.eq.s32.totalorder %s15, 0
      %p58 = por %p56, %p57
      %s59 = ssub.s32 %s9, %s16
      %p60 = scmp.eq.s32.totalorder %s59, 0
      %s62 = sadd.s32 %s61, 1
      %s63 = scalar_select %p60, %s61, %s62
      %p66 = pneg %p60
      %p67 = scmp.eq.s32.totalorder %s9, 3
      %p68 = por %p66, %p67
      %p69 = scmp.ne.s32.totalorder %s61, %s64
      %p70 = scmp.eq.s32.totalorder %s9, 0
      %p71 = por %p69, %p70
      %p72 = scmp.ne.s32.totalorder %s61, %s64
      %p73 = scmp.eq.s32.totalorder %s14, 3
      %p74 = por %p72, %p73
      %p75 = scmp.ne.s32.totalorder %s64, %s65
      %p76 = scmp.eq.s32.totalorder %s14, 0
      %p77 = por %p75, %p76
      %p78 = scmp.ne.s32.totalorder %s64, %s65
      %p79 = scmp.eq.s32.totalorder %s15, 3
      %p80 = por %p78, %p79
      %p82 = scmp.ne.s32.totalorder %s65, %s81
      %p83 = scmp.eq.s32.totalorder %s15, 0
      %p84 = por %p82, %p83
      %s85 = ssub.s32 %s9, %s16
      %p86 = scmp.eq.s32.totalorder %s85, 0
      %s88 = sadd.s32 %s87, 1
      %s89 = scalar_select %p86, %s87, %s88
      %p92 = pneg %p86
      %p93 = scmp.eq.s32.totalorder %s9, 3
      %p94 = por %p92, %p93
      %p95 = scmp.ne.s32.totalorder %s87, %s90
      %p96 = scmp.eq.s32.totalorder %s9, 0
      %p97 = por %p95, %p96
      %p98 = scmp.ne.s32.totalorder %s87, %s90
      %p99 = scmp.eq.s32.totalorder %s14, 3
      %p100 = por %p98, %p99
      %p101 = scmp.ne.s32.totalorder %s90, %s91
      %p102 = scmp.eq.s32.totalorder %s14, 0
      %p103 = por %p101, %p102
      %p104 = scmp.ne.s32.totalorder %s90, %s91
      %p105 = scmp.eq.s32.totalorder %s15, 3
      %p106 = por %p104, %p105
      %p108 = scmp.ne.s32.totalorder %s91, %s107
      %p109 = scmp.eq.s32.totalorder %s15, 0
      %p110 = por %p108, %p109
      %p111 = scmp.le.s32.totalorder 1, %s9
      %p112 = scmp.lt.s32.totalorder %s9, 5
      %p113 = pnand %p111, %p112
      %p114 = pneg %p113
      // Predicated region
      $region9: #{voxnet_forward.3} parent=5 // pred_check
        _
      $region10: #{voxnet_forward.3} parent=5 // pred_check_branch
        %116 = sbr.rel (%p113) target = $region12
      $region11: #{voxnet_forward.3} parent=5 // pred_region
        %s117 = ssub.s32 %s9, 1
        // Predicated region
        $region13: #{voxnet_forward.3} parent=11 // pred_check
          %p118 = pneg %p30
        $region14: #{voxnet_forward.3} parent=11 // pred_check_branch
          %120 = sbr.rel (%p118) target = $region16
        $region15: #{voxnet_forward.3} parent=11 // pred_region
          _
        $region16: #{voxnet_forward.3} parent=11 // pred_fallthru
          _
        // Predicated region
        $region17: #{voxnet_forward.3} parent=11 // pred_check
          %p121 = pneg %p51
        $region18: #{voxnet_forward.3} parent=11 // pred_check_branch
          %123 = sbr.rel (%p121) target = $region20
        $region19: #{voxnet_forward.3} parent=11 // pred_region
          _
        $region20: #{voxnet_forward.3} parent=11 // pred_fallthru
          _
      $region12: #{voxnet_forward.3} parent=5 // pred_fallthru
        _
      %p124 = scmp.lt.s32.totalorder %s9, 4
      // Predicated region
      $region21: #{voxnet_forward.3} parent=5 // pred_check
        %p125 = pneg %p124
      $region22: #{voxnet_forward.3} parent=5 // pred_check_branch
        %127 = sbr.rel (%p125) target = $region24
      $region23: #{voxnet_forward.3} parent=5 // pred_region
        // Predicated region
        $region25: #{voxnet_forward.3} parent=23 // pred_check
          %p128 = pneg %p71
        $region26: #{voxnet_forward.3} parent=23 // pred_check_branch
          %130 = sbr.rel (%p128) target = $region28
        $region27: #{voxnet_forward.3} parent=23 // pred_region
          %s131 = sand.u32 %s61, 1
          %s132 = sand.u32 %s61, 1
          %s133 = smul.addr %s132, 64
          %s134 = scalar_lea.vmem [#allocation2], %s133
          %s135 = smul.addr %s9, 4
          %s136 = scalar_lea.vmem %s2, %s135
          // Predicated region
          $region29: #{voxnet_forward.3} parent=27 // pred_check
            _
          $region30: #{voxnet_forward.3} parent=27 // pred_check_branch
            %138 = sbr.rel (0) target = $region32
          $region31: #{voxnet_forward.3} parent=27 // pred_region
            // Predicated region
            $region33: #{voxnet_forward.3} parent=31 // pred_check
              _
            $region34: #{voxnet_forward.3} parent=31 // pred_check_branch
              %140 = sbr.rel target = $region36
            $region35: #{voxnet_forward.3} parent=31 // pred_region
              // Predicated region
              $region48: #{voxnet_forward.3} parent=35 // pred_check
                _
              $region49: #{voxnet_forward.3} parent=35 // pred_check_branch
                %186 = sbr.rel (0) target = $region51
              $region50: #{voxnet_forward.3} parent=35 // pred_region
                loop: start=0, step=1, limit=1
                $region52: #{voxnet_forward.3} parent=50 // loop_pre_header
                  _
                $region53: #{voxnet_forward.3} parent=50 // loop_header
                  %s188 = sphi 0, %s192
                  %p189 = scmp.ge.s32.totalorder %s188, 1
                  %s193 = sphi %s136, %s136
                  %s194 = sphi %s134, %s134
                $region54: #{voxnet_forward.3} parent=50 // loop_header_branch
                  %191 = sbr.rel (%p189) target = $region58
                $region55: #{voxnet_forward.3} parent=50 // loop_body
                  _
                $region56: #{voxnet_forward.3} parent=50 // loop_footer
                  %s192 = sadd.s32 1, %s188
                $region57: #{voxnet_forward.3} parent=50 // loop_footer_branch
                  %187 = sbr.rel target = $region53
                $region58: #{voxnet_forward.3} parent=50 // loop_exit
                  _
                %s196 = ssub.s32 16, 1
                loop: start=0, step=1, limit=1
                $region59: #{voxnet_forward.3} parent=50 // loop_pre_header
                  _
                $region60: #{voxnet_forward.3} parent=50 // loop_header
                  %s198 = sphi 0, %s202
                  %p199 = scmp.ge.s32.totalorder %s198, 1
                  %s203 = sphi %s136, %s136
                  %s204 = sphi %s134, %s134
                $region61: #{voxnet_forward.3} parent=50 // loop_header_branch
                  %201 = sbr.rel (%p199) target = $region65
                $region62: #{voxnet_forward.3} parent=50 // loop_body
                  %v205 = vld [vmem:[%s203] sm:%s196]
                  %206 = vst [vmem:[%s204] sm:%s196] %v205
                  %v207 = vld [vmem:[%s203 + $0x10] sm:%s196]
                  %208 = vst [vmem:[%s204 + $0x4] sm:%s196] %v207
                  %v209 = vld [vmem:[%s203 + $0x20] sm:%s196]
                  %210 = vst [vmem:[%s204 + $0x8] sm:%s196] %v209
                  %v211 = vld [vmem:[%s203 + $0x30] sm:%s196]
                  %212 = vst [vmem:[%s204 + $0xc] sm:%s196] %v211
                  %v213 = vld [vmem:[%s203 + $0x40] sm:%s196]
                  %214 = vst [vmem:[%s204 + $0x10] sm:%s196] %v213
                  %v215 = vld [vmem:[%s203 + $0x50] sm:%s196]
                  %216 = vst [vmem:[%s204 + $0x14] sm:%s196] %v215
                  %v217 = vld [vmem:[%s203 + $0x60] sm:%s196]
                  %218 = vst [vmem:[%s204 + $0x18] sm:%s196] %v217
                  %v219 = vld [vmem:[%s203 + $0x70] sm:%s196]
                  %220 = vst [vmem:[%s204 + $0x1c] sm:%s196] %v219
                  %v221 = vld [vmem:[%s203 + $0x80] sm:%s196]
                  %222 = vst [vmem:[%s204 + $0x20] sm:%s196] %v221
                  %v223 = vld [vmem:[%s203 + $0x90] sm:%s196]
                  %224 = vst [vmem:[%s204 + $0x24] sm:%s196] %v223
                  %v225 = vld [vmem:[%s203 + $0xa0] sm:%s196]
                  %226 = vst [vmem:[%s204 + $0x28] sm:%s196] %v225
                  %v227 = vld [vmem:[%s203 + $0xb0] sm:%s196]
                  %228 = vst [vmem:[%s204 + $0x2c] sm:%s196] %v227
                  %v229 = vld [vmem:[%s203 + $0xc0] sm:%s196]
                  %230 = vst [vmem:[%s204 + $0x30] sm:%s196] %v229
                  %v231 = vld [vmem:[%s203 + $0xd0] sm:%s196]
                  %232 = vst [vmem:[%s204 + $0x34] sm:%s196] %v231
                  %v233 = vld [vmem:[%s203 + $0xe0] sm:%s196]
                  %234 = vst [vmem:[%s204 + $0x38] sm:%s196] %v233
                  %v235 = vld [vmem:[%s203 + $0xf0] sm:%s196]
                  %236 = vst [vmem:[%s204 + $0x3c] sm:%s196] %v235
                $region63: #{voxnet_forward.3} parent=50 // loop_footer
                  %s202 = sadd.s32 1, %s198
                $region64: #{voxnet_forward.3} parent=50 // loop_footer_branch
                  %197 = sbr.rel target = $region60
                $region65: #{voxnet_forward.3} parent=50 // loop_exit
                  _
              $region51: #{voxnet_forward.3} parent=35 // pred_fallthru
                _
            $region36: #{voxnet_forward.3} parent=31 // pred_fallthru
              _
            // Predicated region
            $region37: #{voxnet_forward.3} parent=31 // pred_check
              _
            $region38: #{voxnet_forward.3} parent=31 // pred_check_branch
              %142 = sbr.rel (0) target = $region40
            $region39: #{voxnet_forward.3} parent=31 // pred_region
              %s144 = ssub.s32 16, 1
              loop: start=0, step=1, limit=1
              $region41: #{voxnet_forward.3} parent=39 // loop_pre_header
                _
              $region42: #{voxnet_forward.3} parent=39 // loop_header
                %s146 = sphi 0, %s150
                %p147 = scmp.ge.s32.totalorder %s146, 1
                %s151 = sphi %s136, %s136
                %s152 = sphi %s134, %s134
              $region43: #{voxnet_forward.3} parent=39 // loop_header_branch
                %149 = sbr.rel (%p147) target = $region47
              $region44: #{voxnet_forward.3} parent=39 // loop_body
                %v153 = vld [vmem:[%s151] sm:%s144]
                %154 = vst [vmem:[%s152] sm:%s144] %v153
                %v155 = vld [vmem:[%s151 + $0x10] sm:%s144]
                %156 = vst [vmem:[%s152 + $0x4] sm:%s144] %v155
                %v157 = vld [vmem:[%s151 + $0x20] sm:%s144]
                %158 = vst [vmem:[%s152 + $0x8] sm:%s144] %v157
                %v159 = vld [vmem:[%s151 + $0x30] sm:%s144]
                %160 = vst [vmem:[%s152 + $0xc] sm:%s144] %v159
                %v161 = vld [vmem:[%s151 + $0x40] sm:%s144]
                %162 = vst [vmem:[%s152 + $0x10] sm:%s144] %v161
                %v163 = vld [vmem:[%s151 + $0x50] sm:%s144]
                %164 = vst [vmem:[%s152 + $0x14] sm:%s144] %v163
                %v165 = vld [vmem:[%s151 + $0x60] sm:%s144]
                %166 = vst [vmem:[%s152 + $0x18] sm:%s144] %v165
                %v167 = vld [vmem:[%s151 + $0x70] sm:%s144]
                %168 = vst [vmem:[%s152 + $0x1c] sm:%s144] %v167
                %v169 = vld [vmem:[%s151 + $0x80] sm:%s144]
                %170 = vst [vmem:[%s152 + $0x20] sm:%s144] %v169
                %v171 = vld [vmem:[%s151 + $0x90] sm:%s144]
                %172 = vst [vmem:[%s152 + $0x24] sm:%s144] %v171
                %v173 = vld [vmem:[%s151 + $0xa0] sm:%s144]
                %174 = vst [vmem:[%s152 + $0x28] sm:%s144] %v173
                %v175 = vld [vmem:[%s151 + $0xb0] sm:%s144]
                %176 = vst [vmem:[%s152 + $0x2c] sm:%s144] %v175
                %v177 = vld [vmem:[%s151 + $0xc0] sm:%s144]
                %178 = vst [vmem:[%s152 + $0x30] sm:%s144] %v177
                %v179 = vld [vmem:[%s151 + $0xd0] sm:%s144]
                %180 = vst [vmem:[%s152 + $0x34] sm:%s144] %v179
                %v181 = vld [vmem:[%s151 + $0xe0] sm:%s144]
                %182 = vst [vmem:[%s152 + $0x38] sm:%s144] %v181
                %v183 = vld [vmem:[%s151 + $0xf0] sm:%s144]
                %184 = vst [vmem:[%s152 + $0x3c] sm:%s144] %v183
              $region45: #{voxnet_forward.3} parent=39 // loop_footer
                %s150 = sadd.s32 1, %s146
              $region46: #{voxnet_forward.3} parent=39 // loop_footer_branch
                %145 = sbr.rel target = $region42
              $region47: #{voxnet_forward.3} parent=39 // loop_exit
                _
            $region40: #{voxnet_forward.3} parent=31 // pred_fallthru
              _
          $region32: #{voxnet_forward.3} parent=27 // pred_fallthru
            _
          %237 = vnop
        $region28: #{voxnet_forward.3} parent=23 // pred_fallthru
          _
      $region24: #{voxnet_forward.3} parent=5 // pred_fallthru
        _
      %p238 = scmp.le.s32.totalorder 1, %s9
      %p239 = scmp.lt.s32.totalorder %s9, 5
      %p240 = pnand %p238, %p239
      %p241 = pneg %p240
      // Predicated region
      $region66: #{voxnet_forward.3} parent=5 // pred_check
        _
      $region67: #{voxnet_forward.3} parent=5 // pred_check_branch
        %243 = sbr.rel (%p240) target = $region69
      $region68: #{voxnet_forward.3} parent=5 // pred_region
        %s244 = ssub.s32 %s9, 1
        %s245 = sand.u32 %s64, 1
        %s246 = sand.u32 %s64, 1
        %s247 = smul.addr %s246, 64
        %s248 = scalar_lea.vmem [#allocation2], %s247
        // Predicated region
        $region70: #{voxnet_forward.3} parent=68 // pred_check
          %p249 = pneg %p77
        $region71: #{voxnet_forward.3} parent=68 // pred_check_branch
          %251 = sbr.rel (%p249) target = $region73
        $region72: #{voxnet_forward.3} parent=68 // pred_region
          _
        $region73: #{voxnet_forward.3} parent=68 // pred_fallthru
          _
        %p252 = pneg %p30
        %p253 = pneg %p27
        %p254 = pneg %p51
        %p255 = pneg %p48
        %s256 = sand.u32 %s64, 1
        %s257 = sand.u32 %s64, 1
        %s258 = smul.addr %s257, 64
        %s259 = scalar_lea.vmem [#allocation2], %s258
        %p260 = pneg %p77
        %p261 = pneg %p74
        %p262 = pneg %p103
        %p263 = pneg %p100
        %s264 = sand.u32 %s90, 1
        %s265 = sand.u32 %s90, 1
        %s266 = smul.addr %s265, 16
        %s267 = scalar_lea.vmem [#allocation3], %s266
        %v269 = vld [vmem:[%s0] sm:$0xf]
        %v270 = vld [vmem:[%s0 + $0x4] sm:$0xf]
        %v271 = vld [vmem:[%s0 + $0x8] sm:$0xf]
        %v272 = vld [vmem:[%s0 + $0xc] sm:$0xf]
        %v273 = vld [vmem:[%s248] sm:$0xf]
        %v274 = vld [vmem:[%s248 + $0x4] sm:$0xf]
        %v275 = vld [vmem:[%s248 + $0x8] sm:$0xf]
        %v276 = vld [vmem:[%s248 + $0xc] sm:$0xf]
        %v277 = vld [vmem:[%s248 + $0x10] sm:$0xf]
        %v278 = vld [vmem:[%s248 + $0x14] sm:$0xf]
        %v279 = vld [vmem:[%s248 + $0x18] sm:$0xf]
        %v280 = vld [vmem:[%s248 + $0x1c] sm:$0xf]
        %v281 = vld [vmem:[%s248 + $0x20] sm:$0xf]
        %v282 = vld [vmem:[%s248 + $0x24] sm:$0xf]
        %v283 = vld [vmem:[%s248 + $0x28] sm:$0xf]
        %v284 = vld [vmem:[%s248 + $0x2c] sm:$0xf]
        %v285 = vld [vmem:[%s248 + $0x30] sm:$0xf]
        %v286 = vld [vmem:[%s248 + $0x34] sm:$0xf]
        %v287 = vld [vmem:[%s248 + $0x38] sm:$0xf]
        %v288 = vld [vmem:[%s248 + $0x3c] sm:$0xf]
        %v289 = vld [vmem:[%s1] sm:$0xff]
        %v290 = vld [vmem:[%s1 + $0x8] sm:$0xff]
        %v291 = vld [vmem:[%s1 + $0x10] sm:$0xff]
        %v292 = vld [vmem:[%s1 + $0x18] sm:$0xff]
        %294 = vset.pattern.permute.xlu0 0
        %295 = vperm.xlu0 %294, %v289
        %v296 = vpop.permute.xlu0 %295
        %299 = vset.pattern.permute.xlu0 0
        %300 = vperm.xlu0 %299, %v290
        %v301 = vpop.permute.xlu0 %300
        %304 = vset.pattern.permute.xlu0 0
        %305 = vperm.xlu0 %304, %v291
        %v306 = vpop.permute.xlu0 %305
        %309 = vset.pattern.permute.xlu0 0
        %310 = vperm.xlu0 %309, %v292
        %v311 = vpop.permute.xlu0 %310
        %v317 = vunpack.c.l.b16 %v269
        %v318 = vunpack.c.l.b16 %v270
        %v319 = vunpack.c.l.b16 %v271
        %v320 = vunpack.c.l.b16 %v272
        %v321 = vpack.c.b16 %v318, %v317
        %v322 = vpack.c.b16 %v320, %v319
        %v341 = vunpack.c.l.b16 %v273
        %v342 = vunpack.c.l.b16 %v274
        %v343 = vunpack.c.l.b16 %v275
        %v344 = vunpack.c.l.b16 %v276
        %v345 = vunpack.c.l.b16 %v277
        %v346 = vunpack.c.l.b16 %v278
        %v347 = vunpack.c.l.b16 %v279
        %v348 = vunpack.c.l.b16 %v280
        %v349 = vunpack.c.l.b16 %v281
        %v350 = vunpack.c.l.b16 %v282
        %v351 = vunpack.c.l.b16 %v283
        %v352 = vunpack.c.l.b16 %v284
        %v353 = vunpack.c.l.b16 %v285
        %v354 = vunpack.c.l.b16 %v286
        %v355 = vunpack.c.l.b16 %v287
        %v356 = vunpack.c.l.b16 %v288
        %v357 = vpack.c.b16 %v342, %v341
        %v358 = vpack.c.b16 %v344, %v343
        %v359 = vpack.c.b16 %v346, %v345
        %v360 = vpack.c.b16 %v348, %v347
        %v361 = vpack.c.b16 %v350, %v349
        %v362 = vpack.c.b16 %v352, %v351
        %v363 = vpack.c.b16 %v354, %v353
        %v364 = vpack.c.b16 %v356, %v355
        %373 = vmatprep.subr.bf16.mxu0 0
        %374 = vmatpush1.bf16.msra.mxu0 %v364
        %375 = vmatprep.subr.bf16.mxu0 0
        %376 = vmatpush1.bf16.msra.mxu0 %v363
        %377 = vmatprep.subr.bf16.mxu0 0
        %378 = vmatpush1.bf16.msra.mxu0 %v362
        %379 = vmatprep.subr.bf16.mxu0 0
        %380 = vmatpush1.bf16.msra.mxu0 %v361
        %381 = vmatprep.subr.bf16.mxu0 0
        %382 = vmatpush1.bf16.msra.mxu0 %v360
        %383 = vmatprep.subr.bf16.mxu0 0
        %384 = vmatpush1.bf16.msra.mxu0 %v359
        %385 = vmatprep.subr.bf16.mxu0 0
        %386 = vmatpush1.bf16.msra.mxu0 %v358
        %387 = vmatprep.subr.bf16.mxu0 0
        %388 = vmatpush1.bf16.msra.mxu0 %v357
        %389 = vmatprep.subr.bf16.mxu0 0
        %390 = vmatpush2.bf16.msra.mxu0 0
        %391 = vmatprep.subr.bf16.mxu0 0
        %392 = vmatpush2.bf16.msra.mxu0 0
        %393 = vmatprep.subr.bf16.mxu0 0
        %394 = vmatpush2.bf16.msra.mxu0 0
        %395 = vmatprep.subr.bf16.mxu0 0
        %396 = vmatpush2.bf16.msra.mxu0 0
        %397 = vmatprep.subr.bf16.mxu0 0
        %398 = vmatpush2.bf16.msra.mxu0 0
        %399 = vmatprep.subr.bf16.mxu0 0
        %400 = vmatpush2.bf16.msra.mxu0 0
        %401 = vmatprep.subr.bf16.mxu0 0
        %402 = vmatpush2.bf16.msra.mxu0 0
        %403 = vmatprep.subr.bf16.mxu0 0
        %404 = vmatpush2.bf16.msra.mxu0 0
        %405 = vmatprep.mubr.bf16.mxu0 0
        %406 = vmatmul.mubr.bf16.gmra.mxu0 %v321
        %v407 = vpop.f32.mrf.mxu0
        %v408 = vadd.f32 %v296, %v407
        %v409 = vpop.f32.mrf.mxu0
        %v410 = vpop.f32.mrf.mxu0
        %v411 = vadd.f32 %v301, %v410
        %v412 = vpop.f32.mrf.mxu0
        %413 = vmatprep.mubr.bf16.mxu0 0
        %414 = vmatmul.mubr.bf16.gmra.mxu0 %v322
        %v415 = vpop.f32.mrf.mxu0
        %v416 = vadd.f32 %v306, %v415
        %v417 = vpop.f32.mrf.mxu0
        %v418 = vpop.f32.mrf.mxu0
        %v419 = vadd.f32 %v311, %v418
        %v420 = vpop.f32.mrf.mxu0
        %421 = vdwg.mxu0
        %vm422 = vcmp.ge.f32.partialorder %v408, 0.0
        %vm423 = vcmp.ge.f32.partialorder %v411, 0.0
        %vm424 = vcmp.ge.f32.partialorder %v416, 0.0
        %vm425 = vcmp.ge.f32.partialorder %v419, 0.0
        %v426 = vmul.f32 %v408, 0.01
        %v427 = vmul.f32 %v411, 0.01
        %v428 = vmul.f32 %v416, 0.01
        %v429 = vmul.f32 %v419, 0.01
        %v430 = vsel %vm422, %v408, %v426
        %v431 = vsel %vm423, %v411, %v427
        %v432 = vsel %vm424, %v416, %v428
        %v433 = vsel %vm425, %v419, %v429
        %v434 = vpack.c.bf16 %v431, %v430
        %v435 = vpack.c.bf16 %v433, %v432
        %v438 = vunpack.c.l.b16 %v434
        %v439 = vunpack.c.h.b16 %v434
        %v440 = vunpack.c.l.b16 %v435
        %v441 = vunpack.c.h.b16 %v435
        %v442 = vpack.c.b16 %v438, %v438
        %v443 = vpack.c.b16 %v439, %v439
        %v444 = vpack.c.b16 %v440, %v440
        %v445 = vpack.c.b16 %v441, %v441
        %450 = vst [vmem:[%s267] sm:$0xf] %v442
        %451 = vst [vmem:[%s267 + $0x4] sm:$0xf] %v443
        %452 = vst [vmem:[%s267 + $0x8] sm:$0xf] %v444
        %453 = vst [vmem:[%s267 + $0xc] sm:$0xf] %v445
        %s454 = sand.u32 %s90, 1
        %s455 = sand.u32 %s90, 1
        %s456 = smul.addr %s455, 16
        %s457 = scalar_lea.vmem [#allocation3], %s456
        // Predicated region
        $region74: #{voxnet_forward.3} parent=68 // pred_check
          %p458 = pneg %p100
        $region75: #{voxnet_forward.3} parent=68 // pred_check_branch
          %460 = sbr.rel (%p458) target = $region77
        $region76: #{voxnet_forward.3} parent=68 // pred_region
          %s461 = smul.addr %s14, 4
          %s462 = scalar_lea.vmem %s3, %s461
          // Predicated region
          $region78: #{voxnet_forward.3} parent=76 // pred_check
            _
          $region79: #{voxnet_forward.3} parent=76 // pred_check_branch
            %464 = sbr.rel (0) target = $region81
          $region80: #{voxnet_forward.3} parent=76 // pred_region
            // Predicated region
            $region82: #{voxnet_forward.3} parent=80 // pred_check
              _
            $region83: #{voxnet_forward.3} parent=80 // pred_check_branch
              %466 = sbr.rel target = $region85
            $region84: #{voxnet_forward.3} parent=80 // pred_region
              // Predicated region
              $region97: #{voxnet_forward.3} parent=84 // pred_check
                _
              $region98: #{voxnet_forward.3} parent=84 // pred_check_branch
                %488 = sbr.rel (0) target = $region100
              $region99: #{voxnet_forward.3} parent=84 // pred_region
                loop: start=0, step=1, limit=1
                $region101: #{voxnet_forward.3} parent=99 // loop_pre_header
                  _
                $region102: #{voxnet_forward.3} parent=99 // loop_header
                  %s490 = sphi 0, %s494
                  %p491 = scmp.ge.s32.totalorder %s490, 1
                  %s495 = sphi %s457, %s457
                  %s496 = sphi %s462, %s462
                $region103: #{voxnet_forward.3} parent=99 // loop_header_branch
                  %493 = sbr.rel (%p491) target = $region107
                $region104: #{voxnet_forward.3} parent=99 // loop_body
                  _
                $region105: #{voxnet_forward.3} parent=99 // loop_footer
                  %s494 = sadd.s32 1, %s490
                $region106: #{voxnet_forward.3} parent=99 // loop_footer_branch
                  %489 = sbr.rel target = $region102
                $region107: #{voxnet_forward.3} parent=99 // loop_exit
                  _
                %s498 = ssub.s32 16, 1
                loop: start=0, step=1, limit=1
                $region108: #{voxnet_forward.3} parent=99 // loop_pre_header
                  _
                $region109: #{voxnet_forward.3} parent=99 // loop_header
                  %s500 = sphi 0, %s504
                  %p501 = scmp.ge.s32.totalorder %s500, 1
                  %s505 = sphi %s457, %s457
                  %s506 = sphi %s462, %s462
                $region110: #{voxnet_forward.3} parent=99 // loop_header_branch
                  %503 = sbr.rel (%p501) target = $region114
                $region111: #{voxnet_forward.3} parent=99 // loop_body
                  %v507 = vld [vmem:[%s505] sm:%s498]
                  %508 = vst [vmem:[%s506] sm:%s498] %v507
                  %v509 = vld [vmem:[%s505 + $0x4] sm:%s498]
                  %510 = vst [vmem:[%s506 + $0x10] sm:%s498] %v509
                  %v511 = vld [vmem:[%s505 + $0x8] sm:%s498]
                  %512 = vst [vmem:[%s506 + $0x20] sm:%s498] %v511
                  %v513 = vld [vmem:[%s505 + $0xc] sm:%s498]
                  %514 = vst [vmem:[%s506 + $0x30] sm:%s498] %v513
                $region112: #{voxnet_forward.3} parent=99 // loop_footer
                  %s504 = sadd.s32 1, %s500
                $region113: #{voxnet_forward.3} parent=99 // loop_footer_branch
                  %499 = sbr.rel target = $region109
                $region114: #{voxnet_forward.3} parent=99 // loop_exit
                  _
              $region100: #{voxnet_forward.3} parent=84 // pred_fallthru
                _
            $region85: #{voxnet_forward.3} parent=80 // pred_fallthru
              _
            // Predicated region
            $region86: #{voxnet_forward.3} parent=80 // pred_check
              _
            $region87: #{voxnet_forward.3} parent=80 // pred_check_branch
              %468 = sbr.rel (0) target = $region89
            $region88: #{voxnet_forward.3} parent=80 // pred_region
              %s470 = ssub.s32 16, 1
              loop: start=0, step=1, limit=1
              $region90: #{voxnet_forward.3} parent=88 // loop_pre_header
                _
              $region91: #{voxnet_forward.3} parent=88 // loop_header
                %s472 = sphi 0, %s476
                %p473 = scmp.ge.s32.totalorder %s472, 1
                %s477 = sphi %s457, %s457
                %s478 = sphi %s462, %s462
              $region92: #{voxnet_forward.3} parent=88 // loop_header_branch
                %475 = sbr.rel (%p473) target = $region96
              $region93: #{voxnet_forward.3} parent=88 // loop_body
                %v479 = vld [vmem:[%s477] sm:%s470]
                %480 = vst [vmem:[%s478] sm:%s470] %v479
                %v481 = vld [vmem:[%s477 + $0x4] sm:%s470]
                %482 = vst [vmem:[%s478 + $0x10] sm:%s470] %v481
                %v483 = vld [vmem:[%s477 + $0x8] sm:%s470]
                %484 = vst [vmem:[%s478 + $0x20] sm:%s470] %v483
                %v485 = vld [vmem:[%s477 + $0xc] sm:%s470]
                %486 = vst [vmem:[%s478 + $0x30] sm:%s470] %v485
              $region94: #{voxnet_forward.3} parent=88 // loop_footer
                %s476 = sadd.s32 1, %s472
              $region95: #{voxnet_forward.3} parent=88 // loop_footer_branch
                %471 = sbr.rel target = $region91
              $region96: #{voxnet_forward.3} parent=88 // loop_exit
                _
            $region89: #{voxnet_forward.3} parent=80 // pred_fallthru
              _
          $region81: #{voxnet_forward.3} parent=76 // pred_fallthru
            _
          %515 = vnop
        $region77: #{voxnet_forward.3} parent=68 // pred_fallthru
          _
      $region69: #{voxnet_forward.3} parent=5 // pred_fallthru
        _
      %p516 = scmp.le.s32.totalorder 2, %s9
      // Predicated region
      $region115: #{voxnet_forward.3} parent=5 // pred_check
        %p517 = pneg %p516
      $region116: #{voxnet_forward.3} parent=5 // pred_check_branch
        %519 = sbr.rel (%p517) target = $region118
      $region117: #{voxnet_forward.3} parent=5 // pred_region
        %s520 = ssub.s32 %s9, 2
        // Predicated region
        $region119: #{voxnet_forward.3} parent=117 // pred_check
          %p521 = pneg %p106
        $region120: #{voxnet_forward.3} parent=117 // pred_check_branch
          %523 = sbr.rel (%p521) target = $region122
        $region121: #{voxnet_forward.3} parent=117 // pred_region
          %s524 = sand.u32 %s91, 1
          %s525 = sand.u32 %s91, 1
          %s526 = smul.addr %s525, 16
          %s527 = scalar_lea.vmem [#allocation3], %s526
        $region122: #{voxnet_forward.3} parent=117 // pred_fallthru
          _
      $region118: #{voxnet_forward.3} parent=5 // pred_fallthru
        _
    $region6: #{voxnet_forward.3} parent=1 // loop_footer
      %s13 = sadd.s32 1, %s9
    $region7: #{voxnet_forward.3} parent=1 // loop_footer_branch
      %8 = sbr.rel target = $region3
    $region8: #{voxnet_forward.3} parent=1 // loop_exit
      _

// kernel: voxnet_forward.5
$region0: #{voxnet_forward.5}
  #allocation0 [shape = 'u32[]', space=smem, size = 0x4, offset = 0x4, fixed_abs, tag = 'smem constant byte address 0x4 - core index']
  #allocation1 [shape = 'u32[144,128]{1,0:T(1,128)}', space=vmem, size = 0x12000, scoped, tag = 'internal scratch']
  %s0 = inlined_call_operand.vmem [shape: bf16[2,256], index: 0, kind: input, shape index: {}]
  %s1 = inlined_call_operand.vmem [shape: bf16[256,128], index: 1, kind: input, shape index: {}]
  %s2 = inlined_call_operand.vmem [shape: f32[1,128], index: 2, kind: input, shape index: {}]
  %s3 = inlined_call_operand.vmem [shape: f32[128,16], index: 3, kind: input, shape index: {}]
  %s4 = inlined_call_operand.vmem [shape: f32[1,16], index: 4, kind: input, shape index: {}]
  %s5 = inlined_call_operand.hbm [shape: f32[2,16], index: 5, kind: output, shape index: {}]
  %s6 = sld [smem:[#allocation0]]
  $region30: #{voxnet_forward.5} parent=0
    _
  %s8 = ssub.s32 1, %s6
  %s9 = scalar_select 0, %s8, %s6
  $region1: #{voxnet_forward.5} parent=0
    #allocation2 [shape = 'u8[1024]{0}', space=vmem, size = 0x400, scoped, tag = 'output window, operand 0, single buffered']
    #allocation3 [shape = 's32[1]{0}', space=sflag, size = 0x4, scoped, tag = 'scoped memory for voxnet_forward.5']
    %10 = vsyncpa [#allocation3], 0
    // Predicated region
    $region2: #{voxnet_forward.5} parent=1 // pred_check
      _
    $region3: #{voxnet_forward.5} parent=1 // pred_check_branch
      %12 = sbr.rel (0) target = $region5
    $region4: #{voxnet_forward.5} parent=1 // pred_region
      _
    $region5: #{voxnet_forward.5} parent=1 // pred_fallthru
      _
    // Predicated region
    $region6: #{voxnet_forward.5} parent=1 // pred_check
      _
    $region7: #{voxnet_forward.5} parent=1 // pred_check_branch
      %14 = sbr.rel (0) target = $region9
    $region8: #{voxnet_forward.5} parent=1 // pred_region
      _
    $region9: #{voxnet_forward.5} parent=1 // pred_fallthru
      _
    // Predicated region
    $region10: #{voxnet_forward.5} parent=1 // pred_check
      _
    $region11: #{voxnet_forward.5} parent=1 // pred_check_branch
      %16 = sbr.rel (0) target = $region13
    $region12: #{voxnet_forward.5} parent=1 // pred_region
      _
    $region13: #{voxnet_forward.5} parent=1 // pred_fallthru
      _
    // Predicated region
    $region14: #{voxnet_forward.5} parent=1 // pred_check
      _
    $region15: #{voxnet_forward.5} parent=1 // pred_check_branch
      %18 = sbr.rel (0) target = $region17
    $region16: #{voxnet_forward.5} parent=1 // pred_region
      _
    $region17: #{voxnet_forward.5} parent=1 // pred_fallthru
      _
    // Predicated region
    $region18: #{voxnet_forward.5} parent=1 // pred_check
      _
    $region19: #{voxnet_forward.5} parent=1 // pred_check_branch
      %20 = sbr.rel (0) target = $region21
    $region20: #{voxnet_forward.5} parent=1 // pred_region
      _
    $region21: #{voxnet_forward.5} parent=1 // pred_fallthru
      _
    %v22 = vld [vmem:[%s0] sm:$0x3]
    %v23 = vld [vmem:[%s1] sm:$0xf]
    %v24 = vld [vmem:[%s1 + $0x4] sm:$0xf]
    %v25 = vld [vmem:[%s1 + $0x8] sm:$0xf]
    %v26 = vld [vmem:[%s1 + $0xc] sm:$0xf]
    %v27 = vld [vmem:[%s1 + $0x10] sm:$0xf]
    %v28 = vld [vmem:[%s1 + $0x14] sm:$0xf]
    %v29 = vld [vmem:[%s1 + $0x18] sm:$0xf]
    %v30 = vld [vmem:[%s1 + $0x1c] sm:$0xf]
    %v31 = vld [vmem:[%s1 + $0x20] sm:$0xf]
    %v32 = vld [vmem:[%s1 + $0x24] sm:$0xf]
    %v33 = vld [vmem:[%s1 + $0x28] sm:$0xf]
    %v34 = vld [vmem:[%s1 + $0x2c] sm:$0xf]
    %v35 = vld [vmem:[%s1 + $0x30] sm:$0xf]
    %v36 = vld [vmem:[%s1 + $0x34] sm:$0xf]
    %v37 = vld [vmem:[%s1 + $0x38] sm:$0xf]
    %v38 = vld [vmem:[%s1 + $0x3c] sm:$0xf]
    %v39 = vld [vmem:[%s1 + $0x40] sm:$0xf]
    %v40 = vld [vmem:[%s1 + $0x44] sm:$0xf]
    %v41 = vld [vmem:[%s1 + $0x48] sm:$0xf]
    %v42 = vld [vmem:[%s1 + $0x4c] sm:$0xf]
    %v43 = vld [vmem:[%s1 + $0x50] sm:$0xf]
    %v44 = vld [vmem:[%s1 + $0x54] sm:$0xf]
    %v45 = vld [vmem:[%s1 + $0x58] sm:$0xf]
    %v46 = vld [vmem:[%s1 + $0x5c] sm:$0xf]
    %v47 = vld [vmem:[%s1 + $0x60] sm:$0xf]
    %v48 = vld [vmem:[%s1 + $0x64] sm:$0xf]
    %v49 = vld [vmem:[%s1 + $0x68] sm:$0xf]
    %v50 = vld [vmem:[%s1 + $0x6c] sm:$0xf]
    %v51 = vld [vmem:[%s1 + $0x70] sm:$0xf]
    %v52 = vld [vmem:[%s1 + $0x74] sm:$0xf]
    %v53 = vld [vmem:[%s1 + $0x78] sm:$0xf]
    %v54 = vld [vmem:[%s1 + $0x7c] sm:$0xf]
    %v55 = vld [vmem:[%s2] sm:$0x1]
    %v57 = vlaneseq
    %v58 = vshrl.u32 %v57, 7
    %v59 = vsub.s32 0, %v58
    %v60 = vrot.slane %v55, %v59
    %v64 = vunpack.c.l.s4 1966171168
    %v65 = vunpack.c.0.s8 %v64
    %v66 = vlaneseq
    %v67 = vshrl.u32 %v66, 7
    %v68 = vsub.s32 %v65, %v67
    %v69 = vrot.slane %v22, %v68
    %v70 = vcombine.high %v69, %v69
    %v72 = vunpack.c.l.s4 1966171168
    %v73 = vunpack.c.0.s8 %v72
    %v74 = vlaneseq
    %v75 = vshrl.u32 %v74, 7
    %v76 = vsub.s32 %v73, %v75
    %v77 = vrot.slane %v69, %v76
    %v79 = vunpack.c.l.s4 1966171168
    %v80 = vunpack.c.0.s8 %v79
    %v81 = vlaneseq
    %v82 = vshrl.u32 %v81, 7
    %v83 = vsub.s32 %v80, %v82
    %v84 = vrot.slane %v70, %v83
    %v119 = vunpack.c.l.b16 %v23
    %v120 = vunpack.c.l.b16 %v24
    %v121 = vunpack.c.l.b16 %v25
    %v122 = vunpack.c.l.b16 %v26
    %v123 = vunpack.c.l.b16 %v27
    %v124 = vunpack.c.l.b16 %v28
    %v125 = vunpack.c.l.b16 %v29
    %v126 = vunpack.c.l.b16 %v30
    %v127 = vunpack.c.l.b16 %v31
    %v128 = vunpack.c.l.b16 %v32
    %v129 = vunpack.c.l.b16 %v33
    %v130 = vunpack.c.l.b16 %v34
    %v131 = vunpack.c.l.b16 %v35
    %v132 = vunpack.c.l.b16 %v36
    %v133 = vunpack.c.l.b16 %v37
    %v134 = vunpack.c.l.b16 %v38
    %v135 = vunpack.c.l.b16 %v39
    %v136 = vunpack.c.l.b16 %v40
    %v137 = vunpack.c.l.b16 %v41
    %v138 = vunpack.c.l.b16 %v42
    %v139 = vunpack.c.l.b16 %v43
    %v140 = vunpack.c.l.b16 %v44
    %v141 = vunpack.c.l.b16 %v45
    %v142 = vunpack.c.l.b16 %v46
    %v143 = vunpack.c.l.b16 %v47
    %v144 = vunpack.c.l.b16 %v48
    %v145 = vunpack.c.l.b16 %v49
    %v146 = vunpack.c.l.b16 %v50
    %v147 = vunpack.c.l.b16 %v51
    %v148 = vunpack.c.l.b16 %v52
    %v149 = vunpack.c.l.b16 %v53
    %v150 = vunpack.c.l.b16 %v54
    %v151 = vpack.c.b16 %v120, %v119
    %v152 = vpack.c.b16 %v122, %v121
    %v153 = vpack.c.b16 %v124, %v123
    %v154 = vpack.c.b16 %v126, %v125
    %v155 = vpack.c.b16 %v128, %v127
    %v156 = vpack.c.b16 %v130, %v129
    %v157 = vpack.c.b16 %v132, %v131
    %v158 = vpack.c.b16 %v134, %v133
    %v159 = vpack.c.b16 %v136, %v135
    %v160 = vpack.c.b16 %v138, %v137
    %v161 = vpack.c.b16 %v140, %v139
    %v162 = vpack.c.b16 %v142, %v141
    %v163 = vpack.c.b16 %v144, %v143
    %v164 = vpack.c.b16 %v146, %v145
    %v165 = vpack.c.b16 %v148, %v147
    %v166 = vpack.c.b16 %v150, %v149
    %183 = vmatprep.subr.bf16.mxu0 0
    %184 = vmatpush1.bf16.msra.mxu0 %v158
    %185 = vmatprep.subr.bf16.mxu0 0
    %186 = vmatpush1.bf16.msra.mxu0 %v157
    %187 = vmatprep.subr.bf16.mxu0 0
    %188 = vmatpush1.bf16.msra.mxu0 %v156
    %189 = vmatprep.subr.bf16.mxu0 0
    %190 = vmatpush1.bf16.msra.mxu0 %v155
    %191 = vmatprep.subr.bf16.mxu0 0
    %192 = vmatpush1.bf16.msra.mxu0 %v154
    %193 = vmatprep.subr.bf16.mxu0 0
    %194 = vmatpush1.bf16.msra.mxu0 %v153
    %195 = vmatprep.subr.bf16.mxu0 0
    %196 = vmatpush1.bf16.msra.mxu0 %v152
    %197 = vmatprep.subr.bf16.mxu0 0
    %198 = vmatpush1.bf16.msra.mxu0 %v151
    %199 = vmatprep.subr.bf16.mxu0 0
    %200 = vmatpush2.bf16.msra.mxu0 %v166
    %201 = vmatprep.subr.bf16.mxu0 0
    %202 = vmatpush2.bf16.msra.mxu0 %v165
    %203 = vmatprep.subr.bf16.mxu0 0
    %204 = vmatpush2.bf16.msra.mxu0 %v164
    %205 = vmatprep.subr.bf16.mxu0 0
    %206 = vmatpush2.bf16.msra.mxu0 %v163
    %207 = vmatprep.subr.bf16.mxu0 0
    %208 = vmatpush2.bf16.msra.mxu0 %v162
    %209 = vmatprep.subr.bf16.mxu0 0
    %210 = vmatpush2.bf16.msra.mxu0 %v161
    %211 = vmatprep.subr.bf16.mxu0 0
    %212 = vmatpush2.bf16.msra.mxu0 %v160
    %213 = vmatprep.subr.bf16.mxu0 0
    %214 = vmatpush2.bf16.msra.mxu0 %v159
    %215 = vmatprep.mubr.bf16.mxu0 %v84
    %216 = vmatmul.mubr.bf16.gmra.mxu0 %v77
    %v217 = vpop.f32.mrf.mxu0
    %v218 = vadd.f32 %v60, %v217
    %v219 = vpop.f32.mrf.mxu0
    %v220 = vpop.f32.mrf.mxu0
    %v221 = vpop.f32.mrf.mxu0
    %222 = vdwg.mxu0
    %v223 = vmax.f32 %v218, 0.0
    %v224 = vld [vmem:[%s3] sm:$0xff]
    %v225 = vld [vmem:[%s3 + $0x8] sm:$0xff]
    %v226 = vld [vmem:[%s3 + $0x10] sm:$0xff]
    %v227 = vld [vmem:[%s3 + $0x18] sm:$0xff]
    %v228 = vld [vmem:[%s3 + $0x20] sm:$0xff]
    %v229 = vld [vmem:[%s3 + $0x28] sm:$0xff]
    %v230 = vld [vmem:[%s3 + $0x30] sm:$0xff]
    %v231 = vld [vmem:[%s3 + $0x38] sm:$0xff]
    %v232 = vld [vmem:[%s3 + $0x40] sm:$0xff]
    %v233 = vld [vmem:[%s3 + $0x48] sm:$0xff]
    %v234 = vld [vmem:[%s3 + $0x50] sm:$0xff]
    %v235 = vld [vmem:[%s3 + $0x58] sm:$0xff]
    %v236 = vld [vmem:[%s3 + $0x60] sm:$0xff]
    %v237 = vld [vmem:[%s3 + $0x68] sm:$0xff]
    %v238 = vld [vmem:[%s3 + $0x70] sm:$0xff]
    %v239 = vld [vmem:[%s3 + $0x78] sm:$0xff]
    %v240 = vld [vmem:[%s4] sm:$0x1]
    %v242 = vlaneseq
    %v243 = vshrl.u32 %v242, 7
    %v244 = vsub.s32 0, %v243
    %v245 = vrot.slane %v240, %v244
    %247 = vmatprep.subr.mxu0 0.0
    %248 = vmatpush1.msra.mxu0 %v239
    %249 = vmatprep.subr.mxu0 0.0
    %250 = vmatpush1.msra.mxu0 %v238
    %251 = vmatprep.subr.mxu0 0.0
    %252 = vmatpush1.msra.mxu0 %v237
    %253 = vmatprep.subr.mxu0 0.0
    %254 = vmatpush1.msra.mxu0 %v236
    %255 = vmatprep.subr.mxu0 0.0
    %256 = vmatpush1.msra.mxu0 %v235
    %257 = vmatprep.subr.mxu0 0.0
    %258 = vmatpush1.msra.mxu0 %v234
    %259 = vmatprep.subr.mxu0 0.0
    %260 = vmatpush1.msra.mxu0 %v233
    %261 = vmatprep.subr.mxu0 0.0
    %262 = vmatpush1.msra.mxu0 %v232
    %263 = vmatprep.subr.mxu0 0.0
    %264 = vmatpush1.msra.mxu0 %v231
    %265 = vmatprep.subr.mxu0 0.0
    %266 = vmatpush1.msra.mxu0 %v230
    %267 = vmatprep.subr.mxu0 0.0
    %268 = vmatpush1.msra.mxu0 %v229
    %269 = vmatprep.subr.mxu0 0.0
    %270 = vmatpush1.msra.mxu0 %v228
    %271 = vmatprep.subr.mxu0 0.0
    %272 = vmatpush1.msra.mxu0 %v227
    %273 = vmatprep.subr.mxu0 0.0
    %274 = vmatpush1.msra.mxu0 %v226
    %275 = vmatprep.subr.mxu0 0.0
    %276 = vmatpush1.msra.mxu0 %v225
    %277 = vmatprep.subr.mxu0 0.0
    %278 = vmatpush1.msra.mxu0 %v224
    %279 = vmatprep.subr.mxu0 0.0
    %280 = vmatpush2.msra.mxu0 0.0
    %281 = vmatprep.subr.mxu0 0.0
    %282 = vmatpush2.msra.mxu0 0.0
    %283 = vmatprep.subr.mxu0 0.0
    %284 = vmatpush2.msra.mxu0 0.0
    %285 = vmatprep.subr.mxu0 0.0
    %286 = vmatpush2.msra.mxu0 0.0
    %287 = vmatprep.subr.mxu0 0.0
    %288 = vmatpush2.msra.mxu0 0.0
    %289 = vmatprep.subr.mxu0 0.0
    %290 = vmatpush2.msra.mxu0 0.0
    %291 = vmatprep.subr.mxu0 0.0
    %292 = vmatpush2.msra.mxu0 0.0
    %293 = vmatprep.subr.mxu0 0.0
    %294 = vmatpush2.msra.mxu0 0.0
    %295 = vmatprep.subr.mxu0 0.0
    %296 = vmatpush2.msra.mxu0 0.0
    %297 = vmatprep.subr.mxu0 0.0
    %298 = vmatpush2.msra.mxu0 0.0
    %299 = vmatprep.subr.mxu0 0.0
    %300 = vmatpush2.msra.mxu0 0.0
    %301 = vmatprep.subr.mxu0 0.0
    %302 = vmatpush2.msra.mxu0 0.0
    %303 = vmatprep.subr.mxu0 0.0
    %304 = vmatpush2.msra.mxu0 0.0
    %305 = vmatprep.subr.mxu0 0.0
    %306 = vmatpush2.msra.mxu0 0.0
    %307 = vmatprep.subr.mxu0 0.0
    %308 = vmatpush2.msra.mxu0 0.0
    %309 = vmatprep.subr.mxu0 0.0
    %310 = vmatpush2.msra.mxu0 0.0
    %311 = vmatprep.mubr.f32.mxu0 0.0
    %312 = vmatmul.mubr.f32.gmra.mxu0 %v223
    %v313 = vpop.f32.mrf.mxu0
    %v314 = vadd.f32 %v245, %v313
    %v315 = vpop.f32.mrf.mxu0
    %316 = vdwg.mxu0
    %v317 = vtanh.pop %v314
    %vm318 = vcmask 123904
    %319 = vst.msk [vmem:[#allocation2] sm:$0x3] %vm318, %v317
    // Predicated region
    $region22: #{voxnet_forward.5} parent=1 // pred_check
      _
    $region23: #{voxnet_forward.5} parent=1 // pred_check_branch
      %321 = sbr.rel (0) target = $region25
    $region24: #{voxnet_forward.5} parent=1 // pred_region
      %s323 = ssub.s32 32, 32
      %324 = vsyncadd [#allocation3], %s323
      %s326 = sshll.u32 [#allocation2], 4
      %s327 = int_to_ptr.vmem [resolvable:$true] %s326
      %329 = dma.vmem_to_hbm [thread:$0]  %s327, 32, %s5, [#allocation3]
    $region25: #{voxnet_forward.5} parent=1 // pred_fallthru
      _
    // Predicated region
    $region26: #{voxnet_forward.5} parent=1 // pred_check
      _
    $region27: #{voxnet_forward.5} parent=1 // pred_check_branch
      %331 = sbr.rel (0) target = $region29
    $region28: #{voxnet_forward.5} parent=1 // pred_region
      %332 = dma.done [#allocation3], 32
    $region29: #{voxnet_forward.5} parent=1 // pred_fallthru
      _
    %333 = vsyncpa [#allocation3], 1

// kernel: voxnet_forward.4
$region0: #{voxnet_forward.4}
  #allocation0 [shape = 'u32[]', space=smem, size = 0x4, offset = 0x4, fixed_abs, tag = 'smem constant byte address 0x4 - core index']
  #allocation1 [shape = 'u32[144,128]{1,0:T(1,128)}', space=vmem, size = 0x12000, scoped, tag = 'internal scratch']
  %s0 = inlined_call_operand.vmem [shape: bf16[32,896], index: 0, kind: input, shape index: {}]
  %s1 = inlined_call_operand.vmem [shape: f32[32,1], index: 1, kind: input, shape index: {}]
  %s2 = inlined_call_operand.vmem [shape: bf16[8,896,16], index: 2, kind: input, shape index: {}]
  %s3 = inlined_call_operand.vmem [shape: bf16[32,16], index: 3, kind: output, shape index: {}]
  %s4 = sld [smem:[#allocation0]]
  $region22: #{voxnet_forward.4} parent=0
    _
  %s6 = ssub.s32 1, %s4
  %s7 = scalar_select 0, %s6, %s4
  // Predicated region
  $region2: #{voxnet_forward.4} parent=0 // pred_check
    _
  $region3: #{voxnet_forward.4} parent=0 // pred_check_branch
    %9 = sbr.rel (0) target = $region5
  $region4: #{voxnet_forward.4} parent=0 // pred_region
    _
  $region5: #{voxnet_forward.4} parent=0 // pred_fallthru
    _
  // Predicated region
  $region6: #{voxnet_forward.4} parent=0 // pred_check
    _
  $region7: #{voxnet_forward.4} parent=0 // pred_check_branch
    %11 = sbr.rel (0) target = $region9
  $region8: #{voxnet_forward.4} parent=0 // pred_region
    _
  $region9: #{voxnet_forward.4} parent=0 // pred_fallthru
    _
  // Predicated region
  $region10: #{voxnet_forward.4} parent=0 // pred_check
    _
  $region11: #{voxnet_forward.4} parent=0 // pred_check_branch
    %13 = sbr.rel (0) target = $region13
  $region12: #{voxnet_forward.4} parent=0 // pred_region
    _
  $region13: #{voxnet_forward.4} parent=0 // pred_fallthru
    _
  %v15 = vld [vmem:[%s0] sm:$0xff]
  %v16 = vld [vmem:[%s0 + $0x8] sm:$0xff]
  %v17 = vld [vmem:[%s0 + $0x10] sm:$0xff]
  %v18 = vld [vmem:[%s0 + $0x18] sm:$0xf]
  %v19 = vld [vmem:[%s0 + $0x1c] sm:$0xff]
  %v20 = vld [vmem:[%s0 + $0x24] sm:$0xff]
  %v21 = vld [vmem:[%s0 + $0x2c] sm:$0xff]
  %v22 = vld [vmem:[%s0 + $0x34] sm:$0xf]
  %v23 = vld [vmem:[%s0 + $0x38] sm:$0xff]
  %v24 = vld [vmem:[%s0 + $0x40] sm:$0xff]
  %v25 = vld [vmem:[%s0 + $0x48] sm:$0xff]
  %v26 = vld [vmem:[%s0 + $0x50] sm:$0xf]
  %v27 = vld [vmem:[%s0 + $0x54] sm:$0xff]
  %v28 = vld [vmem:[%s0 + $0x5c] sm:$0xff]
  %v29 = vld [vmem:[%s0 + $0x64] sm:$0xff]
  %v30 = vld [vmem:[%s0 + $0x6c] sm:$0xf]
  %v31 = vld [vmem:[%s1] sm:$0xff]
  %v32 = vld [vmem:[%s1 + $0x8] sm:$0xff]
  %v33 = vld [vmem:[%s1 + $0x10] sm:$0xff]
  %v34 = vld [vmem:[%s1 + $0x18] sm:$0xff]
  %v35 = vld [vmem:[%s2] sm:$0xf]
  %v36 = vld [vmem:[%s2 + $0x4] sm:$0xf]
  %v37 = vld [vmem:[%s2 + $0x8] sm:$0xf]
  %v38 = vld [vmem:[%s2 + $0xc] sm:$0xf]
  %v39 = vld [vmem:[%s2 + $0x10] sm:$0xf]
  %v40 = vld [vmem:[%s2 + $0x14] sm:$0xf]
  %v41 = vld [vmem:[%s2 + $0x18] sm:$0xf]
  %v42 = vld [vmem:[%s2 + $0x1c] sm:$0xf]
  %v43 = vld [vmem:[%s2 + $0x20] sm:$0xf]
  %v44 = vld [vmem:[%s2 + $0x24] sm:$0xf]
  %v45 = vld [vmem:[%s2 + $0x28] sm:$0xf]
  %v46 = vld [vmem:[%s2 + $0x2c] sm:$0xf]
  %v47 = vld [vmem:[%s2 + $0x30] sm:$0xf]
  %v48 = vld [vmem:[%s2 + $0x34] sm:$0xf]
  %v49 = vld [vmem:[%s2 + $0x38] sm:$0xf]
  %v50 = vld [vmem:[%s2 + $0x3c] sm:$0xf]
  %v51 = vld [vmem:[%s2 + $0x40] sm:$0xf]
  %v52 = vld [vmem:[%s2 + $0x44] sm:$0xf]
  %v53 = vld [vmem:[%s2 + $0x48] sm:$0xf]
  %v54 = vld [vmem:[%s2 + $0x4c] sm:$0xf]
  %v55 = vld [vmem:[%s2 + $0x50] sm:$0xf]
  %v56 = vld [vmem:[%s2 + $0x54] sm:$0xf]
  %v57 = vld [vmem:[%s2 + $0x58] sm:$0xf]
  %v58 = vld [vmem:[%s2 + $0x5c] sm:$0xf]
  %v59 = vld [vmem:[%s2 + $0x60] sm:$0xf]
  %v60 = vld [vmem:[%s2 + $0x64] sm:$0xf]
  %v61 = vld [vmem:[%s2 + $0x68] sm:$0xf]
  %v62 = vld [vmem:[%s2 + $0x6c] sm:$0xf]
  %v63 = vld [vmem:[%s2 + $0x70] sm:$0xf]
  %v64 = vld [vmem:[%s2 + $0x74] sm:$0xf]
  %v65 = vld [vmem:[%s2 + $0x78] sm:$0xf]
  %v66 = vld [vmem:[%s2 + $0x7c] sm:$0xf]
  %v67 = vld [vmem:[%s2 + $0x80] sm:$0xf]
  %v68 = vld [vmem:[%s2 + $0x84] sm:$0xf]
  %v69 = vld [vmem:[%s2 + $0x88] sm:$0xf]
  %v70 = vld [vmem:[%s2 + $0x8c] sm:$0xf]
  %v71 = vld [vmem:[%s2 + $0x90] sm:$0xf]
  %v72 = vld [vmem:[%s2 + $0x94] sm:$0xf]
  %v73 = vld [vmem:[%s2 + $0x98] sm:$0xf]
  %v74 = vld [vmem:[%s2 + $0x9c] sm:$0xf]
  %v75 = vld [vmem:[%s2 + $0xa0] sm:$0xf]
  %v76 = vld [vmem:[%s2 + $0xa4] sm:$0xf]
  %v77 = vld [vmem:[%s2 + $0xa8] sm:$0xf]
  %v78 = vld [vmem:[%s2 + $0xac] sm:$0xf]
  %v79 = vld [vmem:[%s2 + $0xb0] sm:$0xf]
  %v80 = vld [vmem:[%s2 + $0xb4] sm:$0xf]
  %v81 = vld [vmem:[%s2 + $0xb8] sm:$0xf]
  %v82 = vld [vmem:[%s2 + $0xbc] sm:$0xf]
  %v83 = vld [vmem:[%s2 + $0xc0] sm:$0xf]
  %v84 = vld [vmem:[%s2 + $0xc4] sm:$0xf]
  %v85 = vld [vmem:[%s2 + $0xc8] sm:$0xf]
  %v86 = vld [vmem:[%s2 + $0xcc] sm:$0xf]
  %v87 = vld [vmem:[%s2 + $0xd0] sm:$0xf]
  %v88 = vld [vmem:[%s2 + $0xd4] sm:$0xf]
  %v89 = vld [vmem:[%s2 + $0xd8] sm:$0xf]
  %v90 = vld [vmem:[%s2 + $0xdc] sm:$0xf]
  %v91 = vld [vmem:[%s2 + $0xe0] sm:$0xf]
  %v92 = vld [vmem:[%s2 + $0xe4] sm:$0xf]
  %v93 = vld [vmem:[%s2 + $0xe8] sm:$0xf]
  %v94 = vld [vmem:[%s2 + $0xec] sm:$0xf]
  %v95 = vld [vmem:[%s2 + $0xf0] sm:$0xf]
  %v96 = vld [vmem:[%s2 + $0xf4] sm:$0xf]
  %v97 = vld [vmem:[%s2 + $0xf8] sm:$0xf]
  %v98 = vld [vmem:[%s2 + $0xfc] sm:$0xf]
  %v99 = vld [vmem:[%s2 + $0x100] sm:$0xf]
  %v100 = vld [vmem:[%s2 + $0x104] sm:$0xf]
  %v101 = vld [vmem:[%s2 + $0x108] sm:$0xf]
  %v102 = vld [vmem:[%s2 + $0x10c] sm:$0xf]
  %v103 = vld [vmem:[%s2 + $0x110] sm:$0xf]
  %v104 = vld [vmem:[%s2 + $0x114] sm:$0xf]
  %v105 = vld [vmem:[%s2 + $0x118] sm:$0xf]
  %v106 = vld [vmem:[%s2 + $0x11c] sm:$0xf]
  %v107 = vld [vmem:[%s2 + $0x120] sm:$0xf]
  %v108 = vld [vmem:[%s2 + $0x124] sm:$0xf]
  %v109 = vld [vmem:[%s2 + $0x128] sm:$0xf]
  %v110 = vld [vmem:[%s2 + $0x12c] sm:$0xf]
  %v111 = vld [vmem:[%s2 + $0x130] sm:$0xf]
  %v112 = vld [vmem:[%s2 + $0x134] sm:$0xf]
  %v113 = vld [vmem:[%s2 + $0x138] sm:$0xf]
  %v114 = vld [vmem:[%s2 + $0x13c] sm:$0xf]
  %v115 = vld [vmem:[%s2 + $0x140] sm:$0xf]
  %v116 = vld [vmem:[%s2 + $0x144] sm:$0xf]
  %v117 = vld [vmem:[%s2 + $0x148] sm:$0xf]
  %v118 = vld [vmem:[%s2 + $0x14c] sm:$0xf]
  %v119 = vld [vmem:[%s2 + $0x150] sm:$0xf]
  %v120 = vld [vmem:[%s2 + $0x154] sm:$0xf]
  %v121 = vld [vmem:[%s2 + $0x158] sm:$0xf]
  %v122 = vld [vmem:[%s2 + $0x15c] sm:$0xf]
  %v123 = vld [vmem:[%s2 + $0x160] sm:$0xf]
  %v124 = vld [vmem:[%s2 + $0x164] sm:$0xf]
  %v125 = vld [vmem:[%s2 + $0x168] sm:$0xf]
  %v126 = vld [vmem:[%s2 + $0x16c] sm:$0xf]
  %v127 = vld [vmem:[%s2 + $0x170] sm:$0xf]
  %v128 = vld [vmem:[%s2 + $0x174] sm:$0xf]
  %v129 = vld [vmem:[%s2 + $0x178] sm:$0xf]
  %v130 = vld [vmem:[%s2 + $0x17c] sm:$0xf]
  %v131 = vld [vmem:[%s2 + $0x180] sm:$0xf]
  %v132 = vld [vmem:[%s2 + $0x184] sm:$0xf]
  %v133 = vld [vmem:[%s2 + $0x188] sm:$0xf]
  %v134 = vld [vmem:[%s2 + $0x18c] sm:$0xf]
  %v135 = vld [vmem:[%s2 + $0x190] sm:$0xf]
  %v136 = vld [vmem:[%s2 + $0x194] sm:$0xf]
  %v137 = vld [vmem:[%s2 + $0x198] sm:$0xf]
  %v138 = vld [vmem:[%s2 + $0x19c] sm:$0xf]
  %v139 = vld [vmem:[%s2 + $0x1a0] sm:$0xf]
  %v140 = vld [vmem:[%s2 + $0x1a4] sm:$0xf]
  %v141 = vld [vmem:[%s2 + $0x1a8] sm:$0xf]
  %v142 = vld [vmem:[%s2 + $0x1ac] sm:$0xf]
  %v143 = vld [vmem:[%s2 + $0x1b0] sm:$0xf]
  %v144 = vld [vmem:[%s2 + $0x1b4] sm:$0xf]
  %v145 = vld [vmem:[%s2 + $0x1b8] sm:$0xf]
  %v146 = vld [vmem:[%s2 + $0x1bc] sm:$0xf]
  %148 = vset.pattern.permute.xlu0 0
  %149 = vperm.xlu0 %148, %v31
  %v150 = vpop.permute.xlu0 %149
  %153 = vset.pattern.permute.xlu0 0
  %154 = vperm.xlu0 %153, %v32
  %v155 = vpop.permute.xlu0 %154
  %158 = vset.pattern.permute.xlu0 0
  %159 = vperm.xlu0 %158, %v33
  %v160 = vpop.permute.xlu0 %159
  %163 = vset.pattern.permute.xlu0 0
  %164 = vperm.xlu0 %163, %v34
  %v165 = vpop.permute.xlu0 %164
  %v183 = vunpack.c.l.b16 %v15
  %v184 = vunpack.c.h.b16 %v15
  %v185 = vunpack.c.l.b16 %v16
  %v186 = vunpack.c.h.b16 %v16
  %v187 = vunpack.c.l.b16 %v17
  %v188 = vunpack.c.h.b16 %v17
  %v189 = vunpack.c.l.b16 %v18
  %v190 = vunpack.c.l.b16 %v19
  %v191 = vunpack.c.h.b16 %v19
  %v192 = vunpack.c.l.b16 %v20
  %v193 = vunpack.c.h.b16 %v20
  %v194 = vunpack.c.l.b16 %v21
  %v195 = vunpack.c.h.b16 %v21
  %v196 = vunpack.c.l.b16 %v22
  %v197 = vunpack.c.l.b16 %v23
  %v198 = vunpack.c.h.b16 %v23
  %v199 = vunpack.c.l.b16 %v24
  %v200 = vunpack.c.h.b16 %v24
  %v201 = vunpack.c.l.b16 %v25
  %v202 = vunpack.c.h.b16 %v25
  %v203 = vunpack.c.l.b16 %v26
  %v204 = vunpack.c.l.b16 %v27
  %v205 = vunpack.c.h.b16 %v27
  %v206 = vunpack.c.l.b16 %v28
  %v207 = vunpack.c.h.b16 %v28
  %v208 = vunpack.c.l.b16 %v29
  %v209 = vunpack.c.h.b16 %v29
  %v210 = vunpack.c.l.b16 %v30
  %v211 = vpack.c.b16 %v190, %v183
  %v212 = vpack.c.b16 %v191, %v184
  %v213 = vpack.c.b16 %v192, %v185
  %v214 = vpack.c.b16 %v193, %v186
  %v215 = vpack.c.b16 %v194, %v187
  %v216 = vpack.c.b16 %v195, %v188
  %v217 = vpack.c.b16 %v196, %v189
  %v218 = vpack.c.b16 %v204, %v197
  %v219 = vpack.c.b16 %v205, %v198
  %v220 = vpack.c.b16 %v206, %v199
  %v221 = vpack.c.b16 %v207, %v200
  %v222 = vpack.c.b16 %v208, %v201
  %v223 = vpack.c.b16 %v209, %v202
  %v224 = vpack.c.b16 %v210, %v203
  %v351 = vunpack.c.l.b16 %v35
  %v352 = vunpack.c.l.b16 %v36
  %v353 = vunpack.c.l.b16 %v37
  %v354 = vunpack.c.l.b16 %v38
  %v355 = vunpack.c.l.b16 %v39
  %v356 = vunpack.c.l.b16 %v40
  %v357 = vunpack.c.l.b16 %v41
  %v358 = vunpack.c.l.b16 %v42
  %v359 = vunpack.c.l.b16 %v43
  %v360 = vunpack.c.l.b16 %v44
  %v361 = vunpack.c.l.b16 %v45
  %v362 = vunpack.c.l.b16 %v46
  %v363 = vunpack.c.l.b16 %v47
  %v364 = vunpack.c.l.b16 %v48
  %v365 = vunpack.c.l.b16 %v49
  %v366 = vunpack.c.l.b16 %v50
  %v367 = vunpack.c.l.b16 %v51
  %v368 = vunpack.c.l.b16 %v52
  %v369 = vunpack.c.l.b16 %v53
  %v370 = vunpack.c.l.b16 %v54
  %v371 = vunpack.c.l.b16 %v55
  %v372 = vunpack.c.l.b16 %v56
  %v373 = vunpack.c.l.b16 %v57
  %v374 = vunpack.c.l.b16 %v58
  %v375 = vunpack.c.l.b16 %v59
  %v376 = vunpack.c.l.b16 %v60
  %v377 = vunpack.c.l.b16 %v61
  %v378 = vunpack.c.l.b16 %v62
  %v379 = vunpack.c.l.b16 %v63
  %v380 = vunpack.c.l.b16 %v64
  %v381 = vunpack.c.l.b16 %v65
  %v382 = vunpack.c.l.b16 %v66
  %v383 = vunpack.c.l.b16 %v67
  %v384 = vunpack.c.l.b16 %v68
  %v385 = vunpack.c.l.b16 %v69
  %v386 = vunpack.c.l.b16 %v70
  %v387 = vunpack.c.l.b16 %v71
  %v388 = vunpack.c.l.b16 %v72
  %v389 = vunpack.c.l.b16 %v73
  %v390 = vunpack.c.l.b16 %v74
  %v391 = vunpack.c.l.b16 %v75
  %v392 = vunpack.c.l.b16 %v76
  %v393 = vunpack.c.l.b16 %v77
  %v394 = vunpack.c.l.b16 %v78
  %v395 = vunpack.c.l.b16 %v79
  %v396 = vunpack.c.l.b16 %v80
  %v397 = vunpack.c.l.b16 %v81
  %v398 = vunpack.c.l.b16 %v82
  %v399 = vunpack.c.l.b16 %v83
  %v400 = vunpack.c.l.b16 %v84
  %v401 = vunpack.c.l.b16 %v85
  %v402 = vunpack.c.l.b16 %v86
  %v403 = vunpack.c.l.b16 %v87
  %v404 = vunpack.c.l.b16 %v88
  %v405 = vunpack.c.l.b16 %v89
  %v406 = vunpack.c.l.b16 %v90
  %v407 = vunpack.c.l.b16 %v91
  %v408 = vunpack.c.l.b16 %v92
  %v409 = vunpack.c.l.b16 %v93
  %v410 = vunpack.c.l.b16 %v94
  %v411 = vunpack.c.l.b16 %v95
  %v412 = vunpack.c.l.b16 %v96
  %v413 = vunpack.c.l.b16 %v97
  %v414 = vunpack.c.l.b16 %v98
  %v415 = vunpack.c.l.b16 %v99
  %v416 = vunpack.c.l.b16 %v100
  %v417 = vunpack.c.l.b16 %v101
  %v418 = vunpack.c.l.b16 %v102
  %v419 = vunpack.c.l.b16 %v103
  %v420 = vunpack.c.l.b16 %v104
  %v421 = vunpack.c.l.b16 %v105
  %v422 = vunpack.c.l.b16 %v106
  %v423 = vunpack.c.l.b16 %v107
  %v424 = vunpack.c.l.b16 %v108
  %v425 = vunpack.c.l.b16 %v109
  %v426 = vunpack.c.l.b16 %v110
  %v427 = vunpack.c.l.b16 %v111
  %v428 = vunpack.c.l.b16 %v112
  %v429 = vunpack.c.l.b16 %v113
  %v430 = vunpack.c.l.b16 %v114
  %v431 = vunpack.c.l.b16 %v115
  %v432 = vunpack.c.l.b16 %v116
  %v433 = vunpack.c.l.b16 %v117
  %v434 = vunpack.c.l.b16 %v118
  %v435 = vunpack.c.l.b16 %v119
  %v436 = vunpack.c.l.b16 %v120
  %v437 = vunpack.c.l.b16 %v121
  %v438 = vunpack.c.l.b16 %v122
  %v439 = vunpack.c.l.b16 %v123
  %v440 = vunpack.c.l.b16 %v124
  %v441 = vunpack.c.l.b16 %v125
  %v442 = vunpack.c.l.b16 %v126
  %v443 = vunpack.c.l.b16 %v127
  %v444 = vunpack.c.l.b16 %v128
  %v445 = vunpack.c.l.b16 %v129
  %v446 = vunpack.c.l.b16 %v130
  %v447 = vunpack.c.l.b16 %v131
  %v448 = vunpack.c.l.b16 %v132
  %v449 = vunpack.c.l.b16 %v133
  %v450 = vunpack.c.l.b16 %v134
  %v451 = vunpack.c.l.b16 %v135
  %v452 = vunpack.c.l.b16 %v136
  %v453 = vunpack.c.l.b16 %v137
  %v454 = vunpack.c.l.b16 %v138
  %v455 = vunpack.c.l.b16 %v139
  %v456 = vunpack.c.l.b16 %v140
  %v457 = vunpack.c.l.b16 %v141
  %v458 = vunpack.c.l.b16 %v142
  %v459 = vunpack.c.l.b16 %v143
  %v460 = vunpack.c.l.b16 %v144
  %v461 = vunpack.c.l.b16 %v145
  %v462 = vunpack.c.l.b16 %v146
  %v463 = vpack.c.b16 %v352, %v351
  %v464 = vpack.c.b16 %v354, %v353
  %v465 = vpack.c.b16 %v356, %v355
  %v466 = vpack.c.b16 %v358, %v357
  %v467 = vpack.c.b16 %v360, %v359
  %v468 = vpack.c.b16 %v362, %v361
  %v469 = vpack.c.b16 %v364, %v363
  %v470 = vpack.c.b16 %v366, %v365
  %v471 = vpack.c.b16 %v368, %v367
  %v472 = vpack.c.b16 %v370, %v369
  %v473 = vpack.c.b16 %v372, %v371
  %v474 = vpack.c.b16 %v374, %v373
  %v475 = vpack.c.b16 %v376, %v375
  %v476 = vpack.c.b16 %v378, %v377
  %v477 = vpack.c.b16 %v380, %v379
  %v478 = vpack.c.b16 %v382, %v381
  %v479 = vpack.c.b16 %v384, %v383
  %v480 = vpack.c.b16 %v386, %v385
  %v481 = vpack.c.b16 %v388, %v387
  %v482 = vpack.c.b16 %v390, %v389
  %v483 = vpack.c.b16 %v392, %v391
  %v484 = vpack.c.b16 %v394, %v393
  %v485 = vpack.c.b16 %v396, %v395
  %v486 = vpack.c.b16 %v398, %v397
  %v487 = vpack.c.b16 %v400, %v399
  %v488 = vpack.c.b16 %v402, %v401
  %v489 = vpack.c.b16 %v404, %v403
  %v490 = vpack.c.b16 %v406, %v405
  %v491 = vpack.c.b16 %v408, %v407
  %v492 = vpack.c.b16 %v410, %v409
  %v493 = vpack.c.b16 %v412, %v411
  %v494 = vpack.c.b16 %v414, %v413
  %v495 = vpack.c.b16 %v416, %v415
  %v496 = vpack.c.b16 %v418, %v417
  %v497 = vpack.c.b16 %v420, %v419
  %v498 = vpack.c.b16 %v422, %v421
  %v499 = vpack.c.b16 %v424, %v423
  %v500 = vpack.c.b16 %v426, %v425
  %v501 = vpack.c.b16 %v428, %v427
  %v502 = vpack.c.b16 %v430, %v429
  %v503 = vpack.c.b16 %v432, %v431
  %v504 = vpack.c.b16 %v434, %v433
  %v505 = vpack.c.b16 %v436, %v435
  %v506 = vpack.c.b16 %v438, %v437
  %v507 = vpack.c.b16 %v440, %v439
  %v508 = vpack.c.b16 %v442, %v441
  %v509 = vpack.c.b16 %v444, %v443
  %v510 = vpack.c.b16 %v446, %v445
  %v511 = vpack.c.b16 %v448, %v447
  %v512 = vpack.c.b16 %v450, %v449
  %v513 = vpack.c.b16 %v452, %v451
  %v514 = vpack.c.b16 %v454, %v453
  %v515 = vpack.c.b16 %v456, %v455
  %v516 = vpack.c.b16 %v458, %v457
  %v517 = vpack.c.b16 %v460, %v459
  %v518 = vpack.c.b16 %v462, %v461
  %575 = vmatprep.subr.bf16.mxu0 0
  %576 = vmatpush1.bf16.msra.mxu0 %v470
  %577 = vmatprep.subr.bf16.mxu0 0
  %578 = vmatpush1.bf16.msra.mxu0 %v469
  %579 = vmatprep.subr.bf16.mxu0 0
  %580 = vmatpush1.bf16.msra.mxu0 %v468
  %581 = vmatprep.subr.bf16.mxu0 0
  %582 = vmatpush1.bf16.msra.mxu0 %v467
  %583 = vmatprep.subr.bf16.mxu0 0
  %584 = vmatpush1.bf16.msra.mxu0 %v466
  %585 = vmatprep.subr.bf16.mxu0 0
  %586 = vmatpush1.bf16.msra.mxu0 %v465
  %587 = vmatprep.subr.bf16.mxu0 0
  %588 = vmatpush1.bf16.msra.mxu0 %v464
  %589 = vmatprep.subr.bf16.mxu0 0
  %590 = vmatpush1.bf16.msra.mxu0 %v463
  %591 = vmatprep.subr.bf16.mxu0 0
  %592 = vmatpush2.bf16.msra.mxu0 %v478
  %593 = vmatprep.subr.bf16.mxu0 0
  %594 = vmatpush2.bf16.msra.mxu0 %v477
  %595 = vmatprep.subr.bf16.mxu0 0
  %596 = vmatpush2.bf16.msra.mxu0 %v476
  %597 = vmatprep.subr.bf16.mxu0 0
  %598 = vmatpush2.bf16.msra.mxu0 %v475
  %599 = vmatprep.subr.bf16.mxu0 0
  %600 = vmatpush2.bf16.msra.mxu0 %v474
  %601 = vmatprep.subr.bf16.mxu0 0
  %602 = vmatpush2.bf16.msra.mxu0 %v473
  %603 = vmatprep.subr.bf16.mxu0 0
  %604 = vmatpush2.bf16.msra.mxu0 %v472
  %605 = vmatprep.subr.bf16.mxu0 0
  %606 = vmatpush2.bf16.msra.mxu0 %v471
  %607 = vmatprep.mubr.bf16.mxu0 %v212
  %608 = vmatmul.mubr.bf16.gmra.mxu0 %v211
  %v609 = vpop.f32.mrf.mxu0
  %v610 = vadd.f32 %v150, %v609
  %v611 = vpop.f32.mrf.mxu0
  %v612 = vpop.f32.mrf.mxu0
  %v613 = vadd.f32 %v155, %v612
  %v614 = vpop.f32.mrf.mxu0
  %615 = vmatprep.mubr.bf16.mxu0 %v219
  %616 = vmatmul.mubr.bf16.gmra.mxu0 %v218
  %v617 = vpop.f32.mrf.mxu0
  %v618 = vadd.f32 %v160, %v617
  %v619 = vpop.f32.mrf.mxu0
  %v620 = vpop.f32.mrf.mxu0
  %v621 = vadd.f32 %v165, %v620
  %v622 = vpop.f32.mrf.mxu0
  %623 = vdwg.mxu0
  %624 = vmatprep.subr.bf16.mxu0 0
  %625 = vmatpush1.bf16.msra.mxu0 %v486
  %626 = vmatprep.subr.bf16.mxu0 0
  %627 = vmatpush1.bf16.msra.mxu0 %v485
  %628 = vmatprep.subr.bf16.mxu0 0
  %629 = vmatpush1.bf16.msra.mxu0 %v484
  %630 = vmatprep.subr.bf16.mxu0 0
  %631 = vmatpush1.bf16.msra.mxu0 %v483
  %632 = vmatprep.subr.bf16.mxu0 0
  %633 = vmatpush1.bf16.msra.mxu0 %v482
  %634 = vmatprep.subr.bf16.mxu0 0
  %635 = vmatpush1.bf16.msra.mxu0 %v481
  %636 = vmatprep.subr.bf16.mxu0 0
  %637 = vmatpush1.bf16.msra.mxu0 %v480
  %638 = vmatprep.subr.bf16.mxu0 0
  %639 = vmatpush1.bf16.msra.mxu0 %v479
  %640 = vmatprep.subr.bf16.mxu0 0
  %641 = vmatpush2.bf16.msra.mxu0 %v494
  %642 = vmatprep.subr.bf16.mxu0 0
  %643 = vmatpush2.bf16.msra.mxu0 %v493
  %644 = vmatprep.subr.bf16.mxu0 0
  %645 = vmatpush2.bf16.msra.mxu0 %v492
  %646 = vmatprep.subr.bf16.mxu0 0
  %647 = vmatpush2.bf16.msra.mxu0 %v491
  %648 = vmatprep.subr.bf16.mxu0 0
  %649 = vmatpush2.bf16.msra.mxu0 %v490
  %650 = vmatprep.subr.bf16.mxu0 0
  %651 = vmatpush2.bf16.msra.mxu0 %v489
  %652 = vmatprep.subr.bf16.mxu0 0
  %653 = vmatpush2.bf16.msra.mxu0 %v488
  %654 = vmatprep.subr.bf16.mxu0 0
  %655 = vmatpush2.bf16.msra.mxu0 %v487
  %656 = vmatprep.mubr.bf16.mxu0 %v214
  %657 = vmatmul.mubr.bf16.gmra.mxu0 %v213
  %v658 = vpop.f32.mrf.mxu0
  %v659 = vadd.f32 %v610, %v658
  %v660 = vpop.f32.mrf.mxu0
  %v661 = vpop.f32.mrf.mxu0
  %v662 = vadd.f32 %v613, %v661
  %v663 = vpop.f32.mrf.mxu0
  %664 = vmatprep.mubr.bf16.mxu0 %v221
  %665 = vmatmul.mubr.bf16.gmra.mxu0 %v220
  %v666 = vpop.f32.mrf.mxu0
  %v667 = vadd.f32 %v618, %v666
  %v668 = vpop.f32.mrf.mxu0
  %v669 = vpop.f32.mrf.mxu0
  %v670 = vadd.f32 %v621, %v669
  %v671 = vpop.f32.mrf.mxu0
  %672 = vdwg.mxu0
  %673 = vmatprep.subr.bf16.mxu0 0
  %674 = vmatpush1.bf16.msra.mxu0 %v502
  %675 = vmatprep.subr.bf16.mxu0 0
  %676 = vmatpush1.bf16.msra.mxu0 %v501
  %677 = vmatprep.subr.bf16.mxu0 0
  %678 = vmatpush1.bf16.msra.mxu0 %v500
  %679 = vmatprep.subr.bf16.mxu0 0
  %680 = vmatpush1.bf16.msra.mxu0 %v499
  %681 = vmatprep.subr.bf16.mxu0 0
  %682 = vmatpush1.bf16.msra.mxu0 %v498
  %683 = vmatprep.subr.bf16.mxu0 0
  %684 = vmatpush1.bf16.msra.mxu0 %v497
  %685 = vmatprep.subr.bf16.mxu0 0
  %686 = vmatpush1.bf16.msra.mxu0 %v496
  %687 = vmatprep.subr.bf16.mxu0 0
  %688 = vmatpush1.bf16.msra.mxu0 %v495
  %689 = vmatprep.subr.bf16.mxu0 0
  %690 = vmatpush2.bf16.msra.mxu0 %v510
  %691 = vmatprep.subr.bf16.mxu0 0
  %692 = vmatpush2.bf16.msra.mxu0 %v509
  %693 = vmatprep.subr.bf16.mxu0 0
  %694 = vmatpush2.bf16.msra.mxu0 %v508
  %695 = vmatprep.subr.bf16.mxu0 0
  %696 = vmatpush2.bf16.msra.mxu0 %v507
  %697 = vmatprep.subr.bf16.mxu0 0
  %698 = vmatpush2.bf16.msra.mxu0 %v506
  %699 = vmatprep.subr.bf16.mxu0 0
  %700 = vmatpush2.bf16.msra.mxu0 %v505
  %701 = vmatprep.subr.bf16.mxu0 0
  %702 = vmatpush2.bf16.msra.mxu0 %v504
  %703 = vmatprep.subr.bf16.mxu0 0
  %704 = vmatpush2.bf16.msra.mxu0 %v503
  %705 = vmatprep.mubr.bf16.mxu0 %v216
  %706 = vmatmul.mubr.bf16.gmra.mxu0 %v215
  %v707 = vpop.f32.mrf.mxu0
  %v708 = vadd.f32 %v659, %v707
  %v709 = vpop.f32.mrf.mxu0
  %v710 = vpop.f32.mrf.mxu0
  %v711 = vadd.f32 %v662, %v710
  %v712 = vpop.f32.mrf.mxu0
  %713 = vmatprep.mubr.bf16.mxu0 %v223
  %714 = vmatmul.mubr.bf16.gmra.mxu0 %v222
  %v715 = vpop.f32.mrf.mxu0
  %v716 = vadd.f32 %v667, %v715
  %v717 = vpop.f32.mrf.mxu0
  %v718 = vpop.f32.mrf.mxu0
  %v719 = vadd.f32 %v670, %v718
  %v720 = vpop.f32.mrf.mxu0
  %721 = vdwg.mxu0
  %722 = vmatprep.subr.bf16.mxu0 0
  %723 = vmatpush1.bf16.msra.mxu0 %v518
  %724 = vmatprep.subr.bf16.mxu0 0
  %725 = vmatpush1.bf16.msra.mxu0 %v517
  %726 = vmatprep.subr.bf16.mxu0 0
  %727 = vmatpush1.bf16.msra.mxu0 %v516
  %728 = vmatprep.subr.bf16.mxu0 0
  %729 = vmatpush1.bf16.msra.mxu0 %v515
  %730 = vmatprep.subr.bf16.mxu0 0
  %731 = vmatpush1.bf16.msra.mxu0 %v514
  %732 = vmatprep.subr.bf16.mxu0 0
  %733 = vmatpush1.bf16.msra.mxu0 %v513
  %734 = vmatprep.subr.bf16.mxu0 0
  %735 = vmatpush1.bf16.msra.mxu0 %v512
  %736 = vmatprep.subr.bf16.mxu0 0
  %737 = vmatpush1.bf16.msra.mxu0 %v511
  %738 = vmatprep.subr.bf16.mxu0 0
  %739 = vmatpush2.bf16.msra.mxu0 0
  %740 = vmatprep.subr.bf16.mxu0 0
  %741 = vmatpush2.bf16.msra.mxu0 0
  %742 = vmatprep.subr.bf16.mxu0 0
  %743 = vmatpush2.bf16.msra.mxu0 0
  %744 = vmatprep.subr.bf16.mxu0 0
  %745 = vmatpush2.bf16.msra.mxu0 0
  %746 = vmatprep.subr.bf16.mxu0 0
  %747 = vmatpush2.bf16.msra.mxu0 0
  %748 = vmatprep.subr.bf16.mxu0 0
  %749 = vmatpush2.bf16.msra.mxu0 0
  %750 = vmatprep.subr.bf16.mxu0 0
  %751 = vmatpush2.bf16.msra.mxu0 0
  %752 = vmatprep.subr.bf16.mxu0 0
  %753 = vmatpush2.bf16.msra.mxu0 0
  %754 = vmatprep.mubr.bf16.mxu0 0
  %755 = vmatmul.mubr.bf16.gmra.mxu0 %v217
  %v756 = vpop.f32.mrf.mxu0
  %v757 = vadd.f32 %v708, %v756
  %v758 = vpop.f32.mrf.mxu0
  %v759 = vpop.f32.mrf.mxu0
  %v760 = vadd.f32 %v711, %v759
  %v761 = vpop.f32.mrf.mxu0
  %762 = vmatprep.mubr.bf16.mxu0 0
  %763 = vmatmul.mubr.bf16.gmra.mxu0 %v224
  %v764 = vpop.f32.mrf.mxu0
  %v765 = vadd.f32 %v716, %v764
  %v766 = vpop.f32.mrf.mxu0
  %v767 = vpop.f32.mrf.mxu0
  %v768 = vadd.f32 %v719, %v767
  %v769 = vpop.f32.mrf.mxu0
  %770 = vdwg.mxu0
  %vm771 = vcmp.ge.f32.partialorder %v757, 0.0
  %vm772 = vcmp.ge.f32.partialorder %v760, 0.0
  %vm773 = vcmp.ge.f32.partialorder %v765, 0.0
  %vm774 = vcmp.ge.f32.partialorder %v768, 0.0
  %v775 = vmul.f32 %v757, 0.01
  %v776 = vmul.f32 %v760, 0.01
  %v777 = vmul.f32 %v765, 0.01
  %v778 = vmul.f32 %v768, 0.01
  %v779 = vsel %vm771, %v757, %v775
  %v780 = vsel %vm772, %v760, %v776
  %v781 = vsel %vm773, %v765, %v777
  %v782 = vsel %vm774, %v768, %v778
  %s783 = scalar_lea.vmem %s2, 448
  %v784 = vld [vmem:[%s783] sm:$0xf]
  %v785 = vld [vmem:[%s783 + $0x4] sm:$0xf]
  %v786 = vld [vmem:[%s783 + $0x8] sm:$0xf]
  %v787 = vld [vmem:[%s783 + $0xc] sm:$0xf]
  %v788 = vld [vmem:[%s783 + $0x10] sm:$0xf]
  %v789 = vld [vmem:[%s783 + $0x14] sm:$0xf]
  %v790 = vld [vmem:[%s783 + $0x18] sm:$0xf]
  %v791 = vld [vmem:[%s783 + $0x1c] sm:$0xf]
  %v792 = vld [vmem:[%s783 + $0x20] sm:$0xf]
  %v793 = vld [vmem:[%s783 + $0x24] sm:$0xf]
  %v794 = vld [vmem:[%s783 + $0x28] sm:$0xf]
  %v795 = vld [vmem:[%s783 + $0x2c] sm:$0xf]
  %v796 = vld [vmem:[%s783 + $0x30] sm:$0xf]
  %v797 = vld [vmem:[%s783 + $0x34] sm:$0xf]
  %v798 = vld [vmem:[%s783 + $0x38] sm:$0xf]
  %v799 = vld [vmem:[%s783 + $0x3c] sm:$0xf]
  %v800 = vld [vmem:[%s783 + $0x40] sm:$0xf]
  %v801 = vld [vmem:[%s783 + $0x44] sm:$0xf]
  %v802 = vld [vmem:[%s783 + $0x48] sm:$0xf]
  %v803 = vld [vmem:[%s783 + $0x4c] sm:$0xf]
  %v804 = vld [vmem:[%s783 + $0x50] sm:$0xf]
  %v805 = vld [vmem:[%s783 + $0x54] sm:$0xf]
  %v806 = vld [vmem:[%s783 + $0x58] sm:$0xf]
  %v807 = vld [vmem:[%s783 + $0x5c] sm:$0xf]
  %v808 = vld [vmem:[%s783 + $0x60] sm:$0xf]
  %v809 = vld [vmem:[%s783 + $0x64] sm:$0xf]
  %v810 = vld [vmem:[%s783 + $0x68] sm:$0xf]
  %v811 = vld [vmem:[%s783 + $0x6c] sm:$0xf]
  %v812 = vld [vmem:[%s783 + $0x70] sm:$0xf]
  %v813 = vld [vmem:[%s783 + $0x74] sm:$0xf]
  %v814 = vld [vmem:[%s783 + $0x78] sm:$0xf]
  %v815 = vld [vmem:[%s783 + $0x7c] sm:$0xf]
  %v816 = vld [vmem:[%s783 + $0x80] sm:$0xf]
  %v817 = vld [vmem:[%s783 + $0x84] sm:$0xf]
  %v818 = vld [vmem:[%s783 + $0x88] sm:$0xf]
  %v819 = vld [vmem:[%s783 + $0x8c] sm:$0xf]
  %v820 = vld [vmem:[%s783 + $0x90] sm:$0xf]
  %v821 = vld [vmem:[%s783 + $0x94] sm:$0xf]
  %v822 = vld [vmem:[%s783 + $0x98] sm:$0xf]
  %v823 = vld [vmem:[%s783 + $0x9c] sm:$0xf]
  %v824 = vld [vmem:[%s783 + $0xa0] sm:$0xf]
  %v825 = vld [vmem:[%s783 + $0xa4] sm:$0xf]
  %v826 = vld [vmem:[%s783 + $0xa8] sm:$0xf]
  %v827 = vld [vmem:[%s783 + $0xac] sm:$0xf]
  %v828 = vld [vmem:[%s783 + $0xb0] sm:$0xf]
  %v829 = vld [vmem:[%s783 + $0xb4] sm:$0xf]
  %v830 = vld [vmem:[%s783 + $0xb8] sm:$0xf]
  %v831 = vld [vmem:[%s783 + $0xbc] sm:$0xf]
  %v832 = vld [vmem:[%s783 + $0xc0] sm:$0xf]
  %v833 = vld [vmem:[%s783 + $0xc4] sm:$0xf]
  %v834 = vld [vmem:[%s783 + $0xc8] sm:$0xf]
  %v835 = vld [vmem:[%s783 + $0xcc] sm:$0xf]
  %v836 = vld [vmem:[%s783 + $0xd0] sm:$0xf]
  %v837 = vld [vmem:[%s783 + $0xd4] sm:$0xf]
  %v838 = vld [vmem:[%s783 + $0xd8] sm:$0xf]
  %v839 = vld [vmem:[%s783 + $0xdc] sm:$0xf]
  %v840 = vld [vmem:[%s783 + $0xe0] sm:$0xf]
  %v841 = vld [vmem:[%s783 + $0xe4] sm:$0xf]
  %v842 = vld [vmem:[%s783 + $0xe8] sm:$0xf]
  %v843 = vld [vmem:[%s783 + $0xec] sm:$0xf]
  %v844 = vld [vmem:[%s783 + $0xf0] sm:$0xf]
  %v845 = vld [vmem:[%s783 + $0xf4] sm:$0xf]
  %v846 = vld [vmem:[%s783 + $0xf8] sm:$0xf]
  %v847 = vld [vmem:[%s783 + $0xfc] sm:$0xf]
  %v848 = vld [vmem:[%s783 + $0x100] sm:$0xf]
  %v849 = vld [vmem:[%s783 + $0x104] sm:$0xf]
  %v850 = vld [vmem:[%s783 + $0x108] sm:$0xf]
  %v851 = vld [vmem:[%s783 + $0x10c] sm:$0xf]
  %v852 = vld [vmem:[%s783 + $0x110] sm:$0xf]
  %v853 = vld [vmem:[%s783 + $0x114] sm:$0xf]
  %v854 = vld [vmem:[%s783 + $0x118] sm:$0xf]
  %v855 = vld [vmem:[%s783 + $0x11c] sm:$0xf]
  %v856 = vld [vmem:[%s783 + $0x120] sm:$0xf]
  %v857 = vld [vmem:[%s783 + $0x124] sm:$0xf]
  %v858 = vld [vmem:[%s783 + $0x128] sm:$0xf]
  %v859 = vld [vmem:[%s783 + $0x12c] sm:$0xf]
  %v860 = vld [vmem:[%s783 + $0x130] sm:$0xf]
  %v861 = vld [vmem:[%s783 + $0x134] sm:$0xf]
  %v862 = vld [vmem:[%s783 + $0x138] sm:$0xf]
  %v863 = vld [vmem:[%s783 + $0x13c] sm:$0xf]
  %v864 = vld [vmem:[%s783 + $0x140] sm:$0xf]
  %v865 = vld [vmem:[%s783 + $0x144] sm:$0xf]
  %v866 = vld [vmem:[%s783 + $0x148] sm:$0xf]
  %v867 = vld [vmem:[%s783 + $0x14c] sm:$0xf]
  %v868 = vld [vmem:[%s783 + $0x150] sm:$0xf]
  %v869 = vld [vmem:[%s783 + $0x154] sm:$0xf]
  %v870 = vld [vmem:[%s783 + $0x158] sm:$0xf]
  %v871 = vld [vmem:[%s783 + $0x15c] sm:$0xf]
  %v872 = vld [vmem:[%s783 + $0x160] sm:$0xf]
  %v873 = vld [vmem:[%s783 + $0x164] sm:$0xf]
  %v874 = vld [vmem:[%s783 + $0x168] sm:$0xf]
  %v875 = vld [vmem:[%s783 + $0x16c] sm:$0xf]
  %v876 = vld [vmem:[%s783 + $0x170] sm:$0xf]
  %v877 = vld [vmem:[%s783 + $0x174] sm:$0xf]
  %v878 = vld [vmem:[%s783 + $0x178] sm:$0xf]
  %v879 = vld [vmem:[%s783 + $0x17c] sm:$0xf]
  %v880 = vld [vmem:[%s783 + $0x180] sm:$0xf]
  %v881 = vld [vmem:[%s783 + $0x184] sm:$0xf]
  %v882 = vld [vmem:[%s783 + $0x188] sm:$0xf]
  %v883 = vld [vmem:[%s783 + $0x18c] sm:$0xf]
  %v884 = vld [vmem:[%s783 + $0x190] sm:$0xf]
  %v885 = vld [vmem:[%s783 + $0x194] sm:$0xf]
  %v886 = vld [vmem:[%s783 + $0x198] sm:$0xf]
  %v887 = vld [vmem:[%s783 + $0x19c] sm:$0xf]
  %v888 = vld [vmem:[%s783 + $0x1a0] sm:$0xf]
  %v889 = vld [vmem:[%s783 + $0x1a4] sm:$0xf]
  %v890 = vld [vmem:[%s783 + $0x1a8] sm:$0xf]
  %v891 = vld [vmem:[%s783 + $0x1ac] sm:$0xf]
  %v892 = vld [vmem:[%s783 + $0x1b0] sm:$0xf]
  %v893 = vld [vmem:[%s783 + $0x1b4] sm:$0xf]
  %v894 = vld [vmem:[%s783 + $0x1b8] sm:$0xf]
  %v895 = vld [vmem:[%s783 + $0x1bc] sm:$0xf]
  %v1008 = vunpack.c.l.b16 %v784
  %v1009 = vunpack.c.l.b16 %v785
  %v1010 = vunpack.c.l.b16 %v786
  %v1011 = vunpack.c.l.b16 %v787
  %v1012 = vunpack.c.l.b16 %v788
  %v1013 = vunpack.c.l.b16 %v789
  %v1014 = vunpack.c.l.b16 %v790
  %v1015 = vunpack.c.l.b16 %v791
  %v1016 = vunpack.c.l.b16 %v792
  %v1017 = vunpack.c.l.b16 %v793
  %v1018 = vunpack.c.l.b16 %v794
  %v1019 = vunpack.c.l.b16 %v795
  %v1020 = vunpack.c.l.b16 %v796
  %v1021 = vunpack.c.l.b16 %v797
  %v1022 = vunpack.c.l.b16 %v798
  %v1023 = vunpack.c.l.b16 %v799
  %v1024 = vunpack.c.l.b16 %v800
  %v1025 = vunpack.c.l.b16 %v801
  %v1026 = vunpack.c.l.b16 %v802
  %v1027 = vunpack.c.l.b16 %v803
  %v1028 = vunpack.c.l.b16 %v804
  %v1029 = vunpack.c.l.b16 %v805
  %v1030 = vunpack.c.l.b16 %v806
  %v1031 = vunpack.c.l.b16 %v807
  %v1032 = vunpack.c.l.b16 %v808
  %v1033 = vunpack.c.l.b16 %v809
  %v1034 = vunpack.c.l.b16 %v810
  %v1035 = vunpack.c.l.b16 %v811
  %v1036 = vunpack.c.l.b16 %v812
  %v1037 = vunpack.c.l.b16 %v813
  %v1038 = vunpack.c.l.b16 %v814
  %v1039 = vunpack.c.l.b16 %v815
  %v1040 = vunpack.c.l.b16 %v816
  %v1041 = vunpack.c.l.b16 %v817
  %v1042 = vunpack.c.l.b16 %v818
  %v1043 = vunpack.c.l.b16 %v819
  %v1044 = vunpack.c.l.b16 %v820
  %v1045 = vunpack.c.l.b16 %v821
  %v1046 = vunpack.c.l.b16 %v822
  %v1047 = vunpack.c.l.b16 %v823
  %v1048 = vunpack.c.l.b16 %v824
  %v1049 = vunpack.c.l.b16 %v825
  %v1050 = vunpack.c.l.b16 %v826
  %v1051 = vunpack.c.l.b16 %v827
  %v1052 = vunpack.c.l.b16 %v828
  %v1053 = vunpack.c.l.b16 %v829
  %v1054 = vunpack.c.l.b16 %v830
  %v1055 = vunpack.c.l.b16 %v831
  %v1056 = vunpack.c.l.b16 %v832
  %v1057 = vunpack.c.l.b16 %v833
  %v1058 = vunpack.c.l.b16 %v834
  %v1059 = vunpack.c.l.b16 %v835
  %v1060 = vunpack.c.l.b16 %v836
  %v1061 = vunpack.c.l.b16 %v837
  %v1062 = vunpack.c.l.b16 %v838
  %v1063 = vunpack.c.l.b16 %v839
  %v1064 = vunpack.c.l.b16 %v840
  %v1065 = vunpack.c.l.b16 %v841
  %v1066 = vunpack.c.l.b16 %v842
  %v1067 = vunpack.c.l.b16 %v843
  %v1068 = vunpack.c.l.b16 %v844
  %v1069 = vunpack.c.l.b16 %v845
  %v1070 = vunpack.c.l.b16 %v846
  %v1071 = vunpack.c.l.b16 %v847
  %v1072 = vunpack.c.l.b16 %v848
  %v1073 = vunpack.c.l.b16 %v849
  %v1074 = vunpack.c.l.b16 %v850
  %v1075 = vunpack.c.l.b16 %v851
  %v1076 = vunpack.c.l.b16 %v852
  %v1077 = vunpack.c.l.b16 %v853
  %v1078 = vunpack.c.l.b16 %v854
  %v1079 = vunpack.c.l.b16 %v855
  %v1080 = vunpack.c.l.b16 %v856
  %v1081 = vunpack.c.l.b16 %v857
  %v1082 = vunpack.c.l.b16 %v858
  %v1083 = vunpack.c.l.b16 %v859
  %v1084 = vunpack.c.l.b16 %v860
  %v1085 = vunpack.c.l.b16 %v861
  %v1086 = vunpack.c.l.b16 %v862
  %v1087 = vunpack.c.l.b16 %v863
  %v1088 = vunpack.c.l.b16 %v864
  %v1089 = vunpack.c.l.b16 %v865
  %v1090 = vunpack.c.l.b16 %v866
  %v1091 = vunpack.c.l.b16 %v867
  %v1092 = vunpack.c.l.b16 %v868
  %v1093 = vunpack.c.l.b16 %v869
  %v1094 = vunpack.c.l.b16 %v870
  %v1095 = vunpack.c.l.b16 %v871
  %v1096 = vunpack.c.l.b16 %v872
  %v1097 = vunpack.c.l.b16 %v873
  %v1098 = vunpack.c.l.b16 %v874
  %v1099 = vunpack.c.l.b16 %v875
  %v1100 = vunpack.c.l.b16 %v876
  %v1101 = vunpack.c.l.b16 %v877
  %v1102 = vunpack.c.l.b16 %v878
  %v1103 = vunpack.c.l.b16 %v879
  %v1104 = vunpack.c.l.b16 %v880
  %v1105 = vunpack.c.l.b16 %v881
  %v1106 = vunpack.c.l.b16 %v882
  %v1107 = vunpack.c.l.b16 %v883
  %v1108 = vunpack.c.l.b16 %v884
  %v1109 = vunpack.c.l.b16 %v885
  %v1110 = vunpack.c.l.b16 %v886
  %v1111 = vunpack.c.l.b16 %v887
  %v1112 = vunpack.c.l.b16 %v888
  %v1113 = vunpack.c.l.b16 %v889
  %v1114 = vunpack.c.l.b16 %v890
  %v1115 = vunpack.c.l.b16 %v891
  %v1116 = vunpack.c.l.b16 %v892
  %v1117 = vunpack.c.l.b16 %v893
  %v1118 = vunpack.c.l.b16 %v894
  %v1119 = vunpack.c.l.b16 %v895
  %v1120 = vpack.c.b16 %v1009, %v1008
  %v1121 = vpack.c.b16 %v1011, %v1010
  %v1122 = vpack.c.b16 %v1013, %v1012
  %v1123 = vpack.c.b16 %v1015, %v1014
  %v1124 = vpack.c.b16 %v1017, %v1016
  %v1125 = vpack.c.b16 %v1019, %v1018
  %v1126 = vpack.c.b16 %v1021, %v1020
  %v1127 = vpack.c.b16 %v1023, %v1022
  %v1128 = vpack.c.b16 %v1025, %v1024
  %v1129 = vpack.c.b16 %v1027, %v1026
  %v1130 = vpack.c.b16 %v1029, %v1028
  %v1131 = vpack.c.b16 %v1031, %v1030
  %v1132 = vpack.c.b16 %v1033, %v1032
  %v1133 = vpack.c.b16 %v1035, %v1034
  %v1134 = vpack.c.b16 %v1037, %v1036
  %v1135 = vpack.c.b16 %v1039, %v1038
  %v1136 = vpack.c.b16 %v1041, %v1040
  %v1137 = vpack.c.b16 %v1043, %v1042
  %v1138 = vpack.c.b16 %v1045, %v1044
  %v1139 = vpack.c.b16 %v1047, %v1046
  %v1140 = vpack.c.b16 %v1049, %v1048
  %v1141 = vpack.c.b16 %v1051, %v1050
  %v1142 = vpack.c.b16 %v1053, %v1052
  %v1143 = vpack.c.b16 %v1055, %v1054
  %v1144 = vpack.c.b16 %v1057, %v1056
  %v1145 = vpack.c.b16 %v1059, %v1058
  %v1146 = vpack.c.b16 %v1061, %v1060
  %v1147 = vpack.c.b16 %v1063, %v1062
  %v1148 = vpack.c.b16 %v1065, %v1064
  %v1149 = vpack.c.b16 %v1067, %v1066
  %v1150 = vpack.c.b16 %v1069, %v1068
  %v1151 = vpack.c.b16 %v1071, %v1070
  %v1152 = vpack.c.b16 %v1073, %v1072
  %v1153 = vpack.c.b16 %v1075, %v1074
  %v1154 = vpack.c.b16 %v1077, %v1076
  %v1155 = vpack.c.b16 %v1079, %v1078
  %v1156 = vpack.c.b16 %v1081, %v1080
  %v1157 = vpack.c.b16 %v1083, %v1082
  %v1158 = vpack.c.b16 %v1085, %v1084
  %v1159 = vpack.c.b16 %v1087, %v1086
  %v1160 = vpack.c.b16 %v1089, %v1088
  %v1161 = vpack.c.b16 %v1091, %v1090
  %v1162 = vpack.c.b16 %v1093, %v1092
  %v1163 = vpack.c.b16 %v1095, %v1094
  %v1164 = vpack.c.b16 %v1097, %v1096
  %v1165 = vpack.c.b16 %v1099, %v1098
  %v1166 = vpack.c.b16 %v1101, %v1100
  %v1167 = vpack.c.b16 %v1103, %v1102
  %v1168 = vpack.c.b16 %v1105, %v1104
  %v1169 = vpack.c.b16 %v1107, %v1106
  %v1170 = vpack.c.b16 %v1109, %v1108
  %v1171 = vpack.c.b16 %v1111, %v1110
  %v1172 = vpack.c.b16 %v1113, %v1112
  %v1173 = vpack.c.b16 %v1115, %v1114
  %v1174 = vpack.c.b16 %v1117, %v1116
  %v1175 = vpack.c.b16 %v1119, %v1118
  %1232 = vmatprep.subr.bf16.mxu0 0
  %1233 = vmatpush1.bf16.msra.mxu0 %v1127
  %1234 = vmatprep.subr.bf16.mxu0 0
  %1235 = vmatpush1.bf16.msra.mxu0 %v1126
  %1236 = vmatprep.subr.bf16.mxu0 0
  %1237 = vmatpush1.bf16.msra.mxu0 %v1125
  %1238 = vmatprep.subr.bf16.mxu0 0
  %1239 = vmatpush1.bf16.msra.mxu0 %v1124
  %1240 = vmatprep.subr.bf16.mxu0 0
  %1241 = vmatpush1.bf16.msra.mxu0 %v1123
  %1242 = vmatprep.subr.bf16.mxu0 0
  %1243 = vmatpush1.bf16.msra.mxu0 %v1122
  %1244 = vmatprep.subr.bf16.mxu0 0
  %1245 = vmatpush1.bf16.msra.mxu0 %v1121
  %1246 = vmatprep.subr.bf16.mxu0 0
  %1247 = vmatpush1.bf16.msra.mxu0 %v1120
  %1248 = vmatprep.subr.bf16.mxu0 0
  %1249 = vmatpush2.bf16.msra.mxu0 %v1135
  %1250 = vmatprep.subr.bf16.mxu0 0
  %1251 = vmatpush2.bf16.msra.mxu0 %v1134
  %1252 = vmatprep.subr.bf16.mxu0 0
  %1253 = vmatpush2.bf16.msra.mxu0 %v1133
  %1254 = vmatprep.subr.bf16.mxu0 0
  %1255 = vmatpush2.bf16.msra.mxu0 %v1132
  %1256 = vmatprep.subr.bf16.mxu0 0
  %1257 = vmatpush2.bf16.msra.mxu0 %v1131
  %1258 = vmatprep.subr.bf16.mxu0 0
  %1259 = vmatpush2.bf16.msra.mxu0 %v1130
  %1260 = vmatprep.subr.bf16.mxu0 0
  %1261 = vmatpush2.bf16.msra.mxu0 %v1129
  %1262 = vmatprep.subr.bf16.mxu0 0
  %1263 = vmatpush2.bf16.msra.mxu0 %v1128
  %1264 = vmatprep.mubr.bf16.mxu0 %v212
  %1265 = vmatmul.mubr.bf16.gmra.mxu0 %v211
  %v1266 = vpop.f32.mrf.mxu0
  %v1267 = vadd.f32 %v150, %v1266
  %v1268 = vpop.f32.mrf.mxu0
  %v1269 = vpop.f32.mrf.mxu0
  %v1270 = vadd.f32 %v155, %v1269
  %v1271 = vpop.f32.mrf.mxu0
  %1272 = vmatprep.mubr.bf16.mxu0 %v219
  %1273 = vmatmul.mubr.bf16.gmra.mxu0 %v218
  %v1274 = vpop.f32.mrf.mxu0
  %v1275 = vadd.f32 %v160, %v1274
  %v1276 = vpop.f32.mrf.mxu0
  %v1277 = vpop.f32.mrf.mxu0
  %v1278 = vadd.f32 %v165, %v1277
  %v1279 = vpop.f32.mrf.mxu0
  %1280 = vdwg.mxu0
  %1281 = vmatprep.subr.bf16.mxu0 0
  %1282 = vmatpush1.bf16.msra.mxu0 %v1143
  %1283 = vmatprep.subr.bf16.mxu0 0
  %1284 = vmatpush1.bf16.msra.mxu0 %v1142
  %1285 = vmatprep.subr.bf16.mxu0 0
  %1286 = vmatpush1.bf16.msra.mxu0 %v1141
  %1287 = vmatprep.subr.bf16.mxu0 0
  %1288 = vmatpush1.bf16.msra.mxu0 %v1140
  %1289 = vmatprep.subr.bf16.mxu0 0
  %1290 = vmatpush1.bf16.msra.mxu0 %v1139
  %1291 = vmatprep.subr.bf16.mxu0 0
  %1292 = vmatpush1.bf16.msra.mxu0 %v1138
  %1293 = vmatprep.subr.bf16.mxu0 0
  %1294 = vmatpush1.bf16.msra.mxu0 %v1137
  %1295 = vmatprep.subr.bf16.mxu0 0
  %1296 = vmatpush1.bf16.msra.mxu0 %v1136
  %1297 = vmatprep.subr.bf16.mxu0 0
  %1298 = vmatpush2.bf16.msra.mxu0 %v1151
  %1299 = vmatprep.subr.bf16.mxu0 0
  %1300 = vmatpush2.bf16.msra.mxu0 %v1150
  %1301 = vmatprep.subr.bf16.mxu0 0
  %1302 = vmatpush2.bf16.msra.mxu0 %v1149
  %1303 = vmatprep.subr.bf16.mxu0 0
  %1304 = vmatpush2.bf16.msra.mxu0 %v1148
  %1305 = vmatprep.subr.bf16.mxu0 0
  %1306 = vmatpush2.bf16.msra.mxu0 %v1147
  %1307 = vmatprep.subr.bf16.mxu0 0
  %1308 = vmatpush2.bf16.msra.mxu0 %v1146
  %1309 = vmatprep.subr.bf16.mxu0 0
  %1310 = vmatpush2.bf16.msra.mxu0 %v1145
  %1311 = vmatprep.subr.bf16.mxu0 0
  %1312 = vmatpush2.bf16.msra.mxu0 %v1144
  %1313 = vmatprep.mubr.bf16.mxu0 %v214
  %1314 = vmatmul.mubr.bf16.gmra.mxu0 %v213
  %v1315 = vpop.f32.mrf.mxu0
  %v1316 = vadd.f32 %v1267, %v1315
  %v1317 = vpop.f32.mrf.mxu0
  %v1318 = vpop.f32.mrf.mxu0
  %v1319 = vadd.f32 %v1270, %v1318
  %v1320 = vpop.f32.mrf.mxu0
  %1321 = vmatprep.mubr.bf16.mxu0 %v221
  %1322 = vmatmul.mubr.bf16.gmra.mxu0 %v220
  %v1323 = vpop.f32.mrf.mxu0
  %v1324 = vadd.f32 %v1275, %v1323
  %v1325 = vpop.f32.mrf.mxu0
  %v1326 = vpop.f32.mrf.mxu0
  %v1327 = vadd.f32 %v1278, %v1326
  %v1328 = vpop.f32.mrf.mxu0
  %1329 = vdwg.mxu0
  %1330 = vmatprep.subr.bf16.mxu0 0
  %1331 = vmatpush1.bf16.msra.mxu0 %v1159
  %1332 = vmatprep.subr.bf16.mxu0 0
  %1333 = vmatpush1.bf16.msra.mxu0 %v1158
  %1334 = vmatprep.subr.bf16.mxu0 0
  %1335 = vmatpush1.bf16.msra.mxu0 %v1157
  %1336 = vmatprep.subr.bf16.mxu0 0
  %1337 = vmatpush1.bf16.msra.mxu0 %v1156
  %1338 = vmatprep.subr.bf16.mxu0 0
  %1339 = vmatpush1.bf16.msra.mxu0 %v1155
  %1340 = vmatprep.subr.bf16.mxu0 0
  %1341 = vmatpush1.bf16.msra.mxu0 %v1154
  %1342 = vmatprep.subr.bf16.mxu0 0
  %1343 = vmatpush1.bf16.msra.mxu0 %v1153
  %1344 = vmatprep.subr.bf16.mxu0 0
  %1345 = vmatpush1.bf16.msra.mxu0 %v1152
  %1346 = vmatprep.subr.bf16.mxu0 0
  %1347 = vmatpush2.bf16.msra.mxu0 %v1167
  %1348 = vmatprep.subr.bf16.mxu0 0
  %1349 = vmatpush2.bf16.msra.mxu0 %v1166
  %1350 = vmatprep.subr.bf16.mxu0 0
  %1351 = vmatpush2.bf16.msra.mxu0 %v1165
  %1352 = vmatprep.subr.bf16.mxu0 0
  %1353 = vmatpush2.bf16.msra.mxu0 %v1164
  %1354 = vmatprep.subr.bf16.mxu0 0
  %1355 = vmatpush2.bf16.msra.mxu0 %v1163
  %1356 = vmatprep.subr.bf16.mxu0 0
  %1357 = vmatpush2.bf16.msra.mxu0 %v1162
  %1358 = vmatprep.subr.bf16.mxu0 0
  %1359 = vmatpush2.bf16.msra.mxu0 %v1161
  %1360 = vmatprep.subr.bf16.mxu0 0
  %1361 = vmatpush2.bf16.msra.mxu0 %v1160
  %1362 = vmatprep.mubr.bf16.mxu0 %v216
  %1363 = vmatmul.mubr.bf16.gmra.mxu0 %v215
  %v1364 = vpop.f32.mrf.mxu0
  %v1365 = vadd.f32 %v1316, %v1364
  %v1366 = vpop.f32.mrf.mxu0
  %v1367 = vpop.f32.mrf.mxu0
  %v1368 = vadd.f32 %v1319, %v1367
  %v1369 = vpop.f32.mrf.mxu0
  %1370 = vmatprep.mubr.bf16.mxu0 %v223
  %1371 = vmatmul.mubr.bf16.gmra.mxu0 %v222
  %v1372 = vpop.f32.mrf.mxu0
  %v1373 = vadd.f32 %v1324, %v1372
  %v1374 = vpop.f32.mrf.mxu0
  %v1375 = vpop.f32.mrf.mxu0
  %v1376 = vadd.f32 %v1327, %v1375
  %v1377 = vpop.f32.mrf.mxu0
  %1378 = vdwg.mxu0
  %1379 = vmatprep.subr.bf16.mxu0 0
  %1380 = vmatpush1.bf16.msra.mxu0 %v1175
  %1381 = vmatprep.subr.bf16.mxu0 0
  %1382 = vmatpush1.bf16.msra.mxu0 %v1174
  %1383 = vmatprep.subr.bf16.mxu0 0
  %1384 = vmatpush1.bf16.msra.mxu0 %v1173
  %1385 = vmatprep.subr.bf16.mxu0 0
  %1386 = vmatpush1.bf16.msra.mxu0 %v1172
  %1387 = vmatprep.subr.bf16.mxu0 0
  %1388 = vmatpush1.bf16.msra.mxu0 %v1171
  %1389 = vmatprep.subr.bf16.mxu0 0
  %1390 = vmatpush1.bf16.msra.mxu0 %v1170
  %1391 = vmatprep.subr.bf16.mxu0 0
  %1392 = vmatpush1.bf16.msra.mxu0 %v1169
  %1393 = vmatprep.subr.bf16.mxu0 0
  %1394 = vmatpush1.bf16.msra.mxu0 %v1168
  %1395 = vmatprep.subr.bf16.mxu0 0
  %1396 = vmatpush2.bf16.msra.mxu0 0
  %1397 = vmatprep.subr.bf16.mxu0 0
  %1398 = vmatpush2.bf16.msra.mxu0 0
  %1399 = vmatprep.subr.bf16.mxu0 0
  %1400 = vmatpush2.bf16.msra.mxu0 0
  %1401 = vmatprep.subr.bf16.mxu0 0
  %1402 = vmatpush2.bf16.msra.mxu0 0
  %1403 = vmatprep.subr.bf16.mxu0 0
  %1404 = vmatpush2.bf16.msra.mxu0 0
  %1405 = vmatprep.subr.bf16.mxu0 0
  %1406 = vmatpush2.bf16.msra.mxu0 0
  %1407 = vmatprep.subr.bf16.mxu0 0
  %1408 = vmatpush2.bf16.msra.mxu0 0
  %1409 = vmatprep.subr.bf16.mxu0 0
  %1410 = vmatpush2.bf16.msra.mxu0 0
  %1411 = vmatprep.mubr.bf16.mxu0 0
  %1412 = vmatmul.mubr.bf16.gmra.mxu0 %v217
  %v1413 = vpop.f32.mrf.mxu0
  %v1414 = vadd.f32 %v1365, %v1413
  %v1415 = vpop.f32.mrf.mxu0
  %v1416 = vpop.f32.mrf.mxu0
  %v1417 = vadd.f32 %v1368, %v1416
  %v1418 = vpop.f32.mrf.mxu0
  %1419 = vmatprep.mubr.bf16.mxu0 0
  %1420 = vmatmul.mubr.bf16.gmra.mxu0 %v224
  %v1421 = vpop.f32.mrf.mxu0
  %v1422 = vadd.f32 %v1373, %v1421
  %v1423 = vpop.f32.mrf.mxu0
  %v1424 = vpop.f32.mrf.mxu0
  %v1425 = vadd.f32 %v1376, %v1424
  %v1426 = vpop.f32.mrf.mxu0
  %1427 = vdwg.mxu0
  %vm1428 = vcmp.ge.f32.partialorder %v1414, 0.0
  %vm1429 = vcmp.ge.f32.partialorder %v1417, 0.0
  %vm1430 = vcmp.ge.f32.partialorder %v1422, 0.0
  %vm1431 = vcmp.ge.f32.partialorder %v1425, 0.0
  %v1432 = vmul.f32 %v1414, 0.01
  %v1433 = vmul.f32 %v1417, 0.01
  %v1434 = vmul.f32 %v1422, 0.01
  %v1435 = vmul.f32 %v1425, 0.01
  %v1436 = vsel %vm1428, %v1414, %v1432
  %v1437 = vsel %vm1429, %v1417, %v1433
  %v1438 = vsel %vm1430, %v1422, %v1434
  %v1439 = vsel %vm1431, %v1425, %v1435
  %v1440 = vmax.f32 %v779, %v1436
  %v1441 = vmax.f32 %v780, %v1437
  %v1442 = vmax.f32 %v781, %v1438
  %v1443 = vmax.f32 %v782, %v1439
  %s1444 = scalar_lea.vmem %s2, 896
  %v1445 = vld [vmem:[%s1444] sm:$0xf]
  %v1446 = vld [vmem:[%s1444 + $0x4] sm:$0xf]
  %v1447 = vld [vmem:[%s1444 + $0x8] sm:$0xf]
  %v1448 = vld [vmem:[%s1444 + $0xc] sm:$0xf]
  %v1449 = vld [vmem:[%s1444 + $0x10] sm:$0xf]
  %v1450 = vld [vmem:[%s1444 + $0x14] sm:$0xf]
  %v1451 = vld [vmem:[%s1444 + $0x18] sm:$0xf]
  %v1452 = vld [vmem:[%s1444 + $0x1c] sm:$0xf]
  %v1453 = vld [vmem:[%s1444 + $0x20] sm:$0xf]
  %v1454 = vld [vmem:[%s1444 + $0x24] sm:$0xf]
  %v1455 = vld [vmem:[%s1444 + $0x28] sm:$0xf]
  %v1456 = vld [vmem:[%s1444 + $0x2c] sm:$0xf]
  %v1457 = vld [vmem:[%s1444 + $0x30] sm:$0xf]
  %v1458 = vld [vmem:[%s1444 + $0x34] sm:$0xf]
  %v1459 = vld [vmem:[%s1444 + $0x38] sm:$0xf]
  %v1460 = vld [vmem:[%s1444 + $0x3c] sm:$0xf]
  %v1461 = vld [vmem:[%s1444 + $0x40] sm:$0xf]
  %v1462 = vld [vmem:[%s1444 + $0x44] sm:$0xf]
  %v1463 = vld [vmem:[%s1444 + $0x48] sm:$0xf]
  %v1464 = vld [vmem:[%s1444 + $0x4c] sm:$0xf]
  %v1465 = vld [vmem:[%s1444 + $0x50] sm:$0xf]
  %v1466 = vld [vmem:[%s1444 + $0x54] sm:$0xf]
  %v1467 = vld [vmem:[%s1444 + $0x58] sm:$0xf]
  %v1468 = vld [vmem:[%s1444 + $0x5c] sm:$0xf]
  %v1469 = vld [vmem:[%s1444 + $0x60] sm:$0xf]
  %v1470 = vld [vmem:[%s1444 + $0x64] sm:$0xf]
  %v1471 = vld [vmem:[%s1444 + $0x68] sm:$0xf]
  %v1472 = vld [vmem:[%s1444 + $0x6c] sm:$0xf]
  %v1473 = vld [vmem:[%s1444 + $0x70] sm:$0xf]
  %v1474 = vld [vmem:[%s1444 + $0x74] sm:$0xf]
  %v1475 = vld [vmem:[%s1444 + $0x78] sm:$0xf]
  %v1476 = vld [vmem:[%s1444 + $0x7c] sm:$0xf]
  %v1477 = vld [vmem:[%s1444 + $0x80] sm:$0xf]
  %v1478 = vld [vmem:[%s1444 + $0x84] sm:$0xf]
  %v1479 = vld [vmem:[%s1444 + $0x88] sm:$0xf]
  %v1480 = vld [vmem:[%s1444 + $0x8c] sm:$0xf]
  %v1481 = vld [vmem:[%s1444 + $0x90] sm:$0xf]
  %v1482 = vld [vmem:[%s1444 + $0x94] sm:$0xf]
  %v1483 = vld [vmem:[%s1444 + $0x98] sm:$0xf]
  %v1484 = vld [vmem:[%s1444 + $0x9c] sm:$0xf]
  %v1485 = vld [vmem:[%s1444 + $0xa0] sm:$0xf]
  %v1486 = vld [vmem:[%s1444 + $0xa4] sm:$0xf]
  %v1487 = vld [vmem:[%s1444 + $0xa8] sm:$0xf]
  %v1488 = vld [vmem:[%s1444 + $0xac] sm:$0xf]
  %v1489 = vld [vmem:[%s1444 + $0xb0] sm:$0xf]
  %v1490 = vld [vmem:[%s1444 + $0xb4] sm:$0xf]
  %v1491 = vld [vmem:[%s1444 + $0xb8] sm:$0xf]
  %v1492 = vld [vmem:[%s1444 + $0xbc] sm:$0xf]
  %v1493 = vld [vmem:[%s1444 + $0xc0] sm:$0xf]
  %v1494 = vld [vmem:[%s1444 + $0xc4] sm:$0xf]
  %v1495 = vld [vmem:[%s1444 + $0xc8] sm:$0xf]
  %v1496 = vld [vmem:[%s1444 + $0xcc] sm:$0xf]
  %v1497 = vld [vmem:[%s1444 + $0xd0] sm:$0xf]
  %v1498 = vld [vmem:[%s1444 + $0xd4] sm:$0xf]
  %v1499 = vld [vmem:[%s1444 + $0xd8] sm:$0xf]
  %v1500 = vld [vmem:[%s1444 + $0xdc] sm:$0xf]
  %v1501 = vld [vmem:[%s1444 + $0xe0] sm:$0xf]
  %v1502 = vld [vmem:[%s1444 + $0xe4] sm:$0xf]
  %v1503 = vld [vmem:[%s1444 + $0xe8] sm:$0xf]
  %v1504 = vld [vmem:[%s1444 + $0xec] sm:$0xf]
  %v1505 = vld [vmem:[%s1444 + $0xf0] sm:$0xf]
  %v1506 = vld [vmem:[%s1444 + $0xf4] sm:$0xf]
  %v1507 = vld [vmem:[%s1444 + $0xf8] sm:$0xf]
  %v1508 = vld [vmem:[%s1444 + $0xfc] sm:$0xf]
  %v1509 = vld [vmem:[%s1444 + $0x100] sm:$0xf]
  %v1510 = vld [vmem:[%s1444 + $0x104] sm:$0xf]
  %v1511 = vld [vmem:[%s1444 + $0x108] sm:$0xf]
  %v1512 = vld [vmem:[%s1444 + $0x10c] sm:$0xf]
  %v1513 = vld [vmem:[%s1444 + $0x110] sm:$0xf]
  %v1514 = vld [vmem:[%s1444 + $0x114] sm:$0xf]
  %v1515 = vld [vmem:[%s1444 + $0x118] sm:$0xf]
  %v1516 = vld [vmem:[%s1444 + $0x11c] sm:$0xf]
  %v1517 = vld [vmem:[%s1444 + $0x120] sm:$0xf]
  %v1518 = vld [vmem:[%s1444 + $0x124] sm:$0xf]
  %v1519 = vld [vmem:[%s1444 + $0x128] sm:$0xf]
  %v1520 = vld [vmem:[%s1444 + $0x12c] sm:$0xf]
  %v1521 = vld [vmem:[%s1444 + $0x130] sm:$0xf]
  %v1522 = vld [vmem:[%s1444 + $0x134] sm:$0xf]
  %v1523 = vld [vmem:[%s1444 + $0x138] sm:$0xf]
  %v1524 = vld [vmem:[%s1444 + $0x13c] sm:$0xf]
  %v1525 = vld [vmem:[%s1444 + $0x140] sm:$0xf]
  %v1526 = vld [vmem:[%s1444 + $0x144] sm:$0xf]
  %v1527 = vld [vmem:[%s1444 + $0x148] sm:$0xf]
  %v1528 = vld [vmem:[%s1444 + $0x14c] sm:$0xf]
  %v1529 = vld [vmem:[%s1444 + $0x150] sm:$0xf]
  %v1530 = vld [vmem:[%s1444 + $0x154] sm:$0xf]
  %v1531 = vld [vmem:[%s1444 + $0x158] sm:$0xf]
  %v1532 = vld [vmem:[%s1444 + $0x15c] sm:$0xf]
  %v1533 = vld [vmem:[%s1444 + $0x160] sm:$0xf]
  %v1534 = vld [vmem:[%s1444 + $0x164] sm:$0xf]
  %v1535 = vld [vmem:[%s1444 + $0x168] sm:$0xf]
  %v1536 = vld [vmem:[%s1444 + $0x16c] sm:$0xf]
  %v1537 = vld [vmem:[%s1444 + $0x170] sm:$0xf]
  %v1538 = vld [vmem:[%s1444 + $0x174] sm:$0xf]
  %v1539 = vld [vmem:[%s1444 + $0x178] sm:$0xf]
  %v1540 = vld [vmem:[%s1444 + $0x17c] sm:$0xf]
  %v1541 = vld [vmem:[%s1444 + $0x180] sm:$0xf]
  %v1542 = vld [vmem:[%s1444 + $0x184] sm:$0xf]
  %v1543 = vld [vmem:[%s1444 + $0x188] sm:$0xf]
  %v1544 = vld [vmem:[%s1444 + $0x18c] sm:$0xf]
  %v1545 = vld [vmem:[%s1444 + $0x190] sm:$0xf]
  %v1546 = vld [vmem:[%s1444 + $0x194] sm:$0xf]
  %v1547 = vld [vmem:[%s1444 + $0x198] sm:$0xf]
  %v1548 = vld [vmem:[%s1444 + $0x19c] sm:$0xf]
  %v1549 = vld [vmem:[%s1444 + $0x1a0] sm:$0xf]
  %v1550 = vld [vmem:[%s1444 + $0x1a4] sm:$0xf]
  %v1551 = vld [vmem:[%s1444 + $0x1a8] sm:$0xf]
  %v1552 = vld [vmem:[%s1444 + $0x1ac] sm:$0xf]
  %v1553 = vld [vmem:[%s1444 + $0x1b0] sm:$0xf]
  %v1554 = vld [vmem:[%s1444 + $0x1b4] sm:$0xf]
  %v1555 = vld [vmem:[%s1444 + $0x1b8] sm:$0xf]
  %v1556 = vld [vmem:[%s1444 + $0x1bc] sm:$0xf]
  %v1669 = vunpack.c.l.b16 %v1445
  %v1670 = vunpack.c.l.b16 %v1446
  %v1671 = vunpack.c.l.b16 %v1447
  %v1672 = vunpack.c.l.b16 %v1448
  %v1673 = vunpack.c.l.b16 %v1449
  %v1674 = vunpack.c.l.b16 %v1450
  %v1675 = vunpack.c.l.b16 %v1451
  %v1676 = vunpack.c.l.b16 %v1452
  %v1677 = vunpack.c.l.b16 %v1453
  %v1678 = vunpack.c.l.b16 %v1454
  %v1679 = vunpack.c.l.b16 %v1455
  %v1680 = vunpack.c.l.b16 %v1456
  %v1681 = vunpack.c.l.b16 %v1457
  %v1682 = vunpack.c.l.b16 %v1458
  %v1683 = vunpack.c.l.b16 %v1459
  %v1684 = vunpack.c.l.b16 %v1460
  %v1685 = vunpack.c.l.b16 %v1461
  %v1686 = vunpack.c.l.b16 %v1462
  %v1687 = vunpack.c.l.b16 %v1463
  %v1688 = vunpack.c.l.b16 %v1464
  %v1689 = vunpack.c.l.b16 %v1465
  %v1690 = vunpack.c.l.b16 %v1466
  %v1691 = vunpack.c.l.b16 %v1467
  %v1692 = vunpack.c.l.b16 %v1468
  %v1693 = vunpack.c.l.b16 %v1469
  %v1694 = vunpack.c.l.b16 %v1470
  %v1695 = vunpack.c.l.b16 %v1471
  %v1696 = vunpack.c.l.b16 %v1472
  %v1697 = vunpack.c.l.b16 %v1473
  %v1698 = vunpack.c.l.b16 %v1474
  %v1699 = vunpack.c.l.b16 %v1475
  %v1700 = vunpack.c.l.b16 %v1476
  %v1701 = vunpack.c.l.b16 %v1477
  %v1702 = vunpack.c.l.b16 %v1478
  %v1703 = vunpack.c.l.b16 %v1479
  %v1704 = vunpack.c.l.b16 %v1480
  %v1705 = vunpack.c.l.b16 %v1481
  %v1706 = vunpack.c.l.b16 %v1482
  %v1707 = vunpack.c.l.b16 %v1483
  %v1708 = vunpack.c.l.b16 %v1484
  %v1709 = vunpack.c.l.b16 %v1485
  %v1710 = vunpack.c.l.b16 %v1486
  %v1711 = vunpack.c.l.b16 %v1487
  %v1712 = vunpack.c.l.b16 %v1488
  %v1713 = vunpack.c.l.b16 %v1489
  %v1714 = vunpack.c.l.b16 %v1490
  %v1715 = vunpack.c.l.b16 %v1491
  %v1716 = vunpack.c.l.b16 %v1492
  %v1717 = vunpack.c.l.b16 %v1493
  %v1718 = vunpack.c.l.b16 %v1494
  %v1719 = vunpack.c.l.b16 %v1495
  %v1720 = vunpack.c.l.b16 %v1496
  %v1721 = vunpack.c.l.b16 %v1497
  %v1722 = vunpack.c.l.b16 %v1498
  %v1723 = vunpack.c.l.b16 %v1499
  %v1724 = vunpack.c.l.b16 %v1500
  %v1725 = vunpack.c.l.b16 %v1501
  %v1726 = vunpack.c.l.b16 %v1502
  %v1727 = vunpack.c.l.b16 %v1503
  %v1728 = vunpack.c.l.b16 %v1504
  %v1729 = vunpack.c.l.b16 %v1505
  %v1730 = vunpack.c.l.b16 %v1506
  %v1731 = vunpack.c.l.b16 %v1507
  %v1732 = vunpack.c.l.b16 %v1508
  %v1733 = vunpack.c.l.b16 %v1509
  %v1734 = vunpack.c.l.b16 %v1510
  %v1735 = vunpack.c.l.b16 %v1511
  %v1736 = vunpack.c.l.b16 %v1512
  %v1737 = vunpack.c.l.b16 %v1513
  %v1738 = vunpack.c.l.b16 %v1514
  %v1739 = vunpack.c.l.b16 %v1515
  %v1740 = vunpack.c.l.b16 %v1516
  %v1741 = vunpack.c.l.b16 %v1517
  %v1742 = vunpack.c.l.b16 %v1518
  %v1743 = vunpack.c.l.b16 %v1519
  %v1744 = vunpack.c.l.b16 %v1520
  %v1745 = vunpack.c.l.b16 %v1521
  %v1746 = vunpack.c.l.b16 %v1522
  %v1747 = vunpack.c.l.b16 %v1523
  %v1748 = vunpack.c.l.b16 %v1524
  %v1749 = vunpack.c.l.b16 %v1525
  %v1750 = vunpack.c.l.b16 %v1526
  %v1751 = vunpack.c.l.b16 %v1527
  %v1752 = vunpack.c.l.b16 %v1528
  %v1753 = vunpack.c.l.b16 %v1529
  %v1754 = vunpack.c.l.b16 %v1530
  %v1755 = vunpack.c.l.b16 %v1531
  %v1756 = vunpack.c.l.b16 %v1532
  %v1757 = vunpack.c.l.b16 %v1533
  %v1758 = vunpack.c.l.b16 %v1534
  %v1759 = vunpack.c.l.b16 %v1535
  %v1760 = vunpack.c.l.b16 %v1536
  %v1761 = vunpack.c.l.b16 %v1537
  %v1762 = vunpack.c.l.b16 %v1538
  %v1763 = vunpack.c.l.b16 %v1539
  %v1764 = vunpack.c.l.b16 %v1540
  %v1765 = vunpack.c.l.b16 %v1541
  %v1766 = vunpack.c.l.b16 %v1542
  %v1767 = vunpack.c.l.b16 %v1543
  %v1768 = vunpack.c.l.b16 %v1544
  %v1769 = vunpack.c.l.b16 %v1545
  %v1770 = vunpack.c.l.b16 %v1546
  %v1771 = vunpack.c.l.b16 %v1547
  %v1772 = vunpack.c.l.b16 %v1548
  %v1773 = vunpack.c.l.b16 %v1549
  %v1774 = vunpack.c.l.b16 %v1550
  %v1775 = vunpack.c.l.b16 %v1551
  %v1776 = vunpack.c.l.b16 %v1552
  %v1777 = vunpack.c.l.b16 %v1553
  %v1778 = vunpack.c.l.b16 %v1554
  %v1779 = vunpack.c.l.b16 %v1555
  %v1780 = vunpack.c.l.b16 %v1556
  %v1781 = vpack.c.b16 %v1670, %v1669
  %v1782 = vpack.c.b16 %v1672, %v1671
  %v1783 = vpack.c.b16 %v1674, %v1673
  %v1784 = vpack.c.b16 %v1676, %v1675
  %v1785 = vpack.c.b16 %v1678, %v1677
  %v1786 = vpack.c.b16 %v1680, %v1679
  %v1787 = vpack.c.b16 %v1682, %v1681
  %v1788 = vpack.c.b16 %v1684, %v1683
  %v1789 = vpack.c.b16 %v1686, %v1685
  %v1790 = vpack.c.b16 %v1688, %v1687
  %v1791 = vpack.c.b16 %v1690, %v1689
  %v1792 = vpack.c.b16 %v1692, %v1691
  %v1793 = vpack.c.b16 %v1694, %v1693
  %v1794 = vpack.c.b16 %v1696, %v1695
  %v1795 = vpack.c.b16 %v1698, %v1697
  %v1796 = vpack.c.b16 %v1700, %v1699
  %v1797 = vpack.c.b16 %v1702, %v1701
  %v1798 = vpack.c.b16 %v1704, %v1703
  %v1799 = vpack.c.b16 %v1706, %v1705
  %v1800 = vpack.c.b16 %v1708, %v1707
  %v1801 = vpack.c.b16 %v1710, %v1709
  %v1802 = vpack.c.b16 %v1712, %v1711
  %v1803 = vpack.c.b16 %v1714, %v1713
  %v1804 = vpack.c.b16 %v1716, %v1715
  %v1805 = vpack.c.b16 %v1718, %v1717
  %v1806 = vpack.c.b16 %v1720, %v1719
  %v1807 = vpack.c.b16 %v1722, %v1721
  %v1808 = vpack.c.b16 %v1724, %v1723
  %v1809 = vpack.c.b16 %v1726, %v1725
  %v1810 = vpack.c.b16 %v1728, %v1727
  %v1811 = vpack.c.b16 %v1730, %v1729
  %v1812 = vpack.c.b16 %v1732, %v1731
  %v1813 = vpack.c.b16 %v1734, %v1733
  %v1814 = vpack.c.b16 %v1736, %v1735
  %v1815 = vpack.c.b16 %v1738, %v1737
  %v1816 = vpack.c.b16 %v1740, %v1739
  %v1817 = vpack.c.b16 %v1742, %v1741
  %v1818 = vpack.c.b16 %v1744, %v1743
  %v1819 = vpack.c.b16 %v1746, %v1745
  %v1820 = vpack.c.b16 %v1748, %v1747
  %v1821 = vpack.c.b16 %v1750, %v1749
  %v1822 = vpack.c.b16 %v1752, %v1751
  %v1823 = vpack.c.b16 %v1754, %v1753
  %v1824 = vpack.c.b16 %v1756, %v1755
  %v1825 = vpack.c.b16 %v1758, %v1757
  %v1826 = vpack.c.b16 %v1760, %v1759
  %v1827 = vpack.c.b16 %v1762, %v1761
  %v1828 = vpack.c.b16 %v1764, %v1763
  %v1829 = vpack.c.b16 %v1766, %v1765
  %v1830 = vpack.c.b16 %v1768, %v1767
  %v1831 = vpack.c.b16 %v1770, %v1769
  %v1832 = vpack.c.b16 %v1772, %v1771
  %v1833 = vpack.c.b16 %v1774, %v1773
  %v1834 = vpack.c.b16 %v1776, %v1775
  %v1835 = vpack.c.b16 %v1778, %v1777
  %v1836 = vpack.c.b16 %v1780, %v1779
  %1893 = vmatprep.subr.bf16.mxu0 0
  %1894 = vmatpush1.bf16.msra.mxu0 %v1788
  %1895 = vmatprep.subr.bf16.mxu0 0
  %1896 = vmatpush1.bf16.msra.mxu0 %v1787
  %1897 = vmatprep.subr.bf16.mxu0 0
  %1898 = vmatpush1.bf16.msra.mxu0 %v1786
  %1899 = vmatprep.subr.bf16.mxu0 0
  %1900 = vmatpush1.bf16.msra.mxu0 %v1785
  %1901 = vmatprep.subr.bf16.mxu0 0
  %1902 = vmatpush1.bf16.msra.mxu0 %v1784
  %1903 = vmatprep.subr.bf16.mxu0 0
  %1904 = vmatpush1.bf16.msra.mxu0 %v1783
  %1905 = vmatprep.subr.bf16.mxu0 0
  %1906 = vmatpush1.bf16.msra.mxu0 %v1782
  %1907 = vmatprep.subr.bf16.mxu0 0
  %1908 = vmatpush1.bf16.msra.mxu0 %v1781
  %1909 = vmatprep.subr.bf16.mxu0 0
  %1910 = vmatpush2.bf16.msra.mxu0 %v1796
  %1911 = vmatprep.subr.bf16.mxu0 0
  %1912 = vmatpush2.bf16.msra.mxu0 %v1795
  %1913 = vmatprep.subr.bf16.mxu0 0
  %1914 = vmatpush2.bf16.msra.mxu0 %v1794
  %1915 = vmatprep.subr.bf16.mxu0 0
  %1916 = vmatpush2.bf16.msra.mxu0 %v1793
  %1917 = vmatprep.subr.bf16.mxu0 0
  %1918 = vmatpush2.bf16.msra.mxu0 %v1792
  %1919 = vmatprep.subr.bf16.mxu0 0
  %1920 = vmatpush2.bf16.msra.mxu0 %v1791
  %1921 = vmatprep.subr.bf16.mxu0 0
  %1922 = vmatpush2.bf16.msra.mxu0 %v1790
  %1923 = vmatprep.subr.bf16.mxu0 0
  %1924 = vmatpush2.bf16.msra.mxu0 %v1789
  %1925 = vmatprep.mubr.bf16.mxu0 %v212
  %1926 = vmatmul.mubr.bf16.gmra.mxu0 %v211
  %v1927 = vpop.f32.mrf.mxu0
  %v1928 = vadd.f32 %v150, %v1927
  %v1929 = vpop.f32.mrf.mxu0
  %v1930 = vpop.f32.mrf.mxu0
  %v1931 = vadd.f32 %v155, %v1930
  %v1932 = vpop.f32.mrf.mxu0
  %1933 = vmatprep.mubr.bf16.mxu0 %v219
  %1934 = vmatmul.mubr.bf16.gmra.mxu0 %v218
  %v1935 = vpop.f32.mrf.mxu0
  %v1936 = vadd.f32 %v160, %v1935
  %v1937 = vpop.f32.mrf.mxu0
  %v1938 = vpop.f32.mrf.mxu0
  %v1939 = vadd.f32 %v165, %v1938
  %v1940 = vpop.f32.mrf.mxu0
  %1941 = vdwg.mxu0
  %1942 = vmatprep.subr.bf16.mxu0 0
  %1943 = vmatpush1.bf16.msra.mxu0 %v1804
  %1944 = vmatprep.subr.bf16.mxu0 0
  %1945 = vmatpush1.bf16.msra.mxu0 %v1803
  %1946 = vmatprep.subr.bf16.mxu0 0
  %1947 = vmatpush1.bf16.msra.mxu0 %v1802
  %1948 = vmatprep.subr.bf16.mxu0 0
  %1949 = vmatpush1.bf16.msra.mxu0 %v1801
  %1950 = vmatprep.subr.bf16.mxu0 0
  %1951 = vmatpush1.bf16.msra.mxu0 %v1800
  %1952 = vmatprep.subr.bf16.mxu0 0
  %1953 = vmatpush1.bf16.msra.mxu0 %v1799
  %1954 = vmatprep.subr.bf16.mxu0 0
  %1955 = vmatpush1.bf16.msra.mxu0 %v1798
  %1956 = vmatprep.subr.bf16.mxu0 0
  %1957 = vmatpush1.bf16.msra.mxu0 %v1797
  %1958 = vmatprep.subr.bf16.mxu0 0
  %1959 = vmatpush2.bf16.msra.mxu0 %v1812
  %1960 = vmatprep.subr.bf16.mxu0 0
  %1961 = vmatpush2.bf16.msra.mxu0 %v1811
  %1962 = vmatprep.subr.bf16.mxu0 0
  %1963 = vmatpush2.bf16.msra.mxu0 %v1810
  %1964 = vmatprep.subr.bf16.mxu0 0
  %1965 = vmatpush2.bf16.msra.mxu0 %v1809
  %1966 = vmatprep.subr.bf16.mxu0 0
  %1967 = vmatpush2.bf16.msra.mxu0 %v1808
  %1968 = vmatprep.subr.bf16.mxu0 0
  %1969 = vmatpush2.bf16.msra.mxu0 %v1807
  %1970 = vmatprep.subr.bf16.mxu0 0
  %1971 = vmatpush2.bf16.msra.mxu0 %v1806
  %1972 = vmatprep.subr.bf16.mxu0 0
  %1973 = vmatpush2.bf16.msra.mxu0 %v1805
  %1974 = vmatprep.mubr.bf16.mxu0 %v214
  %1975 = vmatmul.mubr.bf16.gmra.mxu0 %v213
  %v1976 = vpop.f32.mrf.mxu0
  %v1977 = vadd.f32 %v1928, %v1976
  %v1978 = vpop.f32.mrf.mxu0
  %v1979 = vpop.f32.mrf.mxu0
  %v1980 = vadd.f32 %v1931, %v1979
  %v1981 = vpop.f32.mrf.mxu0
  %1982 = vmatprep.mubr.bf16.mxu0 %v221
  %1983 = vmatmul.mubr.bf16.gmra.mxu0 %v220
  %v1984 = vpop.f32.mrf.mxu0
  %v1985 = vadd.f32 %v1936, %v1984
  %v1986 = vpop.f32.mrf.mxu0
  %v1987 = vpop.f32.mrf.mxu0
  %v1988 = vadd.f32 %v1939, %v1987
  %v1989 = vpop.f32.mrf.mxu0
  %1990 = vdwg.mxu0
  %1991 = vmatprep.subr.bf16.mxu0 0
  %1992 = vmatpush1.bf16.msra.mxu0 %v1820
  %1993 = vmatprep.subr.bf16.mxu0 0
  %1994 = vmatpush1.bf16.msra.mxu0 %v1819
  %1995 = vmatprep.subr.bf16.mxu0 0
  %1996 = vmatpush1.bf16.msra.mxu0 %v1818
  %1997 = vmatprep.subr.bf16.mxu0 0
  %1998 = vmatpush1.bf16.msra.mxu0 %v1817
  %1999 = vmatprep.subr.bf16.mxu0 0
  %2000 = vmatpush1.bf16.msra.mxu0 %v1816
  %2001 = vmatprep.subr.bf16.mxu0 0
  %2002 = vmatpush1.bf16.msra.mxu0 %v1815
  %2003 = vmatprep.subr.bf16.mxu0 0
  %2004 = vmatpush1.bf16.msra.mxu0 %v1814
  %2005 = vmatprep.subr.bf16.mxu0 0
  %2006 = vmatpush1.bf16.msra.mxu0 %v1813
  %2007 = vmatprep.subr.bf16.mxu0 0
  %2008 = vmatpush2.bf16.msra.mxu0 %v1828
  %2009 = vmatprep.subr.bf16.mxu0 0
  %2010 = vmatpush2.bf16.msra.mxu0 %v1827
  %2011 = vmatprep.subr.bf16.mxu0 0
  %2012 = vmatpush2.bf16.msra.mxu0 %v1826
  %2013 = vmatprep.subr.bf16.mxu0 0
  %2014 = vmatpush2.bf16.msra.mxu0 %v1825
  %2015 = vmatprep.subr.bf16.mxu0 0
  %2016 = vmatpush2.bf16.msra.mxu0 %v1824
  %2017 = vmatprep.subr.bf16.mxu0 0
  %2018 = vmatpush2.bf16.msra.mxu0 %v1823
  %2019 = vmatprep.subr.bf16.mxu0 0
  %2020 = vmatpush2.bf16.msra.mxu0 %v1822
  %2021 = vmatprep.subr.bf16.mxu0 0
  %2022 = vmatpush2.bf16.msra.mxu0 %v1821
  %2023 = vmatprep.mubr.bf16.mxu0 %v216
  %2024 = vmatmul.mubr.bf16.gmra.mxu0 %v215
  %v2025 = vpop.f32.mrf.mxu0
  %v2026 = vadd.f32 %v1977, %v2025
  %v2027 = vpop.f32.mrf.mxu0
  %v2028 = vpop.f32.mrf.mxu0
  %v2029 = vadd.f32 %v1980, %v2028
  %v2030 = vpop.f32.mrf.mxu0
  %2031 = vmatprep.mubr.bf16.mxu0 %v223
  %2032 = vmatmul.mubr.bf16.gmra.mxu0 %v222
  %v2033 = vpop.f32.mrf.mxu0
  %v2034 = vadd.f32 %v1985, %v2033
  %v2035 = vpop.f32.mrf.mxu0
  %v2036 = vpop.f32.mrf.mxu0
  %v2037 = vadd.f32 %v1988, %v2036
  %v2038 = vpop.f32.mrf.mxu0
  %2039 = vdwg.mxu0
  %2040 = vmatprep.subr.bf16.mxu0 0
  %2041 = vmatpush1.bf16.msra.mxu0 %v1836
  %2042 = vmatprep.subr.bf16.mxu0 0
  %2043 = vmatpush1.bf16.msra.mxu0 %v1835
  %2044 = vmatprep.subr.bf16.mxu0 0
  %2045 = vmatpush1.bf16.msra.mxu0 %v1834
  %2046 = vmatprep.subr.bf16.mxu0 0
  %2047 = vmatpush1.bf16.msra.mxu0 %v1833
  %2048 = vmatprep.subr.bf16.mxu0 0
  %2049 = vmatpush1.bf16.msra.mxu0 %v1832
  %2050 = vmatprep.subr.bf16.mxu0 0
  %2051 = vmatpush1.bf16.msra.mxu0 %v1831
  %2052 = vmatprep.subr.bf16.mxu0 0
  %2053 = vmatpush1.bf16.msra.mxu0 %v1830
  %2054 = vmatprep.subr.bf16.mxu0 0
  %2055 = vmatpush1.bf16.msra.mxu0 %v1829
  %2056 = vmatprep.subr.bf16.mxu0 0
  %2057 = vmatpush2.bf16.msra.mxu0 0
  %2058 = vmatprep.subr.bf16.mxu0 0
  %2059 = vmatpush2.bf16.msra.mxu0 0
  %2060 = vmatprep.subr.bf16.mxu0 0
  %2061 = vmatpush2.bf16.msra.mxu0 0
  %2062 = vmatprep.subr.bf16.mxu0 0
  %2063 = vmatpush2.bf16.msra.mxu0 0
  %2064 = vmatprep.subr.bf16.mxu0 0
  %2065 = vmatpush2.bf16.msra.mxu0 0
  %2066 = vmatprep.subr.bf16.mxu0 0
  %2067 = vmatpush2.bf16.msra.mxu0 0
  %2068 = vmatprep.subr.bf16.mxu0 0
  %2069 = vmatpush2.bf16.msra.mxu0 0
  %2070 = vmatprep.subr.bf16.mxu0 0
  %2071 = vmatpush2.bf16.msra.mxu0 0
  %2072 = vmatprep.mubr.bf16.mxu0 0
  %2073 = vmatmul.mubr.bf16.gmra.mxu0 %v217
  %v2074 = vpop.f32.mrf.mxu0
  %v2075 = vadd.f32 %v2026, %v2074
  %v2076 = vpop.f32.mrf.mxu0
  %v2077 = vpop.f32.mrf.mxu0
  %v2078 = vadd.f32 %v2029, %v2077
  %v2079 = vpop.f32.mrf.mxu0
  %2080 = vmatprep.mubr.bf16.mxu0 0
  %2081 = vmatmul.mubr.bf16.gmra.mxu0 %v224
  %v2082 = vpop.f32.mrf.mxu0
  %v2083 = vadd.f32 %v2034, %v2082
  %v2084 = vpop.f32.mrf.mxu0
  %v2085 = vpop.f32.mrf.mxu0
  %v2086 = vadd.f32 %v2037, %v2085
  %v2087 = vpop.f32.mrf.mxu0
  %2088 = vdwg.mxu0
  %vm2089 = vcmp.ge.f32.partialorder %v2075, 0.0
  %vm2090 = vcmp.ge.f32.partialorder %v2078, 0.0
  %vm2091 = vcmp.ge.f32.partialorder %v2083, 0.0
  %vm2092 = vcmp.ge.f32.partialorder %v2086, 0.0
  %v2093 = vmul.f32 %v2075, 0.01
  %v2094 = vmul.f32 %v2078, 0.01
  %v2095 = vmul.f32 %v2083, 0.01
  %v2096 = vmul.f32 %v2086, 0.01
  %v2097 = vsel %vm2089, %v2075, %v2093
  %v2098 = vsel %vm2090, %v2078, %v2094
  %v2099 = vsel %vm2091, %v2083, %v2095
  %v2100 = vsel %vm2092, %v2086, %v2096
  %v2101 = vmax.f32 %v1440, %v2097
  %v2102 = vmax.f32 %v1441, %v2098
  %v2103 = vmax.f32 %v1442, %v2099
  %v2104 = vmax.f32 %v1443, %v2100
  %s2105 = scalar_lea.vmem %s2, 1344
  %v2106 = vld [vmem:[%s2105] sm:$0xf]
  %v2107 = vld [vmem:[%s2105 + $0x4] sm:$0xf]
  %v2108 = vld [vmem:[%s2105 + $0x8] sm:$0xf]
  %v2109 = vld [vmem:[%s2105 + $0xc] sm:$0xf]
  %v2110 = vld [vmem:[%s2105 + $0x10] sm:$0xf]
  %v2111 = vld [vmem:[%s2105 + $0x14] sm:$0xf]
  %v2112 = vld [vmem:[%s2105 + $0x18] sm:$0xf]
  %v2113 = vld [vmem:[%s2105 + $0x1c] sm:$0xf]
  %v2114 = vld [vmem:[%s2105 + $0x20] sm:$0xf]
  %v2115 = vld [vmem:[%s2105 + $0x24] sm:$0xf]
  %v2116 = vld [vmem:[%s2105 + $0x28] sm:$0xf]
  %v2117 = vld [vmem:[%s2105 + $0x2c] sm:$0xf]
  %v2118 = vld [vmem:[%s2105 + $0x30] sm:$0xf]
  %v2119 = vld [vmem:[%s2105 + $0x34] sm:$0xf]
  %v2120 = vld [vmem:[%s2105 + $0x38] sm:$0xf]
  %v2121 = vld [vmem:[%s2105 + $0x3c] sm:$0xf]
  %v2122 = vld [vmem:[%s2105 + $0x40] sm:$0xf]
  %v2123 = vld [vmem:[%s2105 + $0x44] sm:$0xf]
  %v2124 = vld [vmem:[%s2105 + $0x48] sm:$0xf]
  %v2125 = vld [vmem:[%s2105 + $0x4c] sm:$0xf]
  %v2126 = vld [vmem:[%s2105 + $0x50] sm:$0xf]
  %v2127 = vld [vmem:[%s2105 + $0x54] sm:$0xf]
  %v2128 = vld [vmem:[%s2105 + $0x58] sm:$0xf]
  %v2129 = vld [vmem:[%s2105 + $0x5c] sm:$0xf]
  %v2130 = vld [vmem:[%s2105 + $0x60] sm:$0xf]
  %v2131 = vld [vmem:[%s2105 + $0x64] sm:$0xf]
  %v2132 = vld [vmem:[%s2105 + $0x68] sm:$0xf]
  %v2133 = vld [vmem:[%s2105 + $0x6c] sm:$0xf]
  %v2134 = vld [vmem:[%s2105 + $0x70] sm:$0xf]
  %v2135 = vld [vmem:[%s2105 + $0x74] sm:$0xf]
  %v2136 = vld [vmem:[%s2105 + $0x78] sm:$0xf]
  %v2137 = vld [vmem:[%s2105 + $0x7c] sm:$0xf]
  %v2138 = vld [vmem:[%s2105 + $0x80] sm:$0xf]
  %v2139 = vld [vmem:[%s2105 + $0x84] sm:$0xf]
  %v2140 = vld [vmem:[%s2105 + $0x88] sm:$0xf]
  %v2141 = vld [vmem:[%s2105 + $0x8c] sm:$0xf]
  %v2142 = vld [vmem:[%s2105 + $0x90] sm:$0xf]
  %v2143 = vld [vmem:[%s2105 + $0x94] sm:$0xf]
  %v2144 = vld [vmem:[%s2105 + $0x98] sm:$0xf]
  %v2145 = vld [vmem:[%s2105 + $0x9c] sm:$0xf]
  %v2146 = vld [vmem:[%s2105 + $0xa0] sm:$0xf]
  %v2147 = vld [vmem:[%s2105 + $0xa4] sm:$0xf]
  %v2148 = vld [vmem:[%s2105 + $0xa8] sm:$0xf]
  %v2149 = vld [vmem:[%s2105 + $0xac] sm:$0xf]
  %v2150 = vld [vmem:[%s2105 + $0xb0] sm:$0xf]
  %v2151 = vld [vmem:[%s2105 + $0xb4] sm:$0xf]
  %v2152 = vld [vmem:[%s2105 + $0xb8] sm:$0xf]
  %v2153 = vld [vmem:[%s2105 + $0xbc] sm:$0xf]
  %v2154 = vld [vmem:[%s2105 + $0xc0] sm:$0xf]
  %v2155 = vld [vmem:[%s2105 + $0xc4] sm:$0xf]
  %v2156 = vld [vmem:[%s2105 + $0xc8] sm:$0xf]
  %v2157 = vld [vmem:[%s2105 + $0xcc] sm:$0xf]
  %v2158 = vld [vmem:[%s2105 + $0xd0] sm:$0xf]
  %v2159 = vld [vmem:[%s2105 + $0xd4] sm:$0xf]
  %v2160 = vld [vmem:[%s2105 + $0xd8] sm:$0xf]
  %v2161 = vld [vmem:[%s2105 + $0xdc] sm:$0xf]
  %v2162 = vld [vmem:[%s2105 + $0xe0] sm:$0xf]
  %v2163 = vld [vmem:[%s2105 + $0xe4] sm:$0xf]
  %v2164 = vld [vmem:[%s2105 + $0xe8] sm:$0xf]
  %v2165 = vld [vmem:[%s2105 + $0xec] sm:$0xf]
  %v2166 = vld [vmem:[%s2105 + $0xf0] sm:$0xf]
  %v2167 = vld [vmem:[%s2105 + $0xf4] sm:$0xf]
  %v2168 = vld [vmem:[%s2105 + $0xf8] sm:$0xf]
  %v2169 = vld [vmem:[%s2105 + $0xfc] sm:$0xf]
  %v2170 = vld [vmem:[%s2105 + $0x100] sm:$0xf]
  %v2171 = vld [vmem:[%s2105 + $0x104] sm:$0xf]
  %v2172 = vld [vmem:[%s2105 + $0x108] sm:$0xf]
  %v2173 = vld [vmem:[%s2105 + $0x10c] sm:$0xf]
  %v2174 = vld [vmem:[%s2105 + $0x110] sm:$0xf]
  %v2175 = vld [vmem:[%s2105 + $0x114] sm:$0xf]
  %v2176 = vld [vmem:[%s2105 + $0x118] sm:$0xf]
  %v2177 = vld [vmem:[%s2105 + $0x11c] sm:$0xf]
  %v2178 = vld [vmem:[%s2105 + $0x120] sm:$0xf]
  %v2179 = vld [vmem:[%s2105 + $0x124] sm:$0xf]
  %v2180 = vld [vmem:[%s2105 + $0x128] sm:$0xf]
  %v2181 = vld [vmem:[%s2105 + $0x12c] sm:$0xf]
  %v2182 = vld [vmem:[%s2105 + $0x130] sm:$0xf]
  %v2183 = vld [vmem:[%s2105 + $0x134] sm:$0xf]
  %v2184 = vld [vmem:[%s2105 + $0x138] sm:$0xf]
  %v2185 = vld [vmem:[%s2105 + $0x13c] sm:$0xf]
  %v2186 = vld [vmem:[%s2105 + $0x140] sm:$0xf]
  %v2187 = vld [vmem:[%s2105 + $0x144] sm:$0xf]
  %v2188 = vld [vmem:[%s2105 + $0x148] sm:$0xf]
  %v2189 = vld [vmem:[%s2105 + $0x14c] sm:$0xf]
  %v2190 = vld [vmem:[%s2105 + $0x150] sm:$0xf]
  %v2191 = vld [vmem:[%s2105 + $0x154] sm:$0xf]
  %v2192 = vld [vmem:[%s2105 + $0x158] sm:$0xf]
  %v2193 = vld [vmem:[%s2105 + $0x15c] sm:$0xf]
  %v2194 = vld [vmem:[%s2105 + $0x160] sm:$0xf]
  %v2195 = vld [vmem:[%s2105 + $0x164] sm:$0xf]
  %v2196 = vld [vmem:[%s2105 + $0x168] sm:$0xf]
  %v2197 = vld [vmem:[%s2105 + $0x16c] sm:$0xf]
  %v2198 = vld [vmem:[%s2105 + $0x170] sm:$0xf]
  %v2199 = vld [vmem:[%s2105 + $0x174] sm:$0xf]
  %v2200 = vld [vmem:[%s2105 + $0x178] sm:$0xf]
  %v2201 = vld [vmem:[%s2105 + $0x17c] sm:$0xf]
  %v2202 = vld [vmem:[%s2105 + $0x180] sm:$0xf]
  %v2203 = vld [vmem:[%s2105 + $0x184] sm:$0xf]
  %v2204 = vld [vmem:[%s2105 + $0x188] sm:$0xf]
  %v2205 = vld [vmem:[%s2105 + $0x18c] sm:$0xf]
  %v2206 = vld [vmem:[%s2105 + $0x190] sm:$0xf]
  %v2207 = vld [vmem:[%s2105 + $0x194] sm:$0xf]
  %v2208 = vld [vmem:[%s2105 + $0x198] sm:$0xf]
  %v2209 = vld [vmem:[%s2105 + $0x19c] sm:$0xf]
  %v2210 = vld [vmem:[%s2105 + $0x1a0] sm:$0xf]
  %v2211 = vld [vmem:[%s2105 + $0x1a4] sm:$0xf]
  %v2212 = vld [vmem:[%s2105 + $0x1a8] sm:$0xf]
  %v2213 = vld [vmem:[%s2105 + $0x1ac] sm:$0xf]
  %v2214 = vld [vmem:[%s2105 + $0x1b0] sm:$0xf]
  %v2215 = vld [vmem:[%s2105 + $0x1b4] sm:$0xf]
  %v2216 = vld [vmem:[%s2105 + $0x1b8] sm:$0xf]
  %v2217 = vld [vmem:[%s2105 + $0x1bc] sm:$0xf]
  %v2330 = vunpack.c.l.b16 %v2106
  %v2331 = vunpack.c.l.b16 %v2107
  %v2332 = vunpack.c.l.b16 %v2108
  %v2333 = vunpack.c.l.b16 %v2109
  %v2334 = vunpack.c.l.b16 %v2110
  %v2335 = vunpack.c.l.b16 %v2111
  %v2336 = vunpack.c.l.b16 %v2112
  %v2337 = vunpack.c.l.b16 %v2113
  %v2338 = vunpack.c.l.b16 %v2114
  %v2339 = vunpack.c.l.b16 %v2115
  %v2340 = vunpack.c.l.b16 %v2116
  %v2341 = vunpack.c.l.b16 %v2117
  %v2342 = vunpack.c.l.b16 %v2118
  %v2343 = vunpack.c.l.b16 %v2119
  %v2344 = vunpack.c.l.b16 %v2120
  %v2345 = vunpack.c.l.b16 %v2121
  %v2346 = vunpack.c.l.b16 %v2122
  %v2347 = vunpack.c.l.b16 %v2123
  %v2348 = vunpack.c.l.b16 %v2124
  %v2349 = vunpack.c.l.b16 %v2125
  %v2350 = vunpack.c.l.b16 %v2126
  %v2351 = vunpack.c.l.b16 %v2127
  %v2352 = vunpack.c.l.b16 %v2128
  %v2353 = vunpack.c.l.b16 %v2129
  %v2354 = vunpack.c.l.b16 %v2130
  %v2355 = vunpack.c.l.b16 %v2131
  %v2356 = vunpack.c.l.b16 %v2132
  %v2357 = vunpack.c.l.b16 %v2133
  %v2358 = vunpack.c.l.b16 %v2134
  %v2359 = vunpack.c.l.b16 %v2135
  %v2360 = vunpack.c.l.b16 %v2136
  %v2361 = vunpack.c.l.b16 %v2137
  %v2362 = vunpack.c.l.b16 %v2138
  %v2363 = vunpack.c.l.b16 %v2139
  %v2364 = vunpack.c.l.b16 %v2140
  %v2365 = vunpack.c.l.b16 %v2141
  %v2366 = vunpack.c.l.b16 %v2142
  %v2367 = vunpack.c.l.b16 %v2143
  %v2368 = vunpack.c.l.b16 %v2144
  %v2369 = vunpack.c.l.b16 %v2145
  %v2370 = vunpack.c.l.b16 %v2146
  %v2371 = vunpack.c.l.b16 %v2147
  %v2372 = vunpack.c.l.b16 %v2148
  %v2373 = vunpack.c.l.b16 %v2149
  %v2374 = vunpack.c.l.b16 %v2150
  %v2375 = vunpack.c.l.b16 %v2151
  %v2376 = vunpack.c.l.b16 %v2152
  %v2377 = vunpack.c.l.b16 %v2153
  %v2378 = vunpack.c.l.b16 %v2154
  %v2379 = vunpack.c.l.b16 %v2155
  %v2380 = vunpack.c.l.b16 %v2156
  %v2381 = vunpack.c.l.b16 %v2157
  %v2382 = vunpack.c.l.b16 %v2158
  %v2383 = vunpack.c.l.b16 %v2159
  %v2384 = vunpack.c.l.b16 %v2160
  %v2385 = vunpack.c.l.b16 %v2161
  %v2386 = vunpack.c.l.b16 %v2162
  %v2387 = vunpack.c.l.b16 %v2163
  %v2388 = vunpack.c.l.b16 %v2164
  %v2389 = vunpack.c.l.b16 %v2165
  %v2390 = vunpack.c.l.b16 %v2166
  %v2391 = vunpack.c.l.b16 %v2167
  %v2392 = vunpack.c.l.b16 %v2168
  %v2393 = vunpack.c.l.b16 %v2169
  %v2394 = vunpack.c.l.b16 %v2170
  %v2395 = vunpack.c.l.b16 %v2171
  %v2396 = vunpack.c.l.b16 %v2172
  %v2397 = vunpack.c.l.b16 %v2173
  %v2398 = vunpack.c.l.b16 %v2174
  %v2399 = vunpack.c.l.b16 %v2175
  %v2400 = vunpack.c.l.b16 %v2176
  %v2401 = vunpack.c.l.b16 %v2177
  %v2402 = vunpack.c.l.b16 %v2178
  %v2403 = vunpack.c.l.b16 %v2179
  %v2404 = vunpack.c.l.b16 %v2180
  %v2405 = vunpack.c.l.b16 %v2181
  %v2406 = vunpack.c.l.b16 %v2182
  %v2407 = vunpack.c.l.b16 %v2183
  %v2408 = vunpack.c.l.b16 %v2184
  %v2409 = vunpack.c.l.b16 %v2185
  %v2410 = vunpack.c.l.b16 %v2186
  %v2411 = vunpack.c.l.b16 %v2187
  %v2412 = vunpack.c.l.b16 %v2188
  %v2413 = vunpack.c.l.b16 %v2189
  %v2414 = vunpack.c.l.b16 %v2190
  %v2415 = vunpack.c.l.b16 %v2191
  %v2416 = vunpack.c.l.b16 %v2192
  %v2417 = vunpack.c.l.b16 %v2193
  %v2418 = vunpack.c.l.b16 %v2194
  %v2419 = vunpack.c.l.b16 %v2195
  %v2420 = vunpack.c.l.b16 %v2196
  %v2421 = vunpack.c.l.b16 %v2197
  %v2422 = vunpack.c.l.b16 %v2198
  %v2423 = vunpack.c.l.b16 %v2199
  %v2424 = vunpack.c.l.b16 %v2200
  %v2425 = vunpack.c.l.b16 %v2201
  %v2426 = vunpack.c.l.b16 %v2202
  %v2427 = vunpack.c.l.b16 %v2203
  %v2428 = vunpack.c.l.b16 %v2204
  %v2429 = vunpack.c.l.b16 %v2205
  %v2430 = vunpack.c.l.b16 %v2206
  %v2431 = vunpack.c.l.b16 %v2207
  %v2432 = vunpack.c.l.b16 %v2208
  %v2433 = vunpack.c.l.b16 %v2209
  %v2434 = vunpack.c.l.b16 %v2210
  %v2435 = vunpack.c.l.b16 %v2211
  %v2436 = vunpack.c.l.b16 %v2212
  %v2437 = vunpack.c.l.b16 %v2213
  %v2438 = vunpack.c.l.b16 %v2214
  %v2439 = vunpack.c.l.b16 %v2215
  %v2440 = vunpack.c.l.b16 %v2216
  %v2441 = vunpack.c.l.b16 %v2217
  %v2442 = vpack.c.b16 %v2331, %v2330
  %v2443 = vpack.c.b16 %v2333, %v2332
  %v2444 = vpack.c.b16 %v2335, %v2334
  %v2445 = vpack.c.b16 %v2337, %v2336
  %v2446 = vpack.c.b16 %v2339, %v2338
  %v2447 = vpack.c.b16 %v2341, %v2340
  %v2448 = vpack.c.b16 %v2343, %v2342
  %v2449 = vpack.c.b16 %v2345, %v2344
  %v2450 = vpack.c.b16 %v2347, %v2346
  %v2451 = vpack.c.b16 %v2349, %v2348
  %v2452 = vpack.c.b16 %v2351, %v2350
  %v2453 = vpack.c.b16 %v2353, %v2352
  %v2454 = vpack.c.b16 %v2355, %v2354
  %v2455 = vpack.c.b16 %v2357, %v2356
  %v2456 = vpack.c.b16 %v2359, %v2358
  %v2457 = vpack.c.b16 %v2361, %v2360
  %v2458 = vpack.c.b16 %v2363, %v2362
  %v2459 = vpack.c.b16 %v2365, %v2364
  %v2460 = vpack.c.b16 %v2367, %v2366
  %v2461 = vpack.c.b16 %v2369, %v2368
  %v2462 = vpack.c.b16 %v2371, %v2370
  %v2463 = vpack.c.b16 %v2373, %v2372
  %v2464 = vpack.c.b16 %v2375, %v2374
  %v2465 = vpack.c.b16 %v2377, %v2376
  %v2466 = vpack.c.b16 %v2379, %v2378
  %v2467 = vpack.c.b16 %v2381, %v2380
  %v2468 = vpack.c.b16 %v2383, %v2382
  %v2469 = vpack.c.b16 %v2385, %v2384
  %v2470 = vpack.c.b16 %v2387, %v2386
  %v2471 = vpack.c.b16 %v2389, %v2388
  %v2472 = vpack.c.b16 %v2391, %v2390
  %v2473 = vpack.c.b16 %v2393, %v2392
  %v2474 = vpack.c.b16 %v2395, %v2394
  %v2475 = vpack.c.b16 %v2397, %v2396
  %v2476 = vpack.c.b16 %v2399, %v2398
  %v2477 = vpack.c.b16 %v2401, %v2400
  %v2478 = vpack.c.b16 %v2403, %v2402
  %v2479 = vpack.c.b16 %v2405, %v2404
  %v2480 = vpack.c.b16 %v2407, %v2406
  %v2481 = vpack.c.b16 %v2409, %v2408
  %v2482 = vpack.c.b16 %v2411, %v2410
  %v2483 = vpack.c.b16 %v2413, %v2412
  %v2484 = vpack.c.b16 %v2415, %v2414
  %v2485 = vpack.c.b16 %v2417, %v2416
  %v2486 = vpack.c.b16 %v2419, %v2418
  %v2487 = vpack.c.b16 %v2421, %v2420
  %v2488 = vpack.c.b16 %v2423, %v2422
  %v2489 = vpack.c.b16 %v2425, %v2424
  %v2490 = vpack.c.b16 %v2427, %v2426
  %v2491 = vpack.c.b16 %v2429, %v2428
  %v2492 = vpack.c.b16 %v2431, %v2430
  %v2493 = vpack.c.b16 %v2433, %v2432
  %v2494 = vpack.c.b16 %v2435, %v2434
  %v2495 = vpack.c.b16 %v2437, %v2436
  %v2496 = vpack.c.b16 %v2439, %v2438
  %v2497 = vpack.c.b16 %v2441, %v2440
  %2554 = vmatprep.subr.bf16.mxu0 0
  %2555 = vmatpush1.bf16.msra.mxu0 %v2449
  %2556 = vmatprep.subr.bf16.mxu0 0
  %2557 = vmatpush1.bf16.msra.mxu0 %v2448
  %2558 = vmatprep.subr.bf16.mxu0 0
  %2559 = vmatpush1.bf16.msra.mxu0 %v2447
  %2560 = vmatprep.subr.bf16.mxu0 0
  %2561 = vmatpush1.bf16.msra.mxu0 %v2446
  %2562 = vmatprep.subr.bf16.mxu0 0
  %2563 = vmatpush1.bf16.msra.mxu0 %v2445
  %2564 = vmatprep.subr.bf16.mxu0 0
  %2565 = vmatpush1.bf16.msra.mxu0 %v2444
  %2566 = vmatprep.subr.bf16.mxu0 0
  %2567 = vmatpush1.bf16.msra.mxu0 %v2443
  %2568 = vmatprep.subr.bf16.mxu0 0
  %2569 = vmatpush1.bf16.msra.mxu0 %v2442
  %2570 = vmatprep.subr.bf16.mxu0 0
  %2571 = vmatpush2.bf16.msra.mxu0 %v2457
  %2572 = vmatprep.subr.bf16.mxu0 0
  %2573 = vmatpush2.bf16.msra.mxu0 %v2456
  %2574 = vmatprep.subr.bf16.mxu0 0
  %2575 = vmatpush2.bf16.msra.mxu0 %v2455
  %2576 = vmatprep.subr.bf16.mxu0 0
  %2577 = vmatpush2.bf16.msra.mxu0 %v2454
  %2578 = vmatprep.subr.bf16.mxu0 0
  %2579 = vmatpush2.bf16.msra.mxu0 %v2453
  %2580 = vmatprep.subr.bf16.mxu0 0
  %2581 = vmatpush2.bf16.msra.mxu0 %v2452
  %2582 = vmatprep.subr.bf16.mxu0 0
  %2583 = vmatpush2.bf16.msra.mxu0 %v2451
  %2584 = vmatprep.subr.bf16.mxu0 0
  %2585 = vmatpush2.bf16.msra.mxu0 %v2450
  %2586 = vmatprep.mubr.bf16.mxu0 %v212
  %2587 = vmatmul.mubr.bf16.gmra.mxu0 %v211
  %v2588 = vpop.f32.mrf.mxu0
  %v2589 = vadd.f32 %v150, %v2588
  %v2590 = vpop.f32.mrf.mxu0
  %v2591 = vpop.f32.mrf.mxu0
  %v2592 = vadd.f32 %v155, %v2591
  %v2593 = vpop.f32.mrf.mxu0
  %2594 = vmatprep.mubr.bf16.mxu0 %v219
  %2595 = vmatmul.mubr.bf16.gmra.mxu0 %v218
  %v2596 = vpop.f32.mrf.mxu0
  %v2597 = vadd.f32 %v160, %v2596
  %v2598 = vpop.f32.mrf.mxu0
  %v2599 = vpop.f32.mrf.mxu0
  %v2600 = vadd.f32 %v165, %v2599
  %v2601 = vpop.f32.mrf.mxu0
  %2602 = vdwg.mxu0
  %2603 = vmatprep.subr.bf16.mxu0 0
  %2604 = vmatpush1.bf16.msra.mxu0 %v2465
  %2605 = vmatprep.subr.bf16.mxu0 0
  %2606 = vmatpush1.bf16.msra.mxu0 %v2464
  %2607 = vmatprep.subr.bf16.mxu0 0
  %2608 = vmatpush1.bf16.msra.mxu0 %v2463
  %2609 = vmatprep.subr.bf16.mxu0 0
  %2610 = vmatpush1.bf16.msra.mxu0 %v2462
  %2611 = vmatprep.subr.bf16.mxu0 0
  %2612 = vmatpush1.bf16.msra.mxu0 %v2461
  %2613 = vmatprep.subr.bf16.mxu0 0
  %2614 = vmatpush1.bf16.msra.mxu0 %v2460
  %2615 = vmatprep.subr.bf16.mxu0 0
  %2616 = vmatpush1.bf16.msra.mxu0 %v2459
  %2617 = vmatprep.subr.bf16.mxu0 0
  %2618 = vmatpush1.bf16.msra.mxu0 %v2458
  %2619 = vmatprep.subr.bf16.mxu0 0
  %2620 = vmatpush2.bf16.msra.mxu0 %v2473
  %2621 = vmatprep.subr.bf16.mxu0 0
  %2622 = vmatpush2.bf16.msra.mxu0 %v2472
  %2623 = vmatprep.subr.bf16.mxu0 0
  %2624 = vmatpush2.bf16.msra.mxu0 %v2471
  %2625 = vmatprep.subr.bf16.mxu0 0
  %2626 = vmatpush2.bf16.msra.mxu0 %v2470
  %2627 = vmatprep.subr.bf16.mxu0 0
  %2628 = vmatpush2.bf16.msra.mxu0 %v2469
  %2629 = vmatprep.subr.bf16.mxu0 0
  %2630 = vmatpush2.bf16.msra.mxu0 %v2468
  %2631 = vmatprep.subr.bf16.mxu0 0
  %2632 = vmatpush2.bf16.msra.mxu0 %v2467
  %2633 = vmatprep.subr.bf16.mxu0 0
  %2634 = vmatpush2.bf16.msra.mxu0 %v2466
  %2635 = vmatprep.mubr.bf16.mxu0 %v214
  %2636 = vmatmul.mubr.bf16.gmra.mxu0 %v213
  %v2637 = vpop.f32.mrf.mxu0
  %v2638 = vadd.f32 %v2589, %v2637
  %v2639 = vpop.f32.mrf.mxu0
  %v2640 = vpop.f32.mrf.mxu0
  %v2641 = vadd.f32 %v2592, %v2640
  %v2642 = vpop.f32.mrf.mxu0
  %2643 = vmatprep.mubr.bf16.mxu0 %v221
  %2644 = vmatmul.mubr.bf16.gmra.mxu0 %v220
  %v2645 = vpop.f32.mrf.mxu0
  %v2646 = vadd.f32 %v2597, %v2645
  %v2647 = vpop.f32.mrf.mxu0
  %v2648 = vpop.f32.mrf.mxu0
  %v2649 = vadd.f32 %v2600, %v2648
  %v2650 = vpop.f32.mrf.mxu0
  %2651 = vdwg.mxu0
  %2652 = vmatprep.subr.bf16.mxu0 0
  %2653 = vmatpush1.bf16.msra.mxu0 %v2481
  %2654 = vmatprep.subr.bf16.mxu0 0
  %2655 = vmatpush1.bf16.msra.mxu0 %v2480
  %2656 = vmatprep.subr.bf16.mxu0 0
  %2657 = vmatpush1.bf16.msra.mxu0 %v2479
  %2658 = vmatprep.subr.bf16.mxu0 0
  %2659 = vmatpush1.bf16.msra.mxu0 %v2478
  %2660 = vmatprep.subr.bf16.mxu0 0
  %2661 = vmatpush1.bf16.msra.mxu0 %v2477
  %2662 = vmatprep.subr.bf16.mxu0 0
  %2663 = vmatpush1.bf16.msra.mxu0 %v2476
  %2664 = vmatprep.subr.bf16.mxu0 0
  %2665 = vmatpush1.bf16.msra.mxu0 %v2475
  %2666 = vmatprep.subr.bf16.mxu0 0
  %2667 = vmatpush1.bf16.msra.mxu0 %v2474
  %2668 = vmatprep.subr.bf16.mxu0 0
  %2669 = vmatpush2.bf16.msra.mxu0 %v2489
  %2670 = vmatprep.subr.bf16.mxu0 0
  %2671 = vmatpush2.bf16.msra.mxu0 %v2488
  %2672 = vmatprep.subr.bf16.mxu0 0
  %2673 = vmatpush2.bf16.msra.mxu0 %v2487
  %2674 = vmatprep.subr.bf16.mxu0 0
  %2675 = vmatpush2.bf16.msra.mxu0 %v2486
  %2676 = vmatprep.subr.bf16.mxu0 0
  %2677 = vmatpush2.bf16.msra.mxu0 %v2485
  %2678 = vmatprep.subr.bf16.mxu0 0
  %2679 = vmatpush2.bf16.msra.mxu0 %v2484
  %2680 = vmatprep.subr.bf16.mxu0 0
  %2681 = vmatpush2.bf16.msra.mxu0 %v2483
  %2682 = vmatprep.subr.bf16.mxu0 0
  %2683 = vmatpush2.bf16.msra.mxu0 %v2482
  %2684 = vmatprep.mubr.bf16.mxu0 %v216
  %2685 = vmatmul.mubr.bf16.gmra.mxu0 %v215
  %v2686 = vpop.f32.mrf.mxu0
  %v2687 = vadd.f32 %v2638, %v2686
  %v2688 = vpop.f32.mrf.mxu0
  %v2689 = vpop.f32.mrf.mxu0
  %v2690 = vadd.f32 %v2641, %v2689
  %v2691 = vpop.f32.mrf.mxu0
  %2692 = vmatprep.mubr.bf16.mxu0 %v223
  %2693 = vmatmul.mubr.bf16.gmra.mxu0 %v222
  %v2694 = vpop.f32.mrf.mxu0
  %v2695 = vadd.f32 %v2646, %v2694
  %v2696 = vpop.f32.mrf.mxu0
  %v2697 = vpop.f32.mrf.mxu0
  %v2698 = vadd.f32 %v2649, %v2697
  %v2699 = vpop.f32.mrf.mxu0
  %2700 = vdwg.mxu0
  %2701 = vmatprep.subr.bf16.mxu0 0
  %2702 = vmatpush1.bf16.msra.mxu0 %v2497
  %2703 = vmatprep.subr.bf16.mxu0 0
  %2704 = vmatpush1.bf16.msra.mxu0 %v2496
  %2705 = vmatprep.subr.bf16.mxu0 0
  %2706 = vmatpush1.bf16.msra.mxu0 %v2495
  %2707 = vmatprep.subr.bf16.mxu0 0
  %2708 = vmatpush1.bf16.msra.mxu0 %v2494
  %2709 = vmatprep.subr.bf16.mxu0 0
  %2710 = vmatpush1.bf16.msra.mxu0 %v2493
  %2711 = vmatprep.subr.bf16.mxu0 0
  %2712 = vmatpush1.bf16.msra.mxu0 %v2492
  %2713 = vmatprep.subr.bf16.mxu0 0
  %2714 = vmatpush1.bf16.msra.mxu0 %v2491
  %2715 = vmatprep.subr.bf16.mxu0 0
  %2716 = vmatpush1.bf16.msra.mxu0 %v2490
  %2717 = vmatprep.subr.bf16.mxu0 0
  %2718 = vmatpush2.bf16.msra.mxu0 0
  %2719 = vmatprep.subr.bf16.mxu0 0
  %2720 = vmatpush2.bf16.msra.mxu0 0
  %2721 = vmatprep.subr.bf16.mxu0 0
  %2722 = vmatpush2.bf16.msra.mxu0 0
  %2723 = vmatprep.subr.bf16.mxu0 0
  %2724 = vmatpush2.bf16.msra.mxu0 0
  %2725 = vmatprep.subr.bf16.mxu0 0
  %2726 = vmatpush2.bf16.msra.mxu0 0
  %2727 = vmatprep.subr.bf16.mxu0 0
  %2728 = vmatpush2.bf16.msra.mxu0 0
  %2729 = vmatprep.subr.bf16.mxu0 0
  %2730 = vmatpush2.bf16.msra.mxu0 0
  %2731 = vmatprep.subr.bf16.mxu0 0
  %2732 = vmatpush2.bf16.msra.mxu0 0
  %2733 = vmatprep.mubr.bf16.mxu0 0
  %2734 = vmatmul.mubr.bf16.gmra.mxu0 %v217
  %v2735 = vpop.f32.mrf.mxu0
  %v2736 = vadd.f32 %v2687, %v2735
  %v2737 = vpop.f32.mrf.mxu0
  %v2738 = vpop.f32.mrf.mxu0
  %v2739 = vadd.f32 %v2690, %v2738
  %v2740 = vpop.f32.mrf.mxu0
  %2741 = vmatprep.mubr.bf16.mxu0 0
  %2742 = vmatmul.mubr.bf16.gmra.mxu0 %v224
  %v2743 = vpop.f32.mrf.mxu0
  %v2744 = vadd.f32 %v2695, %v2743
  %v2745 = vpop.f32.mrf.mxu0
  %v2746 = vpop.f32.mrf.mxu0
  %v2747 = vadd.f32 %v2698, %v2746
  %v2748 = vpop.f32.mrf.mxu0
  %2749 = vdwg.mxu0
  %vm2750 = vcmp.ge.f32.partialorder %v2736, 0.0
  %vm2751 = vcmp.ge.f32.partialorder %v2739, 0.0
  %vm2752 = vcmp.ge.f32.partialorder %v2744, 0.0
  %vm2753 = vcmp.ge.f32.partialorder %v2747, 0.0
  %v2754 = vmul.f32 %v2736, 0.01
  %v2755 = vmul.f32 %v2739, 0.01
  %v2756 = vmul.f32 %v2744, 0.01
  %v2757 = vmul.f32 %v2747, 0.01
  %v2758 = vsel %vm2750, %v2736, %v2754
  %v2759 = vsel %vm2751, %v2739, %v2755
  %v2760 = vsel %vm2752, %v2744, %v2756
  %v2761 = vsel %vm2753, %v2747, %v2757
  %v2762 = vmax.f32 %v2101, %v2758
  %v2763 = vmax.f32 %v2102, %v2759
  %v2764 = vmax.f32 %v2103, %v2760
  %v2765 = vmax.f32 %v2104, %v2761
  %s2766 = scalar_lea.vmem %s2, 1792
  %v2767 = vld [vmem:[%s2766] sm:$0xf]
  %v2768 = vld [vmem:[%s2766 + $0x4] sm:$0xf]
  %v2769 = vld [vmem:[%s2766 + $0x8] sm:$0xf]
  %v2770 = vld [vmem:[%s2766 + $0xc] sm:$0xf]
  %v2771 = vld [vmem:[%s2766 + $0x10] sm:$0xf]
  %v2772 = vld [vmem:[%s2766 + $0x14] sm:$0xf]
  %v2773 = vld [vmem:[%s2766 + $0x18] sm:$0xf]
  %v2774 = vld [vmem:[%s2766 + $0x1c] sm:$0xf]
  %v2775 = vld [vmem:[%s2766 + $0x20] sm:$0xf]
  %v2776 = vld [vmem:[%s2766 + $0x24] sm:$0xf]
  %v2777 = vld [vmem:[%s2766 + $0x28] sm:$0xf]
  %v2778 = vld [vmem:[%s2766 + $0x2c] sm:$0xf]
  %v2779 = vld [vmem:[%s2766 + $0x30] sm:$0xf]
  %v2780 = vld [vmem:[%s2766 + $0x34] sm:$0xf]
  %v2781 = vld [vmem:[%s2766 + $0x38] sm:$0xf]
  %v2782 = vld [vmem:[%s2766 + $0x3c] sm:$0xf]
  %v2783 = vld [vmem:[%s2766 + $0x40] sm:$0xf]
  %v2784 = vld [vmem:[%s2766 + $0x44] sm:$0xf]
  %v2785 = vld [vmem:[%s2766 + $0x48] sm:$0xf]
  %v2786 = vld [vmem:[%s2766 + $0x4c] sm:$0xf]
  %v2787 = vld [vmem:[%s2766 + $0x50] sm:$0xf]
  %v2788 = vld [vmem:[%s2766 + $0x54] sm:$0xf]
  %v2789 = vld [vmem:[%s2766 + $0x58] sm:$0xf]
  %v2790 = vld [vmem:[%s2766 + $0x5c] sm:$0xf]
  %v2791 = vld [vmem:[%s2766 + $0x60] sm:$0xf]
  %v2792 = vld [vmem:[%s2766 + $0x64] sm:$0xf]
  %v2793 = vld [vmem:[%s2766 + $0x68] sm:$0xf]
  %v2794 = vld [vmem:[%s2766 + $0x6c] sm:$0xf]
  %v2795 = vld [vmem:[%s2766 + $0x70] sm:$0xf]
  %v2796 = vld [vmem:[%s2766 + $0x74] sm:$0xf]
  %v2797 = vld [vmem:[%s2766 + $0x78] sm:$0xf]
  %v2798 = vld [vmem:[%s2766 + $0x7c] sm:$0xf]
  %v2799 = vld [vmem:[%s2766 + $0x80] sm:$0xf]
  %v2800 = vld [vmem:[%s2766 + $0x84] sm:$0xf]
  %v2801 = vld [vmem:[%s2766 + $0x88] sm:$0xf]
  %v2802 = vld [vmem:[%s2766 + $0x8c] sm:$0xf]
  %v2803 = vld [vmem:[%s2766 + $0x90] sm:$0xf]
  %v2804 = vld [vmem:[%s2766 + $0x94] sm:$0xf]
  %v2805 = vld [vmem:[%s2766 + $0x98] sm:$0xf]
  %v2806 = vld [vmem:[%s2766 + $0x9c] sm:$0xf]
  %v2807 = vld [vmem:[%s2766 + $0xa0] sm:$0xf]
  %v2808 = vld [vmem:[%s2766 + $0xa4] sm:$0xf]
  %v2809 = vld [vmem:[%s2766 + $0xa8] sm:$0xf]
  %v2810 = vld [vmem:[%s2766 + $0xac] sm:$0xf]
  %v2811 = vld [vmem:[%s2766 + $0xb0] sm:$0xf]
  %v2812 = vld [vmem:[%s2766 + $0xb4] sm:$0xf]
  %v2813 = vld [vmem:[%s2766 + $0xb8] sm:$0xf]
  %v2814 = vld [vmem:[%s2766 + $0xbc] sm:$0xf]
  %v2815 = vld [vmem:[%s2766 + $0xc0] sm:$0xf]
  %v2816 = vld [vmem:[%s2766 + $0xc4] sm:$0xf]
  %v2817 = vld [vmem:[%s2766 + $0xc8] sm:$0xf]
  %v2818 = vld [vmem:[%s2766 + $0xcc] sm:$0xf]
  %v2819 = vld [vmem:[%s2766 + $0xd0] sm:$0xf]
  %v2820 = vld [vmem:[%s2766 + $0xd4] sm:$0xf]
  %v2821 = vld [vmem:[%s2766 + $0xd8] sm:$0xf]
  %v2822 = vld [vmem:[%s2766 + $0xdc] sm:$0xf]
  %v2823 = vld [vmem:[%s2766 + $0xe0] sm:$0xf]
  %v2824 = vld [vmem:[%s2766 + $0xe4] sm:$0xf]
  %v2825 = vld [vmem:[%s2766 + $0xe8] sm:$0xf]
  %v2826 = vld [vmem:[%s2766 + $0xec] sm:$0xf]
  %v2827 = vld [vmem:[%s2766 + $0xf0] sm:$0xf]
  %v2828 = vld [vmem:[%s2766 + $0xf4] sm:$0xf]
  %v2829 = vld [vmem:[%s2766 + $0xf8] sm:$0xf]
  %v2830 = vld [vmem:[%s2766 + $0xfc] sm:$0xf]
  %v2831 = vld [vmem:[%s2766 + $0x100] sm:$0xf]
  %v2832 = vld [vmem:[%s2766 + $0x104] sm:$0xf]
  %v2833 = vld [vmem:[%s2766 + $0x108] sm:$0xf]
  %v2834 = vld [vmem:[%s2766 + $0x10c] sm:$0xf]
  %v2835 = vld [vmem:[%s2766 + $0x110] sm:$0xf]
  %v2836 = vld [vmem:[%s2766 + $0x114] sm:$0xf]
  %v2837 = vld [vmem:[%s2766 + $0x118] sm:$0xf]
  %v2838 = vld [vmem:[%s2766 + $0x11c] sm:$0xf]
  %v2839 = vld [vmem:[%s2766 + $0x120] sm:$0xf]
  %v2840 = vld [vmem:[%s2766 + $0x124] sm:$0xf]
  %v2841 = vld [vmem:[%s2766 + $0x128] sm:$0xf]
  %v2842 = vld [vmem:[%s2766 + $0x12c] sm:$0xf]
  %v2843 = vld [vmem:[%s2766 + $0x130] sm:$0xf]
  %v2844 = vld [vmem:[%s2766 + $0x134] sm:$0xf]
  %v2845 = vld [vmem:[%s2766 + $0x138] sm:$0xf]
  %v2846 = vld [vmem:[%s2766 + $0x13c] sm:$0xf]
  %v2847 = vld [vmem:[%s2766 + $0x140] sm:$0xf]
  %v2848 = vld [vmem:[%s2766 + $0x144] sm:$0xf]
  %v2849 = vld [vmem:[%s2766 + $0x148] sm:$0xf]
  %v2850 = vld [vmem:[%s2766 + $0x14c] sm:$0xf]
  %v2851 = vld [vmem:[%s2766 + $0x150] sm:$0xf]
  %v2852 = vld [vmem:[%s2766 + $0x154] sm:$0xf]
  %v2853 = vld [vmem:[%s2766 + $0x158] sm:$0xf]
  %v2854 = vld [vmem:[%s2766 + $0x15c] sm:$0xf]
  %v2855 = vld [vmem:[%s2766 + $0x160] sm:$0xf]
  %v2856 = vld [vmem:[%s2766 + $0x164] sm:$0xf]
  %v2857 = vld [vmem:[%s2766 + $0x168] sm:$0xf]
  %v2858 = vld [vmem:[%s2766 + $0x16c] sm:$0xf]
  %v2859 = vld [vmem:[%s2766 + $0x170] sm:$0xf]
  %v2860 = vld [vmem:[%s2766 + $0x174] sm:$0xf]
  %v2861 = vld [vmem:[%s2766 + $0x178] sm:$0xf]
  %v2862 = vld [vmem:[%s2766 + $0x17c] sm:$0xf]
  %v2863 = vld [vmem:[%s2766 + $0x180] sm:$0xf]
  %v2864 = vld [vmem:[%s2766 + $0x184] sm:$0xf]
  %v2865 = vld [vmem:[%s2766 + $0x188] sm:$0xf]
  %v2866 = vld [vmem:[%s2766 + $0x18c] sm:$0xf]
  %v2867 = vld [vmem:[%s2766 + $0x190] sm:$0xf]
  %v2868 = vld [vmem:[%s2766 + $0x194] sm:$0xf]
  %v2869 = vld [vmem:[%s2766 + $0x198] sm:$0xf]
  %v2870 = vld [vmem:[%s2766 + $0x19c] sm:$0xf]
  %v2871 = vld [vmem:[%s2766 + $0x1a0] sm:$0xf]
  %v2872 = vld [vmem:[%s2766 + $0x1a4] sm:$0xf]
  %v2873 = vld [vmem:[%s2766 + $0x1a8] sm:$0xf]
  %v2874 = vld [vmem:[%s2766 + $0x1ac] sm:$0xf]
  %v2875 = vld [vmem:[%s2766 + $0x1b0] sm:$0xf]
  %v2876 = vld [vmem:[%s2766 + $0x1b4] sm:$0xf]
  %v2877 = vld [vmem:[%s2766 + $0x1b8] sm:$0xf]
  %v2878 = vld [vmem:[%s2766 + $0x1bc] sm:$0xf]
  %v2991 = vunpack.c.l.b16 %v2767
  %v2992 = vunpack.c.l.b16 %v2768
  %v2993 = vunpack.c.l.b16 %v2769
  %v2994 = vunpack.c.l.b16 %v2770
  %v2995 = vunpack.c.l.b16 %v2771
  %v2996 = vunpack.c.l.b16 %v2772
  %v2997 = vunpack.c.l.b16 %v2773
  %v2998 = vunpack.c.l.b16 %v2774
  %v2999 = vunpack.c.l.b16 %v2775
  %v3000 = vunpack.c.l.b16 %v2776
  %v3001 = vunpack.c.l.b16 %v2777
  %v3002 = vunpack.c.l.b16 %v2778
  %v3003 = vunpack.c.l.b16 %v2779
  %v3004 = vunpack.c.l.b16 %v2780
  %v3005 = vunpack.c.l.b16 %v2781
  %v3006 = vunpack.c.l.b16 %v2782
  %v3007 = vunpack.c.l.b16 %v2783
  %v3008 = vunpack.c.l.b16 %v2784
  %v3009 = vunpack.c.l.b16 %v2785
  %v3010 = vunpack.c.l.b16 %v2786
  %v3011 = vunpack.c.l.b16 %v2787
  %v3012 = vunpack.c.l.b16 %v2788
  %v3013 = vunpack.c.l.b16 %v2789
  %v3014 = vunpack.c.l.b16 %v2790
  %v3015 = vunpack.c.l.b16 %v2791
  %v3016 = vunpack.c.l.b16 %v2792
  %v3017 = vunpack.c.l.b16 %v2793
  %v3018 = vunpack.c.l.b16 %v2794
  %v3019 = vunpack.c.l.b16 %v2795
  %v3020 = vunpack.c.l.b16 %v2796
  %v3021 = vunpack.c.l.b16 %v2797
  %v3022 = vunpack.c.l.b16 %v2798
  %v3023 = vunpack.c.l.b16 %v2799
  %v3024 = vunpack.c.l.b16 %v2800
  %v3025 = vunpack.c.l.b16 %v2801
  %v3026 = vunpack.c.l.b16 %v2802
  %v3027 = vunpack.c.l.b16 %v2803
  %v3028 = vunpack.c.l.b16 %v2804
  %v3029 = vunpack.c.l.b16 %v2805
  %v3030 = vunpack.c.l.b16 %v2806
  %v3031 = vunpack.c.l.b16 %v2807
  %v3032 = vunpack.c.l.b16 %v2808
  %v3033 = vunpack.c.l.b16 %v2809
  %v3034 = vunpack.c.l.b16 %v2810
  %v3035 = vunpack.c.l.b16 %v2811
  %v3036 = vunpack.c.l.b16 %v2812
  %v3037 = vunpack.c.l.b16 %v2813
  %v3038 = vunpack.c.l.b16 %v2814
  %v3039 = vunpack.c.l.b16 %v2815
  %v3040 = vunpack.c.l.b16 %v2816
  %v3041 = vunpack.c.l.b16 %v2817
  %v3042 = vunpack.c.l.b16 %v2818
  %v3043 = vunpack.c.l.b16 %v2819
  %v3044 = vunpack.c.l.b16 %v2820
  %v3045 = vunpack.c.l.b16 %v2821
  %v3046 = vunpack.c.l.b16 %v2822
  %v3047 = vunpack.c.l.b16 %v2823
  %v3048 = vunpack.c.l.b16 %v2824
  %v3049 = vunpack.c.l.b16 %v2825
  %v3050 = vunpack.c.l.b16 %v2826
  %v3051 = vunpack.c.l.b16 %v2827
  %v3052 = vunpack.c.l.b16 %v2828
  %v3053 = vunpack.c.l.b16 %v2829
  %v3054 = vunpack.c.l.b16 %v2830
  %v3055 = vunpack.c.l.b16 %v2831
  %v3056 = vunpack.c.l.b16 %v2832
  %v3057 = vunpack.c.l.b16 %v2833
  %v3058 = vunpack.c.l.b16 %v2834
  %v3059 = vunpack.c.l.b16 %v2835
  %v3060 = vunpack.c.l.b16 %v2836
  %v3061 = vunpack.c.l.b16 %v2837
  %v3062 = vunpack.c.l.b16 %v2838
  %v3063 = vunpack.c.l.b16 %v2839
  %v3064 = vunpack.c.l.b16 %v2840
  %v3065 = vunpack.c.l.b16 %v2841
  %v3066 = vunpack.c.l.b16 %v2842
  %v3067 = vunpack.c.l.b16 %v2843
  %v3068 = vunpack.c.l.b16 %v2844
  %v3069 = vunpack.c.l.b16 %v2845
  %v3070 = vunpack.c.l.b16 %v2846
  %v3071 = vunpack.c.l.b16 %v2847
  %v3072 = vunpack.c.l.b16 %v2848
  %v3073 = vunpack.c.l.b16 %v2849
  %v3074 = vunpack.c.l.b16 %v2850
  %v3075 = vunpack.c.l.b16 %v2851
  %v3076 = vunpack.c.l.b16 %v2852
  %v3077 = vunpack.c.l.b16 %v2853
  %v3078 = vunpack.c.l.b16 %v2854
  %v3079 = vunpack.c.l.b16 %v2855
  %v3080 = vunpack.c.l.b16 %v2856
  %v3081 = vunpack.c.l.b16 %v2857
  %v3082 = vunpack.c.l.b16 %v2858
  %v3083 = vunpack.c.l.b16 %v2859
  %v3084 = vunpack.c.l.b16 %v2860
  %v3085 = vunpack.c.l.b16 %v2861
  %v3086 = vunpack.c.l.b16 %v2862
  %v3087 = vunpack.c.l.b16 %v2863
  %v3088 = vunpack.c.l.b16 %v2864
  %v3089 = vunpack.c.l.b16 %v2865
  %v3090 = vunpack.c.l.b16 %v2866
  %v3091 = vunpack.c.l.b16 %v2867
  %v3092 = vunpack.c.l.b16 %v2868
  %v3093 = vunpack.c.l.b16 %v2869
  %v3094 = vunpack.c.l.b16 %v2870
  %v3095 = vunpack.c.l.b16 %v2871
  %v3096 = vunpack.c.l.b16 %v2872
  %v3097 = vunpack.c.l.b16 %v2873
  %v3098 = vunpack.c.l.b16 %v2874
  %v3099 = vunpack.c.l.b16 %v2875
  %v3100 = vunpack.c.l.b16 %v2876
  %v3101 = vunpack.c.l.b16 %v2877
  %v3102 = vunpack.c.l.b16 %v2878
  %v3103 = vpack.c.b16 %v2992, %v2991
  %v3104 = vpack.c.b16 %v2994, %v2993
  %v3105 = vpack.c.b16 %v2996, %v2995
  %v3106 = vpack.c.b16 %v2998, %v2997
  %v3107 = vpack.c.b16 %v3000, %v2999
  %v3108 = vpack.c.b16 %v3002, %v3001
  %v3109 = vpack.c.b16 %v3004, %v3003
  %v3110 = vpack.c.b16 %v3006, %v3005
  %v3111 = vpack.c.b16 %v3008, %v3007
  %v3112 = vpack.c.b16 %v3010, %v3009
  %v3113 = vpack.c.b16 %v3012, %v3011
  %v3114 = vpack.c.b16 %v3014, %v3013
  %v3115 = vpack.c.b16 %v3016, %v3015
  %v3116 = vpack.c.b16 %v3018, %v3017
  %v3117 = vpack.c.b16 %v3020, %v3019
  %v3118 = vpack.c.b16 %v3022, %v3021
  %v3119 = vpack.c.b16 %v3024, %v3023
  %v3120 = vpack.c.b16 %v3026, %v3025
  %v3121 = vpack.c.b16 %v3028, %v3027
  %v3122 = vpack.c.b16 %v3030, %v3029
  %v3123 = vpack.c.b16 %v3032, %v3031
  %v3124 = vpack.c.b16 %v3034, %v3033
  %v3125 = vpack.c.b16 %v3036, %v3035
  %v3126 = vpack.c.b16 %v3038, %v3037
  %v3127 = vpack.c.b16 %v3040, %v3039
  %v3128 = vpack.c.b16 %v3042, %v3041
  %v3129 = vpack.c.b16 %v3044, %v3043
  %v3130 = vpack.c.b16 %v3046, %v3045
  %v3131 = vpack.c.b16 %v3048, %v3047
  %v3132 = vpack.c.b16 %v3050, %v3049
  %v3133 = vpack.c.b16 %v3052, %v3051
  %v3134 = vpack.c.b16 %v3054, %v3053
  %v3135 = vpack.c.b16 %v3056, %v3055
  %v3136 = vpack.c.b16 %v3058, %v3057
  %v3137 = vpack.c.b16 %v3060, %v3059
  %v3138 = vpack.c.b16 %v3062, %v3061
  %v3139 = vpack.c.b16 %v3064, %v3063
  %v3140 = vpack.c.b16 %v3066, %v3065
  %v3141 = vpack.c.b16 %v3068, %v3067
  %v3142 = vpack.c.b16 %v3070, %v3069
  %v3143 = vpack.c.b16 %v3072, %v3071
  %v3144 = vpack.c.b16 %v3074, %v3073
  %v3145 = vpack.c.b16 %v3076, %v3075
  %v3146 = vpack.c.b16 %v3078, %v3077
  %v3147 = vpack.c.b16 %v3080, %v3079
  %v3148 = vpack.c.b16 %v3082, %v3081
  %v3149 = vpack.c.b16 %v3084, %v3083
  %v3150 = vpack.c.b16 %v3086, %v3085
  %v3151 = vpack.c.b16 %v3088, %v3087
  %v3152 = vpack.c.b16 %v3090, %v3089
  %v3153 = vpack.c.b16 %v3092, %v3091
  %v3154 = vpack.c.b16 %v3094, %v3093
  %v3155 = vpack.c.b16 %v3096, %v3095
  %v3156 = vpack.c.b16 %v3098, %v3097
  %v3157 = vpack.c.b16 %v3100, %v3099
  %v3158 = vpack.c.b16 %v3102, %v3101
  %3215 = vmatprep.subr.bf16.mxu0 0
  %3216 = vmatpush1.bf16.msra.mxu0 %v3110
  %3217 = vmatprep.subr.bf16.mxu0 0
  %3218 = vmatpush1.bf16.msra.mxu0 %v3109
  %3219 = vmatprep.subr.bf16.mxu0 0
  %3220 = vmatpush1.bf16.msra.mxu0 %v3108
  %3221 = vmatprep.subr.bf16.mxu0 0
  %3222 = vmatpush1.bf16.msra.mxu0 %v3107
  %3223 = vmatprep.subr.bf16.mxu0 0
  %3224 = vmatpush1.bf16.msra.mxu0 %v3106
  %3225 = vmatprep.subr.bf16.mxu0 0
  %3226 = vmatpush1.bf16.msra.mxu0 %v3105
  %3227 = vmatprep.subr.bf16.mxu0 0
  %3228 = vmatpush1.bf16.msra.mxu0 %v3104
  %3229 = vmatprep.subr.bf16.mxu0 0
  %3230 = vmatpush1.bf16.msra.mxu0 %v3103
  %3231 = vmatprep.subr.bf16.mxu0 0
  %3232 = vmatpush2.bf16.msra.mxu0 %v3118
  %3233 = vmatprep.subr.bf16.mxu0 0
  %3234 = vmatpush2.bf16.msra.mxu0 %v3117
  %3235 = vmatprep.subr.bf16.mxu0 0
  %3236 = vmatpush2.bf16.msra.mxu0 %v3116
  %3237 = vmatprep.subr.bf16.mxu0 0
  %3238 = vmatpush2.bf16.msra.mxu0 %v3115
  %3239 = vmatprep.subr.bf16.mxu0 0
  %3240 = vmatpush2.bf16.msra.mxu0 %v3114
  %3241 = vmatprep.subr.bf16.mxu0 0
  %3242 = vmatpush2.bf16.msra.mxu0 %v3113
  %3243 = vmatprep.subr.bf16.mxu0 0
  %3244 = vmatpush2.bf16.msra.mxu0 %v3112
  %3245 = vmatprep.subr.bf16.mxu0 0
  %3246 = vmatpush2.bf16.msra.mxu0 %v3111
  %3247 = vmatprep.mubr.bf16.mxu0 %v212
  %3248 = vmatmul.mubr.bf16.gmra.mxu0 %v211
  %v3249 = vpop.f32.mrf.mxu0
  %v3250 = vadd.f32 %v150, %v3249
  %v3251 = vpop.f32.mrf.mxu0
  %v3252 = vpop.f32.mrf.mxu0
  %v3253 = vadd.f32 %v155, %v3252
  %v3254 = vpop.f32.mrf.mxu0
  %3255 = vmatprep.mubr.bf16.mxu0 %v219
  %3256 = vmatmul.mubr.bf16.gmra.mxu0 %v218
  %v3257 = vpop.f32.mrf.mxu0
  %v3258 = vadd.f32 %v160, %v3257
  %v3259 = vpop.f32.mrf.mxu0
  %v3260 = vpop.f32.mrf.mxu0
  %v3261 = vadd.f32 %v165, %v3260
  %v3262 = vpop.f32.mrf.mxu0
  %3263 = vdwg.mxu0
  %3264 = vmatprep.subr.bf16.mxu0 0
  %3265 = vmatpush1.bf16.msra.mxu0 %v3126
  %3266 = vmatprep.subr.bf16.mxu0 0
  %3267 = vmatpush1.bf16.msra.mxu0 %v3125
  %3268 = vmatprep.subr.bf16.mxu0 0
  %3269 = vmatpush1.bf16.msra.mxu0 %v3124
  %3270 = vmatprep.subr.bf16.mxu0 0
  %3271 = vmatpush1.bf16.msra.mxu0 %v3123
  %3272 = vmatprep.subr.bf16.mxu0 0
  %3273 = vmatpush1.bf16.msra.mxu0 %v3122
  %3274 = vmatprep.subr.bf16.mxu0 0
  %3275 = vmatpush1.bf16.msra.mxu0 %v3121
  %3276 = vmatprep.subr.bf16.mxu0 0
  %3277 = vmatpush1.bf16.msra.mxu0 %v3120
  %3278 = vmatprep.subr.bf16.mxu0 0
  %3279 = vmatpush1.bf16.msra.mxu0 %v3119
  %3280 = vmatprep.subr.bf16.mxu0 0
  %3281 = vmatpush2.bf16.msra.mxu0 %v3134
  %3282 = vmatprep.subr.bf16.mxu0 0
  %3283 = vmatpush2.bf16.msra.mxu0 %v3133
  %3284 = vmatprep.subr.bf16.mxu0 0
  %3285 = vmatpush2.bf16.msra.mxu0 %v3132
  %3286 = vmatprep.subr.bf16.mxu0 0
  %3287 = vmatpush2.bf16.msra.mxu0 %v3131
  %3288 = vmatprep.subr.bf16.mxu0 0
  %3289 = vmatpush2.bf16.msra.mxu0 %v3130
  %3290 = vmatprep.subr.bf16.mxu0 0
  %3291 = vmatpush2.bf16.msra.mxu0 %v3129
  %3292 = vmatprep.subr.bf16.mxu0 0
  %3293 = vmatpush2.bf16.msra.mxu0 %v3128
  %3294 = vmatprep.subr.bf16.mxu0 0
  %3295 = vmatpush2.bf16.msra.mxu0 %v3127
  %3296 = vmatprep.mubr.bf16.mxu0 %v214
  %3297 = vmatmul.mubr.bf16.gmra.mxu0 %v213
  %v3298 = vpop.f32.mrf.mxu0
  %v3299 = vadd.f32 %v3250, %v3298
  %v3300 = vpop.f32.mrf.mxu0
  %v3301 = vpop.f32.mrf.mxu0
  %v3302 = vadd.f32 %v3253, %v3301
  %v3303 = vpop.f32.mrf.mxu0
  %3304 = vmatprep.mubr.bf16.mxu0 %v221
  %3305 = vmatmul.mubr.bf16.gmra.mxu0 %v220
  %v3306 = vpop.f32.mrf.mxu0
  %v3307 = vadd.f32 %v3258, %v3306
  %v3308 = vpop.f32.mrf.mxu0
  %v3309 = vpop.f32.mrf.mxu0
  %v3310 = vadd.f32 %v3261, %v3309
  %v3311 = vpop.f32.mrf.mxu0
  %3312 = vdwg.mxu0
  %3313 = vmatprep.subr.bf16.mxu0 0
  %3314 = vmatpush1.bf16.msra.mxu0 %v3142
  %3315 = vmatprep.subr.bf16.mxu0 0
  %3316 = vmatpush1.bf16.msra.mxu0 %v3141
  %3317 = vmatprep.subr.bf16.mxu0 0
  %3318 = vmatpush1.bf16.msra.mxu0 %v3140
  %3319 = vmatprep.subr.bf16.mxu0 0
  %3320 = vmatpush1.bf16.msra.mxu0 %v3139
  %3321 = vmatprep.subr.bf16.mxu0 0
  %3322 = vmatpush1.bf16.msra.mxu0 %v3138
  %3323 = vmatprep.subr.bf16.mxu0 0
  %3324 = vmatpush1.bf16.msra.mxu0 %v3137
  %3325 = vmatprep.subr.bf16.mxu0 0
  %3326 = vmatpush1.bf16.msra.mxu0 %v3136
  %3327 = vmatprep.subr.bf16.mxu0 0
  %3328 = vmatpush1.bf16.msra.mxu0 %v3135
  %3329 = vmatprep.subr.bf16.mxu0 0
  %3330 = vmatpush2.bf16.msra.mxu0 %v3150
  %3331 = vmatprep.subr.bf16.mxu0 0
  %3332 = vmatpush2.bf16.msra.mxu0 %v3149
  %3333 = vmatprep.subr.bf16.mxu0 0
  %3334 = vmatpush2.bf16.msra.mxu0 %v3148
  %3335 = vmatprep.subr.bf16.mxu0 0
  %3336 = vmatpush2.bf16.msra.mxu0 %v3147
  %3337 = vmatprep.subr.bf16.mxu0 0
  %3338 = vmatpush2.bf16.msra.mxu0 %v3146
  %3339 = vmatprep.subr.bf16.mxu0 0
  %3340 = vmatpush2.bf16.msra.mxu0 %v3145
  %3341 = vmatprep.subr.bf16.mxu0 0
  %3342 = vmatpush2.bf16.msra.mxu0 %v3144
  %3343 = vmatprep.subr.bf16.mxu0 0
  %3344 = vmatpush2.bf16.msra.mxu0 %v3143
  %3345 = vmatprep.mubr.bf16.mxu0 %v216
  %3346 = vmatmul.mubr.bf16.gmra.mxu0 %v215
  %v3347 = vpop.f32.mrf.mxu0
  %v3348 = vadd.f32 %v3299, %v3347
  %v3349 = vpop.f32.mrf.mxu0
  %v3350 = vpop.f32.mrf.mxu0
  %v3351 = vadd.f32 %v3302, %v3350
  %v3352 = vpop.f32.mrf.mxu0
  %3353 = vmatprep.mubr.bf16.mxu0 %v223
  %3354 = vmatmul.mubr.bf16.gmra.mxu0 %v222
  %v3355 = vpop.f32.mrf.mxu0
  %v3356 = vadd.f32 %v3307, %v3355
  %v3357 = vpop.f32.mrf.mxu0
  %v3358 = vpop.f32.mrf.mxu0
  %v3359 = vadd.f32 %v3310, %v3358
  %v3360 = vpop.f32.mrf.mxu0
  %3361 = vdwg.mxu0
  %3362 = vmatprep.subr.bf16.mxu0 0
  %3363 = vmatpush1.bf16.msra.mxu0 %v3158
  %3364 = vmatprep.subr.bf16.mxu0 0
  %3365 = vmatpush1.bf16.msra.mxu0 %v3157
  %3366 = vmatprep.subr.bf16.mxu0 0
  %3367 = vmatpush1.bf16.msra.mxu0 %v3156
  %3368 = vmatprep.subr.bf16.mxu0 0
  %3369 = vmatpush1.bf16.msra.mxu0 %v3155
  %3370 = vmatprep.subr.bf16.mxu0 0
  %3371 = vmatpush1.bf16.msra.mxu0 %v3154
  %3372 = vmatprep.subr.bf16.mxu0 0
  %3373 = vmatpush1.bf16.msra.mxu0 %v3153
  %3374 = vmatprep.subr.bf16.mxu0 0
  %3375 = vmatpush1.bf16.msra.mxu0 %v3152
  %3376 = vmatprep.subr.bf16.mxu0 0
  %3377 = vmatpush1.bf16.msra.mxu0 %v3151
  %3378 = vmatprep.subr.bf16.mxu0 0
  %3379 = vmatpush2.bf16.msra.mxu0 0
  %3380 = vmatprep.subr.bf16.mxu0 0
  %3381 = vmatpush2.bf16.msra.mxu0 0
  %3382 = vmatprep.subr.bf16.mxu0 0
  %3383 = vmatpush2.bf16.msra.mxu0 0
  %3384 = vmatprep.subr.bf16.mxu0 0
  %3385 = vmatpush2.bf16.msra.mxu0 0
  %3386 = vmatprep.subr.bf16.mxu0 0
  %3387 = vmatpush2.bf16.msra.mxu0 0
  %3388 = vmatprep.subr.bf16.mxu0 0
  %3389 = vmatpush2.bf16.msra.mxu0 0
  %3390 = vmatprep.subr.bf16.mxu0 0
  %3391 = vmatpush2.bf16.msra.mxu0 0
  %3392 = vmatprep.subr.bf16.mxu0 0
  %3393 = vmatpush2.bf16.msra.mxu0 0
  %3394 = vmatprep.mubr.bf16.mxu0 0
  %3395 = vmatmul.mubr.bf16.gmra.mxu0 %v217
  %v3396 = vpop.f32.mrf.mxu0
  %v3397 = vadd.f32 %v3348, %v3396
  %v3398 = vpop.f32.mrf.mxu0
  %v3399 = vpop.f32.mrf.mxu0
  %v3400 = vadd.f32 %v3351, %v3399
  %v3401 = vpop.f32.mrf.mxu0
  %3402 = vmatprep.mubr.bf16.mxu0 0
  %3403 = vmatmul.mubr.bf16.gmra.mxu0 %v224
  %v3404 = vpop.f32.mrf.mxu0
  %v3405 = vadd.f32 %v3356, %v3404
  %v3406 = vpop.f32.mrf.mxu0
  %v3407 = vpop.f32.mrf.mxu0
  %v3408 = vadd.f32 %v3359, %v3407
  %v3409 = vpop.f32.mrf.mxu0
  %3410 = vdwg.mxu0
  %vm3411 = vcmp.ge.f32.partialorder %v3397, 0.0
  %vm3412 = vcmp.ge.f32.partialorder %v3400, 0.0
  %vm3413 = vcmp.ge.f32.partialorder %v3405, 0.0
  %vm3414 = vcmp.ge.f32.partialorder %v3408, 0.0
  %v3415 = vmul.f32 %v3397, 0.01
  %v3416 = vmul.f32 %v3400, 0.01
  %v3417 = vmul.f32 %v3405, 0.01
  %v3418 = vmul.f32 %v3408, 0.01
  %v3419 = vsel %vm3411, %v3397, %v3415
  %v3420 = vsel %vm3412, %v3400, %v3416
  %v3421 = vsel %vm3413, %v3405, %v3417
  %v3422 = vsel %vm3414, %v3408, %v3418
  %v3423 = vmax.f32 %v2762, %v3419
  %v3424 = vmax.f32 %v2763, %v3420
  %v3425 = vmax.f32 %v2764, %v3421
  %v3426 = vmax.f32 %v2765, %v3422
  %s3427 = scalar_lea.vmem %s2, 2240
  %v3428 = vld [vmem:[%s3427] sm:$0xf]
  %v3429 = vld [vmem:[%s3427 + $0x4] sm:$0xf]
  %v3430 = vld [vmem:[%s3427 + $0x8] sm:$0xf]
  %v3431 = vld [vmem:[%s3427 + $0xc] sm:$0xf]
  %v3432 = vld [vmem:[%s3427 + $0x10] sm:$0xf]
  %v3433 = vld [vmem:[%s3427 + $0x14] sm:$0xf]
  %v3434 = vld [vmem:[%s3427 + $0x18] sm:$0xf]
  %v3435 = vld [vmem:[%s3427 + $0x1c] sm:$0xf]
  %v3436 = vld [vmem:[%s3427 + $0x20] sm:$0xf]
  %v3437 = vld [vmem:[%s3427 + $0x24] sm:$0xf]
  %v3438 = vld [vmem:[%s3427 + $0x28] sm:$0xf]
  %v3439 = vld [vmem:[%s3427 + $0x2c] sm:$0xf]
  %v3440 = vld [vmem:[%s3427 + $0x30] sm:$0xf]
  %v3441 = vld [vmem:[%s3427 + $0x34] sm:$0xf]
  %v3442 = vld [vmem:[%s3427 + $0x38] sm:$0xf]
  %v3443 = vld [vmem:[%s3427 + $0x3c] sm:$0xf]
  %v3444 = vld [vmem:[%s3427 + $0x40] sm:$0xf]
  %v3445 = vld [vmem:[%s3427 + $0x44] sm:$0xf]
  %v3446 = vld [vmem:[%s3427 + $0x48] sm:$0xf]
  %v3447 = vld [vmem:[%s3427 + $0x4c] sm:$0xf]
  %v3448 = vld [vmem:[%s3427 + $0x50] sm:$0xf]
  %v3449 = vld [vmem:[%s3427 + $0x54] sm:$0xf]
  %v3450 = vld [vmem:[%s3427 + $0x58] sm:$0xf]
  %v3451 = vld [vmem:[%s3427 + $0x5c] sm:$0xf]
  %v3452 = vld [vmem:[%s3427 + $0x60] sm:$0xf]
  %v3453 = vld [vmem:[%s3427 + $0x64] sm:$0xf]
  %v3454 = vld [vmem:[%s3427 + $0x68] sm:$0xf]
  %v3455 = vld [vmem:[%s3427 + $0x6c] sm:$0xf]
  %v3456 = vld [vmem:[%s3427 + $0x70] sm:$0xf]
  %v3457 = vld [vmem:[%s3427 + $0x74] sm:$0xf]
  %v3458 = vld [vmem:[%s3427 + $0x78] sm:$0xf]
  %v3459 = vld [vmem:[%s3427 + $0x7c] sm:$0xf]
  %v3460 = vld [vmem:[%s3427 + $0x80] sm:$0xf]
  %v3461 = vld [vmem:[%s3427 + $0x84] sm:$0xf]
  %v3462 = vld [vmem:[%s3427 + $0x88] sm:$0xf]
  %v3463 = vld [vmem:[%s3427 + $0x8c] sm:$0xf]
  %v3464 = vld [vmem:[%s3427 + $0x90] sm:$0xf]
  %v3465 = vld [vmem:[%s3427 + $0x94] sm:$0xf]
  %v3466 = vld [vmem:[%s3427 + $0x98] sm:$0xf]
  %v3467 = vld [vmem:[%s3427 + $0x9c] sm:$0xf]
  %v3468 = vld [vmem:[%s3427 + $0xa0] sm:$0xf]
  %v3469 = vld [vmem:[%s3427 + $0xa4] sm:$0xf]
  %v3470 = vld [vmem:[%s3427 + $0xa8] sm:$0xf]
  %v3471 = vld [vmem:[%s3427 + $0xac] sm:$0xf]
  %v3472 = vld [vmem:[%s3427 + $0xb0] sm:$0xf]
  %v3473 = vld [vmem:[%s3427 + $0xb4] sm:$0xf]
  %v3474 = vld [vmem:[%s3427 + $0xb8] sm:$0xf]
  %v3475 = vld [vmem:[%s3427 + $0xbc] sm:$0xf]
  %v3476 = vld [vmem:[%s3427 + $0xc0] sm:$0xf]
  %v3477 = vld [vmem:[%s3427 + $0xc4] sm:$0xf]
  %v3478 = vld [vmem:[%s3427 + $0xc8] sm:$0xf]
  %v3479 = vld [vmem:[%s3427 + $0xcc] sm:$0xf]
  %v3480 = vld [vmem:[%s3427 + $0xd0] sm:$0xf]
  %v3481 = vld [vmem:[%s3427 + $0xd4] sm:$0xf]
  %v3482 = vld [vmem:[%s3427 + $0xd8] sm:$0xf]
  %v3483 = vld [vmem:[%s3427 + $0xdc] sm:$0xf]
  %v3484 = vld [vmem:[%s3427 + $0xe0] sm:$0xf]
  %v3485 = vld [vmem:[%s3427 + $0xe4] sm:$0xf]
  %v3486 = vld [vmem:[%s3427 + $0xe8] sm:$0xf]
  %v3487 = vld [vmem:[%s3427 + $0xec] sm:$0xf]
  %v3488 = vld [vmem:[%s3427 + $0xf0] sm:$0xf]
  %v3489 = vld [vmem:[%s3427 + $0xf4] sm:$0xf]
  %v3490 = vld [vmem:[%s3427 + $0xf8] sm:$0xf]
  %v3491 = vld [vmem:[%s3427 + $0xfc] sm:$0xf]
  %v3492 = vld [vmem:[%s3427 + $0x100] sm:$0xf]
  %v3493 = vld [vmem:[%s3427 + $0x104] sm:$0xf]
  %v3494 = vld [vmem:[%s3427 + $0x108] sm:$0xf]
  %v3495 = vld [vmem:[%s3427 + $0x10c] sm:$0xf]
  %v3496 = vld [vmem:[%s3427 + $0x110] sm:$0xf]
  %v3497 = vld [vmem:[%s3427 + $0x114] sm:$0xf]
  %v3498 = vld [vmem:[%s3427 + $0x118] sm:$0xf]
  %v3499 = vld [vmem:[%s3427 + $0x11c] sm:$0xf]
  %v3500 = vld [vmem:[%s3427 + $0x120] sm:$0xf]
  %v3501 = vld [vmem:[%s3427 + $0x124] sm:$0xf]
  %v3502 = vld [vmem:[%s3427 + $0x128] sm:$0xf]
  %v3503 = vld [vmem:[%s3427 + $0x12c] sm:$0xf]
  %v3504 = vld [vmem:[%s3427 + $0x130] sm:$0xf]
  %v3505 = vld [vmem:[%s3427 + $0x134] sm:$0xf]
  %v3506 = vld [vmem:[%s3427 + $0x138] sm:$0xf]
  %v3507 = vld [vmem:[%s3427 + $0x13c] sm:$0xf]
  %v3508 = vld [vmem:[%s3427 + $0x140] sm:$0xf]
  %v3509 = vld [vmem:[%s3427 + $0x144] sm:$0xf]
  %v3510 = vld [vmem:[%s3427 + $0x148] sm:$0xf]
  %v3511 = vld [vmem:[%s3427 + $0x14c] sm:$0xf]
  %v3512 = vld [vmem:[%s3427 + $0x150] sm:$0xf]
  %v3513 = vld [vmem:[%s3427 + $0x154] sm:$0xf]
  %v3514 = vld [vmem:[%s3427 + $0x158] sm:$0xf]
  %v3515 = vld [vmem:[%s3427 + $0x15c] sm:$0xf]
  %v3516 = vld [vmem:[%s3427 + $0x160] sm:$0xf]
  %v3517 = vld [vmem:[%s3427 + $0x164] sm:$0xf]
  %v3518 = vld [vmem:[%s3427 + $0x168] sm:$0xf]
  %v3519 = vld [vmem:[%s3427 + $0x16c] sm:$0xf]
  %v3520 = vld [vmem:[%s3427 + $0x170] sm:$0xf]
  %v3521 = vld [vmem:[%s3427 + $0x174] sm:$0xf]
  %v3522 = vld [vmem:[%s3427 + $0x178] sm:$0xf]
  %v3523 = vld [vmem:[%s3427 + $0x17c] sm:$0xf]
  %v3524 = vld [vmem:[%s3427 + $0x180] sm:$0xf]
  %v3525 = vld [vmem:[%s3427 + $0x184] sm:$0xf]
  %v3526 = vld [vmem:[%s3427 + $0x188] sm:$0xf]
  %v3527 = vld [vmem:[%s3427 + $0x18c] sm:$0xf]
  %v3528 = vld [vmem:[%s3427 + $0x190] sm:$0xf]
  %v3529 = vld [vmem:[%s3427 + $0x194] sm:$0xf]
  %v3530 = vld [vmem:[%s3427 + $0x198] sm:$0xf]
  %v3531 = vld [vmem:[%s3427 + $0x19c] sm:$0xf]
  %v3532 = vld [vmem:[%s3427 + $0x1a0] sm:$0xf]
  %v3533 = vld [vmem:[%s3427 + $0x1a4] sm:$0xf]
  %v3534 = vld [vmem:[%s3427 + $0x1a8] sm:$0xf]
  %v3535 = vld [vmem:[%s3427 + $0x1ac] sm:$0xf]
  %v3536 = vld [vmem:[%s3427 + $0x1b0] sm:$0xf]
  %v3537 = vld [vmem:[%s3427 + $0x1b4] sm:$0xf]
  %v3538 = vld [vmem:[%s3427 + $0x1b8] sm:$0xf]
  %v3539 = vld [vmem:[%s3427 + $0x1bc] sm:$0xf]
  %v3652 = vunpack.c.l.b16 %v3428
  %v3653 = vunpack.c.l.b16 %v3429
  %v3654 = vunpack.c.l.b16 %v3430
  %v3655 = vunpack.c.l.b16 %v3431
  %v3656 = vunpack.c.l.b16 %v3432
  %v3657 = vunpack.c.l.b16 %v3433
  %v3658 = vunpack.c.l.b16 %v3434
  %v3659 = vunpack.c.l.b16 %v3435
  %v3660 = vunpack.c.l.b16 %v3436
  %v3661 = vunpack.c.l.b16 %v3437
  %v3662 = vunpack.c.l.b16 %v3438
  %v3663 = vunpack.c.l.b16 %v3439
  %v3664 = vunpack.c.l.b16 %v3440
  %v3665 = vunpack.c.l.b16 %v3441
  %v3666 = vunpack.c.l.b16 %v3442
  %v3667 = vunpack.c.l.b16 %v3443
  %v3668 = vunpack.c.l.b16 %v3444
  %v3669 = vunpack.c.l.b16 %v3445
  %v3670 = vunpack.c.l.b16 %v3446
  %v3671 = vunpack.c.l.b16 %v3447
  %v3672 = vunpack.c.l.b16 %v3448
  %v3673 = vunpack.c.l.b16 %v3449
  %v3674 = vunpack.c.l.b16 %v3450
  %v3675 = vunpack.c.l.b16 %v3451
  %v3676 = vunpack.c.l.b16 %v3452
  %v3677 = vunpack.c.l.b16 %v3453
  %v3678 = vunpack.c.l.b16 %v3454
  %v3679 = vunpack.c.l.b16 %v3455
  %v3680 = vunpack.c.l.b16 %v3456
  %v3681 = vunpack.c.l.b16 %v3457
  %v3682 = vunpack.c.l.b16 %v3458
  %v3683 = vunpack.c.l.b16 %v3459
  %v3684 = vunpack.c.l.b16 %v3460
  %v3685 = vunpack.c.l.b16 %v3461
  %v3686 = vunpack.c.l.b16 %v3462
  %v3687 = vunpack.c.l.b16 %v3463
  %v3688 = vunpack.c.l.b16 %v3464
  %v3689 = vunpack.c.l.b16 %v3465
  %v3690 = vunpack.c.l.b16 %v3466
  %v3691 = vunpack.c.l.b16 %v3467
  %v3692 = vunpack.c.l.b16 %v3468
  %v3693 = vunpack.c.l.b16 %v3469
  %v3694 = vunpack.c.l.b16 %v3470
  %v3695 = vunpack.c.l.b16 %v3471
  %v3696 = vunpack.c.l.b16 %v3472
  %v3697 = vunpack.c.l.b16 %v3473
  %v3698 = vunpack.c.l.b16 %v3474
  %v3699 = vunpack.c.l.b16 %v3475
  %v3700 = vunpack.c.l.b16 %v3476
  %v3701 = vunpack.c.l.b16 %v3477
  %v3702 = vunpack.c.l.b16 %v3478
  %v3703 = vunpack.c.l.b16 %v3479
  %v3704 = vunpack.c.l.b16 %v3480
  %v3705 = vunpack.c.l.b16 %v3481
  %v3706 = vunpack.c.l.b16 %v3482
  %v3707 = vunpack.c.l.b16 %v3483
  %v3708 = vunpack.c.l.b16 %v3484
  %v3709 = vunpack.c.l.b16 %v3485
  %v3710 = vunpack.c.l.b16 %v3486
  %v3711 = vunpack.c.l.b16 %v3487
  %v3712 = vunpack.c.l.b16 %v3488
  %v3713 = vunpack.c.l.b16 %v3489
  %v3714 = vunpack.c.l.b16 %v3490
  %v3715 = vunpack.c.l.b16 %v3491
  %v3716 = vunpack.c.l.b16 %v3492
  %v3717 = vunpack.c.l.b16 %v3493
  %v3718 = vunpack.c.l.b16 %v3494
  %v3719 = vunpack.c.l.b16 %v3495
  %v3720 = vunpack.c.l.b16 %v3496
  %v3721 = vunpack.c.l.b16 %v3497
  %v3722 = vunpack.c.l.b16 %v3498
  %v3723 = vunpack.c.l.b16 %v3499
  %v3724 = vunpack.c.l.b16 %v3500
  %v3725 = vunpack.c.l.b16 %v3501
  %v3726 = vunpack.c.l.b16 %v3502
  %v3727 = vunpack.c.l.b16 %v3503
  %v3728 = vunpack.c.l.b16 %v3504
  %v3729 = vunpack.c.l.b16 %v3505
  %v3730 = vunpack.c.l.b16 %v3506
  %v3731 = vunpack.c.l.b16 %v3507
  %v3732 = vunpack.c.l.b16 %v3508
  %v3733 = vunpack.c.l.b16 %v3509
  %v3734 = vunpack.c.l.b16 %v3510
  %v3735 = vunpack.c.l.b16 %v3511
  %v3736 = vunpack.c.l.b16 %v3512
  %v3737 = vunpack.c.l.b16 %v3513
  %v3738 = vunpack.c.l.b16 %v3514
  %v3739 = vunpack.c.l.b16 %v3515
  %v3740 = vunpack.c.l.b16 %v3516
  %v3741 = vunpack.c.l.b16 %v3517
  %v3742 = vunpack.c.l.b16 %v3518
  %v3743 = vunpack.c.l.b16 %v3519
  %v3744 = vunpack.c.l.b16 %v3520
  %v3745 = vunpack.c.l.b16 %v3521
  %v3746 = vunpack.c.l.b16 %v3522
  %v3747 = vunpack.c.l.b16 %v3523
  %v3748 = vunpack.c.l.b16 %v3524
  %v3749 = vunpack.c.l.b16 %v3525
  %v3750 = vunpack.c.l.b16 %v3526
  %v3751 = vunpack.c.l.b16 %v3527
  %v3752 = vunpack.c.l.b16 %v3528
  %v3753 = vunpack.c.l.b16 %v3529
  %v3754 = vunpack.c.l.b16 %v3530
  %v3755 = vunpack.c.l.b16 %v3531
  %v3756 = vunpack.c.l.b16 %v3532
  %v3757 = vunpack.c.l.b16 %v3533
  %v3758 = vunpack.c.l.b16 %v3534
  %v3759 = vunpack.c.l.b16 %v3535
  %v3760 = vunpack.c.l.b16 %v3536
  %v3761 = vunpack.c.l.b16 %v3537
  %v3762 = vunpack.c.l.b16 %v3538
  %v3763 = vunpack.c.l.b16 %v3539
  %v3764 = vpack.c.b16 %v3653, %v3652
  %v3765 = vpack.c.b16 %v3655, %v3654
  %v3766 = vpack.c.b16 %v3657, %v3656
  %v3767 = vpack.c.b16 %v3659, %v3658
  %v3768 = vpack.c.b16 %v3661, %v3660
  %v3769 = vpack.c.b16 %v3663, %v3662
  %v3770 = vpack.c.b16 %v3665, %v3664
  %v3771 = vpack.c.b16 %v3667, %v3666
  %v3772 = vpack.c.b16 %v3669, %v3668
  %v3773 = vpack.c.b16 %v3671, %v3670
  %v3774 = vpack.c.b16 %v3673, %v3672
  %v3775 = vpack.c.b16 %v3675, %v3674
  %v3776 = vpack.c.b16 %v3677, %v3676
  %v3777 = vpack.c.b16 %v3679, %v3678
  %v3778 = vpack.c.b16 %v3681, %v3680
  %v3779 = vpack.c.b16 %v3683, %v3682
  %v3780 = vpack.c.b16 %v3685, %v3684
  %v3781 = vpack.c.b16 %v3687, %v3686
  %v3782 = vpack.c.b16 %v3689, %v3688
  %v3783 = vpack.c.b16 %v3691, %v3690
  %v3784 = vpack.c.b16 %v3693, %v3692
  %v3785 = vpack.c.b16 %v3695, %v3694
  %v3786 = vpack.c.b16 %v3697, %v3696
  %v3787 = vpack.c.b16 %v3699, %v3698
  %v3788 = vpack.c.b16 %v3701, %v3700
  %v3789 = vpack.c.b16 %v3703, %v3702
  %v3790 = vpack.c.b16 %v3705, %v3704
  %v3791 = vpack.c.b16 %v3707, %v3706
  %v3792 = vpack.c.b16 %v3709, %v3708
  %v3793 = vpack.c.b16 %v3711, %v3710
  %v3794 = vpack.c.b16 %v3713, %v3712
  %v3795 = vpack.c.b16 %v3715, %v3714
  %v3796 = vpack.c.b16 %v3717, %v3716
  %v3797 = vpack.c.b16 %v3719, %v3718
  %v3798 = vpack.c.b16 %v3721, %v3720
  %v3799 = vpack.c.b16 %v3723, %v3722
  %v3800 = vpack.c.b16 %v3725, %v3724
  %v3801 = vpack.c.b16 %v3727, %v3726
  %v3802 = vpack.c.b16 %v3729, %v3728
  %v3803 = vpack.c.b16 %v3731, %v3730
  %v3804 = vpack.c.b16 %v3733, %v3732
  %v3805 = vpack.c.b16 %v3735, %v3734
  %v3806 = vpack.c.b16 %v3737, %v3736
  %v3807 = vpack.c.b16 %v3739, %v3738
  %v3808 = vpack.c.b16 %v3741, %v3740
  %v3809 = vpack.c.b16 %v3743, %v3742
  %v3810 = vpack.c.b16 %v3745, %v3744
  %v3811 = vpack.c.b16 %v3747, %v3746
  %v3812 = vpack.c.b16 %v3749, %v3748
  %v3813 = vpack.c.b16 %v3751, %v3750
  %v3814 = vpack.c.b16 %v3753, %v3752
  %v3815 = vpack.c.b16 %v3755, %v3754
  %v3816 = vpack.c.b16 %v3757, %v3756
  %v3817 = vpack.c.b16 %v3759, %v3758
  %v3818 = vpack.c.b16 %v3761, %v3760
  %v3819 = vpack.c.b16 %v3763, %v3762
  %3876 = vmatprep.subr.bf16.mxu0 0
  %3877 = vmatpush1.bf16.msra.mxu0 %v3771
  %3878 = vmatprep.subr.bf16.mxu0 0
  %3879 = vmatpush1.bf16.msra.mxu0 %v3770
  %3880 = vmatprep.subr.bf16.mxu0 0
  %3881 = vmatpush1.bf16.msra.mxu0 %v3769
  %3882 = vmatprep.subr.bf16.mxu0 0
  %3883 = vmatpush1.bf16.msra.mxu0 %v3768
  %3884 = vmatprep.subr.bf16.mxu0 0
  %3885 = vmatpush1.bf16.msra.mxu0 %v3767
  %3886 = vmatprep.subr.bf16.mxu0 0
  %3887 = vmatpush1.bf16.msra.mxu0 %v3766
  %3888 = vmatprep.subr.bf16.mxu0 0
  %3889 = vmatpush1.bf16.msra.mxu0 %v3765
  %3890 = vmatprep.subr.bf16.mxu0 0
  %3891 = vmatpush1.bf16.msra.mxu0 %v3764
  %3892 = vmatprep.subr.bf16.mxu0 0
  %3893 = vmatpush2.bf16.msra.mxu0 %v3779
  %3894 = vmatprep.subr.bf16.mxu0 0
  %3895 = vmatpush2.bf16.msra.mxu0 %v3778
  %3896 = vmatprep.subr.bf16.mxu0 0
  %3897 = vmatpush2.bf16.msra.mxu0 %v3777
  %3898 = vmatprep.subr.bf16.mxu0 0
  %3899 = vmatpush2.bf16.msra.mxu0 %v3776
  %3900 = vmatprep.subr.bf16.mxu0 0
  %3901 = vmatpush2.bf16.msra.mxu0 %v3775
  %3902 = vmatprep.subr.bf16.mxu0 0
  %3903 = vmatpush2.bf16.msra.mxu0 %v3774
  %3904 = vmatprep.subr.bf16.mxu0 0
  %3905 = vmatpush2.bf16.msra.mxu0 %v3773
  %3906 = vmatprep.subr.bf16.mxu0 0
  %3907 = vmatpush2.bf16.msra.mxu0 %v3772
  %3908 = vmatprep.mubr.bf16.mxu0 %v212
  %3909 = vmatmul.mubr.bf16.gmra.mxu0 %v211
  %v3910 = vpop.f32.mrf.mxu0
  %v3911 = vadd.f32 %v150, %v3910
  %v3912 = vpop.f32.mrf.mxu0
  %v3913 = vpop.f32.mrf.mxu0
  %v3914 = vadd.f32 %v155, %v3913
  %v3915 = vpop.f32.mrf.mxu0
  %3916 = vmatprep.mubr.bf16.mxu0 %v219
  %3917 = vmatmul.mubr.bf16.gmra.mxu0 %v218
  %v3918 = vpop.f32.mrf.mxu0
  %v3919 = vadd.f32 %v160, %v3918
  %v3920 = vpop.f32.mrf.mxu0
  %v3921 = vpop.f32.mrf.mxu0
  %v3922 = vadd.f32 %v165, %v3921
  %v3923 = vpop.f32.mrf.mxu0
  %3924 = vdwg.mxu0
  %3925 = vmatprep.subr.bf16.mxu0 0
  %3926 = vmatpush1.bf16.msra.mxu0 %v3787
  %3927 = vmatprep.subr.bf16.mxu0 0
  %3928 = vmatpush1.bf16.msra.mxu0 %v3786
  %3929 = vmatprep.subr.bf16.mxu0 0
  %3930 = vmatpush1.bf16.msra.mxu0 %v3785
  %3931 = vmatprep.subr.bf16.mxu0 0
  %3932 = vmatpush1.bf16.msra.mxu0 %v3784
  %3933 = vmatprep.subr.bf16.mxu0 0
  %3934 = vmatpush1.bf16.msra.mxu0 %v3783
  %3935 = vmatprep.subr.bf16.mxu0 0
  %3936 = vmatpush1.bf16.msra.mxu0 %v3782
  %3937 = vmatprep.subr.bf16.mxu0 0
  %3938 = vmatpush1.bf16.msra.mxu0 %v3781
  %3939 = vmatprep.subr.bf16.mxu0 0
  %3940 = vmatpush1.bf16.msra.mxu0 %v3780
  %3941 = vmatprep.subr.bf16.mxu0 0
  %3942 = vmatpush2.bf16.msra.mxu0 %v3795
  %3943 = vmatprep.subr.bf16.mxu0 0
  %3944 = vmatpush2.bf16.msra.mxu0 %v3794
  %3945 = vmatprep.subr.bf16.mxu0 0
  %3946 = vmatpush2.bf16.msra.mxu0 %v3793
  %3947 = vmatprep.subr.bf16.mxu0 0
  %3948 = vmatpush2.bf16.msra.mxu0 %v3792
  %3949 = vmatprep.subr.bf16.mxu0 0
  %3950 = vmatpush2.bf16.msra.mxu0 %v3791
  %3951 = vmatprep.subr.bf16.mxu0 0
  %3952 = vmatpush2.bf16.msra.mxu0 %v3790
  %3953 = vmatprep.subr.bf16.mxu0 0
  %3954 = vmatpush2.bf16.msra.mxu0 %v3789
  %3955 = vmatprep.subr.bf16.mxu0 0
  %3956 = vmatpush2.bf16.msra.mxu0 %v3788
  %3957 = vmatprep.mubr.bf16.mxu0 %v214
  %3958 = vmatmul.mubr.bf16.gmra.mxu0 %v213
  %v3959 = vpop.f32.mrf.mxu0
  %v3960 = vadd.f32 %v3911, %v3959
  %v3961 = vpop.f32.mrf.mxu0
  %v3962 = vpop.f32.mrf.mxu0
  %v3963 = vadd.f32 %v3914, %v3962
  %v3964 = vpop.f32.mrf.mxu0
  %3965 = vmatprep.mubr.bf16.mxu0 %v221
  %3966 = vmatmul.mubr.bf16.gmra.mxu0 %v220
  %v3967 = vpop.f32.mrf.mxu0
  %v3968 = vadd.f32 %v3919, %v3967
  %v3969 = vpop.f32.mrf.mxu0
  %v3970 = vpop.f32.mrf.mxu0
  %v3971 = vadd.f32 %v3922, %v3970
  %v3972 = vpop.f32.mrf.mxu0
  %3973 = vdwg.mxu0
  %3974 = vmatprep.subr.bf16.mxu0 0
  %3975 = vmatpush1.bf16.msra.mxu0 %v3803
  %3976 = vmatprep.subr.bf16.mxu0 0
  %3977 = vmatpush1.bf16.msra.mxu0 %v3802
  %3978 = vmatprep.subr.bf16.mxu0 0
  %3979 = vmatpush1.bf16.msra.mxu0 %v3801
  %3980 = vmatprep.subr.bf16.mxu0 0
  %3981 = vmatpush1.bf16.msra.mxu0 %v3800
  %3982 = vmatprep.subr.bf16.mxu0 0
  %3983 = vmatpush1.bf16.msra.mxu0 %v3799
  %3984 = vmatprep.subr.bf16.mxu0 0
  %3985 = vmatpush1.bf16.msra.mxu0 %v3798
  %3986 = vmatprep.subr.bf16.mxu0 0
  %3987 = vmatpush1.bf16.msra.mxu0 %v3797
  %3988 = vmatprep.subr.bf16.mxu0 0
  %3989 = vmatpush1.bf16.msra.mxu0 %v3796
  %3990 = vmatprep.subr.bf16.mxu0 0
  %3991 = vmatpush2.bf16.msra.mxu0 %v3811
  %3992 = vmatprep.subr.bf16.mxu0 0
  %3993 = vmatpush2.bf16.msra.mxu0 %v3810
  %3994 = vmatprep.subr.bf16.mxu0 0
  %3995 = vmatpush2.bf16.msra.mxu0 %v3809
  %3996 = vmatprep.subr.bf16.mxu0 0
  %3997 = vmatpush2.bf16.msra.mxu0 %v3808
  %3998 = vmatprep.subr.bf16.mxu0 0
  %3999 = vmatpush2.bf16.msra.mxu0 %v3807
  %4000 = vmatprep.subr.bf16.mxu0 0
  %4001 = vmatpush2.bf16.msra.mxu0 %v3806
  %4002 = vmatprep.subr.bf16.mxu0 0
  %4003 = vmatpush2.bf16.msra.mxu0 %v3805
  %4004 = vmatprep.subr.bf16.mxu0 0
  %4005 = vmatpush2.bf16.msra.mxu0 %v3804
  %4006 = vmatprep.mubr.bf16.mxu0 %v216
  %4007 = vmatmul.mubr.bf16.gmra.mxu0 %v215
  %v4008 = vpop.f32.mrf.mxu0
  %v4009 = vadd.f32 %v3960, %v4008
  %v4010 = vpop.f32.mrf.mxu0
  %v4011 = vpop.f32.mrf.mxu0
  %v4012 = vadd.f32 %v3963, %v4011
  %v4013 = vpop.f32.mrf.mxu0
  %4014 = vmatprep.mubr.bf16.mxu0 %v223
  %4015 = vmatmul.mubr.bf16.gmra.mxu0 %v222
  %v4016 = vpop.f32.mrf.mxu0
  %v4017 = vadd.f32 %v3968, %v4016
  %v4018 = vpop.f32.mrf.mxu0
  %v4019 = vpop.f32.mrf.mxu0
  %v4020 = vadd.f32 %v3971, %v4019
  %v4021 = vpop.f32.mrf.mxu0
  %4022 = vdwg.mxu0
  %4023 = vmatprep.subr.bf16.mxu0 0
  %4024 = vmatpush1.bf16.msra.mxu0 %v3819
  %4025 = vmatprep.subr.bf16.mxu0 0
  %4026 = vmatpush1.bf16.msra.mxu0 %v3818
  %4027 = vmatprep.subr.bf16.mxu0 0
  %4028 = vmatpush1.bf16.msra.mxu0 %v3817
  %4029 = vmatprep.subr.bf16.mxu0 0
  %4030 = vmatpush1.bf16.msra.mxu0 %v3816
  %4031 = vmatprep.subr.bf16.mxu0 0
  %4032 = vmatpush1.bf16.msra.mxu0 %v3815
  %4033 = vmatprep.subr.bf16.mxu0 0
  %4034 = vmatpush1.bf16.msra.mxu0 %v3814
  %4035 = vmatprep.subr.bf16.mxu0 0
  %4036 = vmatpush1.bf16.msra.mxu0 %v3813
  %4037 = vmatprep.subr.bf16.mxu0 0
  %4038 = vmatpush1.bf16.msra.mxu0 %v3812
  %4039 = vmatprep.subr.bf16.mxu0 0
  %4040 = vmatpush2.bf16.msra.mxu0 0
  %4041 = vmatprep.subr.bf16.mxu0 0
  %4042 = vmatpush2.bf16.msra.mxu0 0
  %4043 = vmatprep.subr.bf16.mxu0 0
  %4044 = vmatpush2.bf16.msra.mxu0 0
  %4045 = vmatprep.subr.bf16.mxu0 0
  %4046 = vmatpush2.bf16.msra.mxu0 0
  %4047 = vmatprep.subr.bf16.mxu0 0
  %4048 = vmatpush2.bf16.msra.mxu0 0
  %4049 = vmatprep.subr.bf16.mxu0 0
  %4050 = vmatpush2.bf16.msra.mxu0 0
  %4051 = vmatprep.subr.bf16.mxu0 0
  %4052 = vmatpush2.bf16.msra.mxu0 0
  %4053 = vmatprep.subr.bf16.mxu0 0
  %4054 = vmatpush2.bf16.msra.mxu0 0
  %4055 = vmatprep.mubr.bf16.mxu0 0
  %4056 = vmatmul.mubr.bf16.gmra.mxu0 %v217
  %v4057 = vpop.f32.mrf.mxu0
  %v4058 = vadd.f32 %v4009, %v4057
  %v4059 = vpop.f32.mrf.mxu0
  %v4060 = vpop.f32.mrf.mxu0
  %v4061 = vadd.f32 %v4012, %v4060
  %v4062 = vpop.f32.mrf.mxu0
  %4063 = vmatprep.mubr.bf16.mxu0 0
  %4064 = vmatmul.mubr.bf16.gmra.mxu0 %v224
  %v4065 = vpop.f32.mrf.mxu0
  %v4066 = vadd.f32 %v4017, %v4065
  %v4067 = vpop.f32.mrf.mxu0
  %v4068 = vpop.f32.mrf.mxu0
  %v4069 = vadd.f32 %v4020, %v4068
  %v4070 = vpop.f32.mrf.mxu0
  %4071 = vdwg.mxu0
  %vm4072 = vcmp.ge.f32.partialorder %v4058, 0.0
  %vm4073 = vcmp.ge.f32.partialorder %v4061, 0.0
  %vm4074 = vcmp.ge.f32.partialorder %v4066, 0.0
  %vm4075 = vcmp.ge.f32.partialorder %v4069, 0.0
  %v4076 = vmul.f32 %v4058, 0.01
  %v4077 = vmul.f32 %v4061, 0.01
  %v4078 = vmul.f32 %v4066, 0.01
  %v4079 = vmul.f32 %v4069, 0.01
  %v4080 = vsel %vm4072, %v4058, %v4076
  %v4081 = vsel %vm4073, %v4061, %v4077
  %v4082 = vsel %vm4074, %v4066, %v4078
  %v4083 = vsel %vm4075, %v4069, %v4079
  %v4084 = vmax.f32 %v3423, %v4080
  %v4085 = vmax.f32 %v3424, %v4081
  %v4086 = vmax.f32 %v3425, %v4082
  %v4087 = vmax.f32 %v3426, %v4083
  %s4088 = scalar_lea.vmem %s2, 2688
  %v4089 = vld [vmem:[%s4088] sm:$0xf]
  %v4090 = vld [vmem:[%s4088 + $0x4] sm:$0xf]
  %v4091 = vld [vmem:[%s4088 + $0x8] sm:$0xf]
  %v4092 = vld [vmem:[%s4088 + $0xc] sm:$0xf]
  %v4093 = vld [vmem:[%s4088 + $0x10] sm:$0xf]
  %v4094 = vld [vmem:[%s4088 + $0x14] sm:$0xf]
  %v4095 = vld [vmem:[%s4088 + $0x18] sm:$0xf]
  %v4096 = vld [vmem:[%s4088 + $0x1c] sm:$0xf]
  %v4097 = vld [vmem:[%s4088 + $0x20] sm:$0xf]
  %v4098 = vld [vmem:[%s4088 + $0x24] sm:$0xf]
  %v4099 = vld [vmem:[%s4088 + $0x28] sm:$0xf]
  %v4100 = vld [vmem:[%s4088 + $0x2c] sm:$0xf]
  %v4101 = vld [vmem:[%s4088 + $0x30] sm:$0xf]
  %v4102 = vld [vmem:[%s4088 + $0x34] sm:$0xf]
  %v4103 = vld [vmem:[%s4088 + $0x38] sm:$0xf]
  %v4104 = vld [vmem:[%s4088 + $0x3c] sm:$0xf]
  %v4105 = vld [vmem:[%s4088 + $0x40] sm:$0xf]
  %v4106 = vld [vmem:[%s4088 + $0x44] sm:$0xf]
  %v4107 = vld [vmem:[%s4088 + $0x48] sm:$0xf]
  %v4108 = vld [vmem:[%s4088 + $0x4c] sm:$0xf]
  %v4109 = vld [vmem:[%s4088 + $0x50] sm:$0xf]
  %v4110 = vld [vmem:[%s4088 + $0x54] sm:$0xf]
  %v4111 = vld [vmem:[%s4088 + $0x58] sm:$0xf]
  %v4112 = vld [vmem:[%s4088 + $0x5c] sm:$0xf]
  %v4113 = vld [vmem:[%s4088 + $0x60] sm:$0xf]
  %v4114 = vld [vmem:[%s4088 + $0x64] sm:$0xf]
  %v4115 = vld [vmem:[%s4088 + $0x68] sm:$0xf]
  %v4116 = vld [vmem:[%s4088 + $0x6c] sm:$0xf]
  %v4117 = vld [vmem:[%s4088 + $0x70] sm:$0xf]
  %v4118 = vld [vmem:[%s4088 + $0x74] sm:$0xf]
  %v4119 = vld [vmem:[%s4088 + $0x78] sm:$0xf]
  %v4120 = vld [vmem:[%s4088 + $0x7c] sm:$0xf]
  %v4121 = vld [vmem:[%s4088 + $0x80] sm:$0xf]
  %v4122 = vld [vmem:[%s4088 + $0x84] sm:$0xf]
  %v4123 = vld [vmem:[%s4088 + $0x88] sm:$0xf]
  %v4124 = vld [vmem:[%s4088 + $0x8c] sm:$0xf]
  %v4125 = vld [vmem:[%s4088 + $0x90] sm:$0xf]
  %v4126 = vld [vmem:[%s4088 + $0x94] sm:$0xf]
  %v4127 = vld [vmem:[%s4088 + $0x98] sm:$0xf]
  %v4128 = vld [vmem:[%s4088 + $0x9c] sm:$0xf]
  %v4129 = vld [vmem:[%s4088 + $0xa0] sm:$0xf]
  %v4130 = vld [vmem:[%s4088 + $0xa4] sm:$0xf]
  %v4131 = vld [vmem:[%s4088 + $0xa8] sm:$0xf]
  %v4132 = vld [vmem:[%s4088 + $0xac] sm:$0xf]
  %v4133 = vld [vmem:[%s4088 + $0xb0] sm:$0xf]
  %v4134 = vld [vmem:[%s4088 + $0xb4] sm:$0xf]
  %v4135 = vld [vmem:[%s4088 + $0xb8] sm:$0xf]
  %v4136 = vld [vmem:[%s4088 + $0xbc] sm:$0xf]
  %v4137 = vld [vmem:[%s4088 + $0xc0] sm:$0xf]
  %v4138 = vld [vmem:[%s4088 + $0xc4] sm:$0xf]
  %v4139 = vld [vmem:[%s4088 + $0xc8] sm:$0xf]
  %v4140 = vld [vmem:[%s4088 + $0xcc] sm:$0xf]
  %v4141 = vld [vmem:[%s4088 + $0xd0] sm:$0xf]
  %v4142 = vld [vmem:[%s4088 + $0xd4] sm:$0xf]
  %v4143 = vld [vmem:[%s4088 + $0xd8] sm:$0xf]
  %v4144 = vld [vmem:[%s4088 + $0xdc] sm:$0xf]
  %v4145 = vld [vmem:[%s4088 + $0xe0] sm:$0xf]
  %v4146 = vld [vmem:[%s4088 + $0xe4] sm:$0xf]
  %v4147 = vld [vmem:[%s4088 + $0xe8] sm:$0xf]
  %v4148 = vld [vmem:[%s4088 + $0xec] sm:$0xf]
  %v4149 = vld [vmem:[%s4088 + $0xf0] sm:$0xf]
  %v4150 = vld [vmem:[%s4088 + $0xf4] sm:$0xf]
  %v4151 = vld [vmem:[%s4088 + $0xf8] sm:$0xf]
  %v4152 = vld [vmem:[%s4088 + $0xfc] sm:$0xf]
  %v4153 = vld [vmem:[%s4088 + $0x100] sm:$0xf]
  %v4154 = vld [vmem:[%s4088 + $0x104] sm:$0xf]
  %v4155 = vld [vmem:[%s4088 + $0x108] sm:$0xf]
  %v4156 = vld [vmem:[%s4088 + $0x10c] sm:$0xf]
  %v4157 = vld [vmem:[%s4088 + $0x110] sm:$0xf]
  %v4158 = vld [vmem:[%s4088 + $0x114] sm:$0xf]
  %v4159 = vld [vmem:[%s4088 + $0x118] sm:$0xf]
  %v4160 = vld [vmem:[%s4088 + $0x11c] sm:$0xf]
  %v4161 = vld [vmem:[%s4088 + $0x120] sm:$0xf]
  %v4162 = vld [vmem:[%s4088 + $0x124] sm:$0xf]
  %v4163 = vld [vmem:[%s4088 + $0x128] sm:$0xf]
  %v4164 = vld [vmem:[%s4088 + $0x12c] sm:$0xf]
  %v4165 = vld [vmem:[%s4088 + $0x130] sm:$0xf]
  %v4166 = vld [vmem:[%s4088 + $0x134] sm:$0xf]
  %v4167 = vld [vmem:[%s4088 + $0x138] sm:$0xf]
  %v4168 = vld [vmem:[%s4088 + $0x13c] sm:$0xf]
  %v4169 = vld [vmem:[%s4088 + $0x140] sm:$0xf]
  %v4170 = vld [vmem:[%s4088 + $0x144] sm:$0xf]
  %v4171 = vld [vmem:[%s4088 + $0x148] sm:$0xf]
  %v4172 = vld [vmem:[%s4088 + $0x14c] sm:$0xf]
  %v4173 = vld [vmem:[%s4088 + $0x150] sm:$0xf]
  %v4174 = vld [vmem:[%s4088 + $0x154] sm:$0xf]
  %v4175 = vld [vmem:[%s4088 + $0x158] sm:$0xf]
  %v4176 = vld [vmem:[%s4088 + $0x15c] sm:$0xf]
  %v4177 = vld [vmem:[%s4088 + $0x160] sm:$0xf]
  %v4178 = vld [vmem:[%s4088 + $0x164] sm:$0xf]
  %v4179 = vld [vmem:[%s4088 + $0x168] sm:$0xf]
  %v4180 = vld [vmem:[%s4088 + $0x16c] sm:$0xf]
  %v4181 = vld [vmem:[%s4088 + $0x170] sm:$0xf]
  %v4182 = vld [vmem:[%s4088 + $0x174] sm:$0xf]
  %v4183 = vld [vmem:[%s4088 + $0x178] sm:$0xf]
  %v4184 = vld [vmem:[%s4088 + $0x17c] sm:$0xf]
  %v4185 = vld [vmem:[%s4088 + $0x180] sm:$0xf]
  %v4186 = vld [vmem:[%s4088 + $0x184] sm:$0xf]
  %v4187 = vld [vmem:[%s4088 + $0x188] sm:$0xf]
  %v4188 = vld [vmem:[%s4088 + $0x18c] sm:$0xf]
  %v4189 = vld [vmem:[%s4088 + $0x190] sm:$0xf]
  %v4190 = vld [vmem:[%s4088 + $0x194] sm:$0xf]
  %v4191 = vld [vmem:[%s4088 + $0x198] sm:$0xf]
  %v4192 = vld [vmem:[%s4088 + $0x19c] sm:$0xf]
  %v4193 = vld [vmem:[%s4088 + $0x1a0] sm:$0xf]
  %v4194 = vld [vmem:[%s4088 + $0x1a4] sm:$0xf]
  %v4195 = vld [vmem:[%s4088 + $0x1a8] sm:$0xf]
  %v4196 = vld [vmem:[%s4088 + $0x1ac] sm:$0xf]
  %v4197 = vld [vmem:[%s4088 + $0x1b0] sm:$0xf]
  %v4198 = vld [vmem:[%s4088 + $0x1b4] sm:$0xf]
  %v4199 = vld [vmem:[%s4088 + $0x1b8] sm:$0xf]
  %v4200 = vld [vmem:[%s4088 + $0x1bc] sm:$0xf]
  %v4313 = vunpack.c.l.b16 %v4089
  %v4314 = vunpack.c.l.b16 %v4090
  %v4315 = vunpack.c.l.b16 %v4091
  %v4316 = vunpack.c.l.b16 %v4092
  %v4317 = vunpack.c.l.b16 %v4093
  %v4318 = vunpack.c.l.b16 %v4094
  %v4319 = vunpack.c.l.b16 %v4095
  %v4320 = vunpack.c.l.b16 %v4096
  %v4321 = vunpack.c.l.b16 %v4097
  %v4322 = vunpack.c.l.b16 %v4098
  %v4323 = vunpack.c.l.b16 %v4099
  %v4324 = vunpack.c.l.b16 %v4100
  %v4325 = vunpack.c.l.b16 %v4101
  %v4326 = vunpack.c.l.b16 %v4102
  %v4327 = vunpack.c.l.b16 %v4103
  %v4328 = vunpack.c.l.b16 %v4104
  %v4329 = vunpack.c.l.b16 %v4105
  %v4330 = vunpack.c.l.b16 %v4106
  %v4331 = vunpack.c.l.b16 %v4107
  %v4332 = vunpack.c.l.b16 %v4108
  %v4333 = vunpack.c.l.b16 %v4109
  %v4334 = vunpack.c.l.b16 %v4110
  %v4335 = vunpack.c.l.b16 %v4111
  %v4336 = vunpack.c.l.b16 %v4112
  %v4337 = vunpack.c.l.b16 %v4113
  %v4338 = vunpack.c.l.b16 %v4114
  %v4339 = vunpack.c.l.b16 %v4115
  %v4340 = vunpack.c.l.b16 %v4116
  %v4341 = vunpack.c.l.b16 %v4117
  %v4342 = vunpack.c.l.b16 %v4118
  %v4343 = vunpack.c.l.b16 %v4119
  %v4344 = vunpack.c.l.b16 %v4120
  %v4345 = vunpack.c.l.b16 %v4121
  %v4346 = vunpack.c.l.b16 %v4122
  %v4347 = vunpack.c.l.b16 %v4123
  %v4348 = vunpack.c.l.b16 %v4124
  %v4349 = vunpack.c.l.b16 %v4125
  %v4350 = vunpack.c.l.b16 %v4126
  %v4351 = vunpack.c.l.b16 %v4127
  %v4352 = vunpack.c.l.b16 %v4128
  %v4353 = vunpack.c.l.b16 %v4129
  %v4354 = vunpack.c.l.b16 %v4130
  %v4355 = vunpack.c.l.b16 %v4131
  %v4356 = vunpack.c.l.b16 %v4132
  %v4357 = vunpack.c.l.b16 %v4133
  %v4358 = vunpack.c.l.b16 %v4134
  %v4359 = vunpack.c.l.b16 %v4135
  %v4360 = vunpack.c.l.b16 %v4136
  %v4361 = vunpack.c.l.b16 %v4137
  %v4362 = vunpack.c.l.b16 %v4138
  %v4363 = vunpack.c.l.b16 %v4139
  %v4364 = vunpack.c.l.b16 %v4140
  %v4365 = vunpack.c.l.b16 %v4141
  %v4366 = vunpack.c.l.b16 %v4142
  %v4367 = vunpack.c.l.b16 %v4143
  %v4368 = vunpack.c.l.b16 %v4144
  %v4369 = vunpack.c.l.b16 %v4145
  %v4370 = vunpack.c.l.b16 %v4146
  %v4371 = vunpack.c.l.b16 %v4147
  %v4372 = vunpack.c.l.b16 %v4148
  %v4373 = vunpack.c.l.b16 %v4149
  %v4374 = vunpack.c.l.b16 %v4150
  %v4375 = vunpack.c.l.b16 %v4151
  %v4376 = vunpack.c.l.b16 %v4152
  %v4377 = vunpack.c.l.b16 %v4153
  %v4378 = vunpack.c.l.b16 %v4154
  %v4379 = vunpack.c.l.b16 %v4155
  %v4380 = vunpack.c.l.b16 %v4156
  %v4381 = vunpack.c.l.b16 %v4157
  %v4382 = vunpack.c.l.b16 %v4158
  %v4383 = vunpack.c.l.b16 %v4159
  %v4384 = vunpack.c.l.b16 %v4160
  %v4385 = vunpack.c.l.b16 %v4161
  %v4386 = vunpack.c.l.b16 %v4162
  %v4387 = vunpack.c.l.b16 %v4163
  %v4388 = vunpack.c.l.b16 %v4164
  %v4389 = vunpack.c.l.b16 %v4165
  %v4390 = vunpack.c.l.b16 %v4166
  %v4391 = vunpack.c.l.b16 %v4167
  %v4392 = vunpack.c.l.b16 %v4168
  %v4393 = vunpack.c.l.b16 %v4169
  %v4394 = vunpack.c.l.b16 %v4170
  %v4395 = vunpack.c.l.b16 %v4171
  %v4396 = vunpack.c.l.b16 %v4172
  %v4397 = vunpack.c.l.b16 %v4173
  %v4398 = vunpack.c.l.b16 %v4174
  %v4399 = vunpack.c.l.b16 %v4175
  %v4400 = vunpack.c.l.b16 %v4176
  %v4401 = vunpack.c.l.b16 %v4177
  %v4402 = vunpack.c.l.b16 %v4178
  %v4403 = vunpack.c.l.b16 %v4179
  %v4404 = vunpack.c.l.b16 %v4180
  %v4405 = vunpack.c.l.b16 %v4181
  %v4406 = vunpack.c.l.b16 %v4182
  %v4407 = vunpack.c.l.b16 %v4183
  %v4408 = vunpack.c.l.b16 %v4184
  %v4409 = vunpack.c.l.b16 %v4185
  %v4410 = vunpack.c.l.b16 %v4186
  %v4411 = vunpack.c.l.b16 %v4187
  %v4412 = vunpack.c.l.b16 %v4188
  %v4413 = vunpack.c.l.b16 %v4189
  %v4414 = vunpack.c.l.b16 %v4190
  %v4415 = vunpack.c.l.b16 %v4191
  %v4416 = vunpack.c.l.b16 %v4192
  %v4417 = vunpack.c.l.b16 %v4193
  %v4418 = vunpack.c.l.b16 %v4194
  %v4419 = vunpack.c.l.b16 %v4195
  %v4420 = vunpack.c.l.b16 %v4196
  %v4421 = vunpack.c.l.b16 %v4197
  %v4422 = vunpack.c.l.b16 %v4198
  %v4423 = vunpack.c.l.b16 %v4199
  %v4424 = vunpack.c.l.b16 %v4200
  %v4425 = vpack.c.b16 %v4314, %v4313
  %v4426 = vpack.c.b16 %v4316, %v4315
  %v4427 = vpack.c.b16 %v4318, %v4317
  %v4428 = vpack.c.b16 %v4320, %v4319
  %v4429 = vpack.c.b16 %v4322, %v4321
  %v4430 = vpack.c.b16 %v4324, %v4323
  %v4431 = vpack.c.b16 %v4326, %v4325
  %v4432 = vpack.c.b16 %v4328, %v4327
  %v4433 = vpack.c.b16 %v4330, %v4329
  %v4434 = vpack.c.b16 %v4332, %v4331
  %v4435 = vpack.c.b16 %v4334, %v4333
  %v4436 = vpack.c.b16 %v4336, %v4335
  %v4437 = vpack.c.b16 %v4338, %v4337
  %v4438 = vpack.c.b16 %v4340, %v4339
  %v4439 = vpack.c.b16 %v4342, %v4341
  %v4440 = vpack.c.b16 %v4344, %v4343
  %v4441 = vpack.c.b16 %v4346, %v4345
  %v4442 = vpack.c.b16 %v4348, %v4347
  %v4443 = vpack.c.b16 %v4350, %v4349
  %v4444 = vpack.c.b16 %v4352, %v4351
  %v4445 = vpack.c.b16 %v4354, %v4353
  %v4446 = vpack.c.b16 %v4356, %v4355
  %v4447 = vpack.c.b16 %v4358, %v4357
  %v4448 = vpack.c.b16 %v4360, %v4359
  %v4449 = vpack.c.b16 %v4362, %v4361
  %v4450 = vpack.c.b16 %v4364, %v4363
  %v4451 = vpack.c.b16 %v4366, %v4365
  %v4452 = vpack.c.b16 %v4368, %v4367
  %v4453 = vpack.c.b16 %v4370, %v4369
  %v4454 = vpack.c.b16 %v4372, %v4371
  %v4455 = vpack.c.b16 %v4374, %v4373
  %v4456 = vpack.c.b16 %v4376, %v4375
  %v4457 = vpack.c.b16 %v4378, %v4377
  %v4458 = vpack.c.b16 %v4380, %v4379
  %v4459 = vpack.c.b16 %v4382, %v4381
  %v4460 = vpack.c.b16 %v4384, %v4383
  %v4461 = vpack.c.b16 %v4386, %v4385
  %v4462 = vpack.c.b16 %v4388, %v4387
  %v4463 = vpack.c.b16 %v4390, %v4389
  %v4464 = vpack.c.b16 %v4392, %v4391
  %v4465 = vpack.c.b16 %v4394, %v4393
  %v4466 = vpack.c.b16 %v4396, %v4395
  %v4467 = vpack.c.b16 %v4398, %v4397
  %v4468 = vpack.c.b16 %v4400, %v4399
  %v4469 = vpack.c.b16 %v4402, %v4401
  %v4470 = vpack.c.b16 %v4404, %v4403
  %v4471 = vpack.c.b16 %v4406, %v4405
  %v4472 = vpack.c.b16 %v4408, %v4407
  %v4473 = vpack.c.b16 %v4410, %v4409
  %v4474 = vpack.c.b16 %v4412, %v4411
  %v4475 = vpack.c.b16 %v4414, %v4413
  %v4476 = vpack.c.b16 %v4416, %v4415
  %v4477 = vpack.c.b16 %v4418, %v4417
  %v4478 = vpack.c.b16 %v4420, %v4419
  %v4479 = vpack.c.b16 %v4422, %v4421
  %v4480 = vpack.c.b16 %v4424, %v4423
  %4537 = vmatprep.subr.bf16.mxu0 0
  %4538 = vmatpush1.bf16.msra.mxu0 %v4432
  %4539 = vmatprep.subr.bf16.mxu0 0
  %4540 = vmatpush1.bf16.msra.mxu0 %v4431
  %4541 = vmatprep.subr.bf16.mxu0 0
  %4542 = vmatpush1.bf16.msra.mxu0 %v4430
  %4543 = vmatprep.subr.bf16.mxu0 0
  %4544 = vmatpush1.bf16.msra.mxu0 %v4429
  %4545 = vmatprep.subr.bf16.mxu0 0
  %4546 = vmatpush1.bf16.msra.mxu0 %v4428
  %4547 = vmatprep.subr.bf16.mxu0 0
  %4548 = vmatpush1.bf16.msra.mxu0 %v4427
  %4549 = vmatprep.subr.bf16.mxu0 0
  %4550 = vmatpush1.bf16.msra.mxu0 %v4426
  %4551 = vmatprep.subr.bf16.mxu0 0
  %4552 = vmatpush1.bf16.msra.mxu0 %v4425
  %4553 = vmatprep.subr.bf16.mxu0 0
  %4554 = vmatpush2.bf16.msra.mxu0 %v4440
  %4555 = vmatprep.subr.bf16.mxu0 0
  %4556 = vmatpush2.bf16.msra.mxu0 %v4439
  %4557 = vmatprep.subr.bf16.mxu0 0
  %4558 = vmatpush2.bf16.msra.mxu0 %v4438
  %4559 = vmatprep.subr.bf16.mxu0 0
  %4560 = vmatpush2.bf16.msra.mxu0 %v4437
  %4561 = vmatprep.subr.bf16.mxu0 0
  %4562 = vmatpush2.bf16.msra.mxu0 %v4436
  %4563 = vmatprep.subr.bf16.mxu0 0
  %4564 = vmatpush2.bf16.msra.mxu0 %v4435
  %4565 = vmatprep.subr.bf16.mxu0 0
  %4566 = vmatpush2.bf16.msra.mxu0 %v4434
  %4567 = vmatprep.subr.bf16.mxu0 0
  %4568 = vmatpush2.bf16.msra.mxu0 %v4433
  %4569 = vmatprep.mubr.bf16.mxu0 %v212
  %4570 = vmatmul.mubr.bf16.gmra.mxu0 %v211
  %v4571 = vpop.f32.mrf.mxu0
  %v4572 = vadd.f32 %v150, %v4571
  %v4573 = vpop.f32.mrf.mxu0
  %v4574 = vpop.f32.mrf.mxu0
  %v4575 = vadd.f32 %v155, %v4574
  %v4576 = vpop.f32.mrf.mxu0
  %4577 = vmatprep.mubr.bf16.mxu0 %v219
  %4578 = vmatmul.mubr.bf16.gmra.mxu0 %v218
  %v4579 = vpop.f32.mrf.mxu0
  %v4580 = vadd.f32 %v160, %v4579
  %v4581 = vpop.f32.mrf.mxu0
  %v4582 = vpop.f32.mrf.mxu0
  %v4583 = vadd.f32 %v165, %v4582
  %v4584 = vpop.f32.mrf.mxu0
  %4585 = vdwg.mxu0
  %4586 = vmatprep.subr.bf16.mxu0 0
  %4587 = vmatpush1.bf16.msra.mxu0 %v4448
  %4588 = vmatprep.subr.bf16.mxu0 0
  %4589 = vmatpush1.bf16.msra.mxu0 %v4447
  %4590 = vmatprep.subr.bf16.mxu0 0
  %4591 = vmatpush1.bf16.msra.mxu0 %v4446
  %4592 = vmatprep.subr.bf16.mxu0 0
  %4593 = vmatpush1.bf16.msra.mxu0 %v4445
  %4594 = vmatprep.subr.bf16.mxu0 0
  %4595 = vmatpush1.bf16.msra.mxu0 %v4444
  %4596 = vmatprep.subr.bf16.mxu0 0
  %4597 = vmatpush1.bf16.msra.mxu0 %v4443
  %4598 = vmatprep.subr.bf16.mxu0 0
  %4599 = vmatpush1.bf16.msra.mxu0 %v4442
  %4600 = vmatprep.subr.bf16.mxu0 0
  %4601 = vmatpush1.bf16.msra.mxu0 %v4441
  %4602 = vmatprep.subr.bf16.mxu0 0
  %4603 = vmatpush2.bf16.msra.mxu0 %v4456
  %4604 = vmatprep.subr.bf16.mxu0 0
  %4605 = vmatpush2.bf16.msra.mxu0 %v4455
  %4606 = vmatprep.subr.bf16.mxu0 0
  %4607 = vmatpush2.bf16.msra.mxu0 %v4454
  %4608 = vmatprep.subr.bf16.mxu0 0
  %4609 = vmatpush2.bf16.msra.mxu0 %v4453
  %4610 = vmatprep.subr.bf16.mxu0 0
  %4611 = vmatpush2.bf16.msra.mxu0 %v4452
  %4612 = vmatprep.subr.bf16.mxu0 0
  %4613 = vmatpush2.bf16.msra.mxu0 %v4451
  %4614 = vmatprep.subr.bf16.mxu0 0
  %4615 = vmatpush2.bf16.msra.mxu0 %v4450
  %4616 = vmatprep.subr.bf16.mxu0 0
  %4617 = vmatpush2.bf16.msra.mxu0 %v4449
  %4618 = vmatprep.mubr.bf16.mxu0 %v214
  %4619 = vmatmul.mubr.bf16.gmra.mxu0 %v213
  %v4620 = vpop.f32.mrf.mxu0
  %v4621 = vadd.f32 %v4572, %v4620
  %v4622 = vpop.f32.mrf.mxu0
  %v4623 = vpop.f32.mrf.mxu0
  %v4624 = vadd.f32 %v4575, %v4623
  %v4625 = vpop.f32.mrf.mxu0
  %4626 = vmatprep.mubr.bf16.mxu0 %v221
  %4627 = vmatmul.mubr.bf16.gmra.mxu0 %v220
  %v4628 = vpop.f32.mrf.mxu0
  %v4629 = vadd.f32 %v4580, %v4628
  %v4630 = vpop.f32.mrf.mxu0
  %v4631 = vpop.f32.mrf.mxu0
  %v4632 = vadd.f32 %v4583, %v4631
  %v4633 = vpop.f32.mrf.mxu0
  %4634 = vdwg.mxu0
  %4635 = vmatprep.subr.bf16.mxu0 0
  %4636 = vmatpush1.bf16.msra.mxu0 %v4464
  %4637 = vmatprep.subr.bf16.mxu0 0
  %4638 = vmatpush1.bf16.msra.mxu0 %v4463
  %4639 = vmatprep.subr.bf16.mxu0 0
  %4640 = vmatpush1.bf16.msra.mxu0 %v4462
  %4641 = vmatprep.subr.bf16.mxu0 0
  %4642 = vmatpush1.bf16.msra.mxu0 %v4461
  %4643 = vmatprep.subr.bf16.mxu0 0
  %4644 = vmatpush1.bf16.msra.mxu0 %v4460
  %4645 = vmatprep.subr.bf16.mxu0 0
  %4646 = vmatpush1.bf16.msra.mxu0 %v4459
  %4647 = vmatprep.subr.bf16.mxu0 0
  %4648 = vmatpush1.bf16.msra.mxu0 %v4458
  %4649 = vmatprep.subr.bf16.mxu0 0
  %4650 = vmatpush1.bf16.msra.mxu0 %v4457
  %4651 = vmatprep.subr.bf16.mxu0 0
  %4652 = vmatpush2.bf16.msra.mxu0 %v4472
  %4653 = vmatprep.subr.bf16.mxu0 0
  %4654 = vmatpush2.bf16.msra.mxu0 %v4471
  %4655 = vmatprep.subr.bf16.mxu0 0
  %4656 = vmatpush2.bf16.msra.mxu0 %v4470
  %4657 = vmatprep.subr.bf16.mxu0 0
  %4658 = vmatpush2.bf16.msra.mxu0 %v4469
  %4659 = vmatprep.subr.bf16.mxu0 0
  %4660 = vmatpush2.bf16.msra.mxu0 %v4468
  %4661 = vmatprep.subr.bf16.mxu0 0
  %4662 = vmatpush2.bf16.msra.mxu0 %v4467
  %4663 = vmatprep.subr.bf16.mxu0 0
  %4664 = vmatpush2.bf16.msra.mxu0 %v4466
  %4665 = vmatprep.subr.bf16.mxu0 0
  %4666 = vmatpush2.bf16.msra.mxu0 %v4465
  %4667 = vmatprep.mubr.bf16.mxu0 %v216
  %4668 = vmatmul.mubr.bf16.gmra.mxu0 %v215
  %v4669 = vpop.f32.mrf.mxu0
  %v4670 = vadd.f32 %v4621, %v4669
  %v4671 = vpop.f32.mrf.mxu0
  %v4672 = vpop.f32.mrf.mxu0
  %v4673 = vadd.f32 %v4624, %v4672
  %v4674 = vpop.f32.mrf.mxu0
  %4675 = vmatprep.mubr.bf16.mxu0 %v223
  %4676 = vmatmul.mubr.bf16.gmra.mxu0 %v222
  %v4677 = vpop.f32.mrf.mxu0
  %v4678 = vadd.f32 %v4629, %v4677
  %v4679 = vpop.f32.mrf.mxu0
  %v4680 = vpop.f32.mrf.mxu0
  %v4681 = vadd.f32 %v4632, %v4680
  %v4682 = vpop.f32.mrf.mxu0
  %4683 = vdwg.mxu0
  %4684 = vmatprep.subr.bf16.mxu0 0
  %4685 = vmatpush1.bf16.msra.mxu0 %v4480
  %4686 = vmatprep.subr.bf16.mxu0 0
  %4687 = vmatpush1.bf16.msra.mxu0 %v4479
  %4688 = vmatprep.subr.bf16.mxu0 0
  %4689 = vmatpush1.bf16.msra.mxu0 %v4478
  %4690 = vmatprep.subr.bf16.mxu0 0
  %4691 = vmatpush1.bf16.msra.mxu0 %v4477
  %4692 = vmatprep.subr.bf16.mxu0 0
  %4693 = vmatpush1.bf16.msra.mxu0 %v4476
  %4694 = vmatprep.subr.bf16.mxu0 0
  %4695 = vmatpush1.bf16.msra.mxu0 %v4475
  %4696 = vmatprep.subr.bf16.mxu0 0
  %4697 = vmatpush1.bf16.msra.mxu0 %v4474
  %4698 = vmatprep.subr.bf16.mxu0 0
  %4699 = vmatpush1.bf16.msra.mxu0 %v4473
  %4700 = vmatprep.subr.bf16.mxu0 0
  %4701 = vmatpush2.bf16.msra.mxu0 0
  %4702 = vmatprep.subr.bf16.mxu0 0
  %4703 = vmatpush2.bf16.msra.mxu0 0
  %4704 = vmatprep.subr.bf16.mxu0 0
  %4705 = vmatpush2.bf16.msra.mxu0 0
  %4706 = vmatprep.subr.bf16.mxu0 0
  %4707 = vmatpush2.bf16.msra.mxu0 0
  %4708 = vmatprep.subr.bf16.mxu0 0
  %4709 = vmatpush2.bf16.msra.mxu0 0
  %4710 = vmatprep.subr.bf16.mxu0 0
  %4711 = vmatpush2.bf16.msra.mxu0 0
  %4712 = vmatprep.subr.bf16.mxu0 0
  %4713 = vmatpush2.bf16.msra.mxu0 0
  %4714 = vmatprep.subr.bf16.mxu0 0
  %4715 = vmatpush2.bf16.msra.mxu0 0
  %4716 = vmatprep.mubr.bf16.mxu0 0
  %4717 = vmatmul.mubr.bf16.gmra.mxu0 %v217
  %v4718 = vpop.f32.mrf.mxu0
  %v4719 = vadd.f32 %v4670, %v4718
  %v4720 = vpop.f32.mrf.mxu0
  %v4721 = vpop.f32.mrf.mxu0
  %v4722 = vadd.f32 %v4673, %v4721
  %v4723 = vpop.f32.mrf.mxu0
  %4724 = vmatprep.mubr.bf16.mxu0 0
  %4725 = vmatmul.mubr.bf16.gmra.mxu0 %v224
  %v4726 = vpop.f32.mrf.mxu0
  %v4727 = vadd.f32 %v4678, %v4726
  %v4728 = vpop.f32.mrf.mxu0
  %v4729 = vpop.f32.mrf.mxu0
  %v4730 = vadd.f32 %v4681, %v4729
  %v4731 = vpop.f32.mrf.mxu0
  %4732 = vdwg.mxu0
  %vm4733 = vcmp.ge.f32.partialorder %v4719, 0.0
  %vm4734 = vcmp.ge.f32.partialorder %v4722, 0.0
  %vm4735 = vcmp.ge.f32.partialorder %v4727, 0.0
  %vm4736 = vcmp.ge.f32.partialorder %v4730, 0.0
  %v4737 = vmul.f32 %v4719, 0.01
  %v4738 = vmul.f32 %v4722, 0.01
  %v4739 = vmul.f32 %v4727, 0.01
  %v4740 = vmul.f32 %v4730, 0.01
  %v4741 = vsel %vm4733, %v4719, %v4737
  %v4742 = vsel %vm4734, %v4722, %v4738
  %v4743 = vsel %vm4735, %v4727, %v4739
  %v4744 = vsel %vm4736, %v4730, %v4740
  %v4745 = vmax.f32 %v4084, %v4741
  %v4746 = vmax.f32 %v4085, %v4742
  %v4747 = vmax.f32 %v4086, %v4743
  %v4748 = vmax.f32 %v4087, %v4744
  %s4749 = scalar_lea.vmem %s2, 3136
  %v4750 = vld [vmem:[%s4749] sm:$0xf]
  %v4751 = vld [vmem:[%s4749 + $0x4] sm:$0xf]
  %v4752 = vld [vmem:[%s4749 + $0x8] sm:$0xf]
  %v4753 = vld [vmem:[%s4749 + $0xc] sm:$0xf]
  %v4754 = vld [vmem:[%s4749 + $0x10] sm:$0xf]
  %v4755 = vld [vmem:[%s4749 + $0x14] sm:$0xf]
  %v4756 = vld [vmem:[%s4749 + $0x18] sm:$0xf]
  %v4757 = vld [vmem:[%s4749 + $0x1c] sm:$0xf]
  %v4758 = vld [vmem:[%s4749 + $0x20] sm:$0xf]
  %v4759 = vld [vmem:[%s4749 + $0x24] sm:$0xf]
  %v4760 = vld [vmem:[%s4749 + $0x28] sm:$0xf]
  %v4761 = vld [vmem:[%s4749 + $0x2c] sm:$0xf]
  %v4762 = vld [vmem:[%s4749 + $0x30] sm:$0xf]
  %v4763 = vld [vmem:[%s4749 + $0x34] sm:$0xf]
  %v4764 = vld [vmem:[%s4749 + $0x38] sm:$0xf]
  %v4765 = vld [vmem:[%s4749 + $0x3c] sm:$0xf]
  %v4766 = vld [vmem:[%s4749 + $0x40] sm:$0xf]
  %v4767 = vld [vmem:[%s4749 + $0x44] sm:$0xf]
  %v4768 = vld [vmem:[%s4749 + $0x48] sm:$0xf]
  %v4769 = vld [vmem:[%s4749 + $0x4c] sm:$0xf]
  %v4770 = vld [vmem:[%s4749 + $0x50] sm:$0xf]
  %v4771 = vld [vmem:[%s4749 + $0x54] sm:$0xf]
  %v4772 = vld [vmem:[%s4749 + $0x58] sm:$0xf]
  %v4773 = vld [vmem:[%s4749 + $0x5c] sm:$0xf]
  %v4774 = vld [vmem:[%s4749 + $0x60] sm:$0xf]
  %v4775 = vld [vmem:[%s4749 + $0x64] sm:$0xf]
  %v4776 = vld [vmem:[%s4749 + $0x68] sm:$0xf]
  %v4777 = vld [vmem:[%s4749 + $0x6c] sm:$0xf]
  %v4778 = vld [vmem:[%s4749 + $0x70] sm:$0xf]
  %v4779 = vld [vmem:[%s4749 + $0x74] sm:$0xf]
  %v4780 = vld [vmem:[%s4749 + $0x78] sm:$0xf]
  %v4781 = vld [vmem:[%s4749 + $0x7c] sm:$0xf]
  %v4782 = vld [vmem:[%s4749 + $0x80] sm:$0xf]
  %v4783 = vld [vmem:[%s4749 + $0x84] sm:$0xf]
  %v4784 = vld [vmem:[%s4749 + $0x88] sm:$0xf]
  %v4785 = vld [vmem:[%s4749 + $0x8c] sm:$0xf]
  %v4786 = vld [vmem:[%s4749 + $0x90] sm:$0xf]
  %v4787 = vld [vmem:[%s4749 + $0x94] sm:$0xf]
  %v4788 = vld [vmem:[%s4749 + $0x98] sm:$0xf]
  %v4789 = vld [vmem:[%s4749 + $0x9c] sm:$0xf]
  %v4790 = vld [vmem:[%s4749 + $0xa0] sm:$0xf]
  %v4791 = vld [vmem:[%s4749 + $0xa4] sm:$0xf]
  %v4792 = vld [vmem:[%s4749 + $0xa8] sm:$0xf]
  %v4793 = vld [vmem:[%s4749 + $0xac] sm:$0xf]
  %v4794 = vld [vmem:[%s4749 + $0xb0] sm:$0xf]
  %v4795 = vld [vmem:[%s4749 + $0xb4] sm:$0xf]
  %v4796 = vld [vmem:[%s4749 + $0xb8] sm:$0xf]
  %v4797 = vld [vmem:[%s4749 + $0xbc] sm:$0xf]
  %v4798 = vld [vmem:[%s4749 + $0xc0] sm:$0xf]
  %v4799 = vld [vmem:[%s4749 + $0xc4] sm:$0xf]
  %v4800 = vld [vmem:[%s4749 + $0xc8] sm:$0xf]
  %v4801 = vld [vmem:[%s4749 + $0xcc] sm:$0xf]
  %v4802 = vld [vmem:[%s4749 + $0xd0] sm:$0xf]
  %v4803 = vld [vmem:[%s4749 + $0xd4] sm:$0xf]
  %v4804 = vld [vmem:[%s4749 + $0xd8] sm:$0xf]
  %v4805 = vld [vmem:[%s4749 + $0xdc] sm:$0xf]
  %v4806 = vld [vmem:[%s4749 + $0xe0] sm:$0xf]
  %v4807 = vld [vmem:[%s4749 + $0xe4] sm:$0xf]
  %v4808 = vld [vmem:[%s4749 + $0xe8] sm:$0xf]
  %v4809 = vld [vmem:[%s4749 + $0xec] sm:$0xf]
  %v4810 = vld [vmem:[%s4749 + $0xf0] sm:$0xf]
  %v4811 = vld [vmem:[%s4749 + $0xf4] sm:$0xf]
  %v4812 = vld [vmem:[%s4749 + $0xf8] sm:$0xf]
  %v4813 = vld [vmem:[%s4749 + $0xfc] sm:$0xf]
  %v4814 = vld [vmem:[%s4749 + $0x100] sm:$0xf]
  %v4815 = vld [vmem:[%s4749 + $0x104] sm:$0xf]
  %v4816 = vld [vmem:[%s4749 + $0x108] sm:$0xf]
  %v4817 = vld [vmem:[%s4749 + $0x10c] sm:$0xf]
  %v4818 = vld [vmem:[%s4749 + $0x110] sm:$0xf]
  %v4819 = vld [vmem:[%s4749 + $0x114] sm:$0xf]
  %v4820 = vld [vmem:[%s4749 + $0x118] sm:$0xf]
  %v4821 = vld [vmem:[%s4749 + $0x11c] sm:$0xf]
  %v4822 = vld [vmem:[%s4749 + $0x120] sm:$0xf]
  %v4823 = vld [vmem:[%s4749 + $0x124] sm:$0xf]
  %v4824 = vld [vmem:[%s4749 + $0x128] sm:$0xf]
  %v4825 = vld [vmem:[%s4749 + $0x12c] sm:$0xf]
  %v4826 = vld [vmem:[%s4749 + $0x130] sm:$0xf]
  %v4827 = vld [vmem:[%s4749 + $0x134] sm:$0xf]
  %v4828 = vld [vmem:[%s4749 + $0x138] sm:$0xf]
  %v4829 = vld [vmem:[%s4749 + $0x13c] sm:$0xf]
  %v4830 = vld [vmem:[%s4749 + $0x140] sm:$0xf]
  %v4831 = vld [vmem:[%s4749 + $0x144] sm:$0xf]
  %v4832 = vld [vmem:[%s4749 + $0x148] sm:$0xf]
  %v4833 = vld [vmem:[%s4749 + $0x14c] sm:$0xf]
  %v4834 = vld [vmem:[%s4749 + $0x150] sm:$0xf]
  %v4835 = vld [vmem:[%s4749 + $0x154] sm:$0xf]
  %v4836 = vld [vmem:[%s4749 + $0x158] sm:$0xf]
  %v4837 = vld [vmem:[%s4749 + $0x15c] sm:$0xf]
  %v4838 = vld [vmem:[%s4749 + $0x160] sm:$0xf]
  %v4839 = vld [vmem:[%s4749 + $0x164] sm:$0xf]
  %v4840 = vld [vmem:[%s4749 + $0x168] sm:$0xf]
  %v4841 = vld [vmem:[%s4749 + $0x16c] sm:$0xf]
  %v4842 = vld [vmem:[%s4749 + $0x170] sm:$0xf]
  %v4843 = vld [vmem:[%s4749 + $0x174] sm:$0xf]
  %v4844 = vld [vmem:[%s4749 + $0x178] sm:$0xf]
  %v4845 = vld [vmem:[%s4749 + $0x17c] sm:$0xf]
  %v4846 = vld [vmem:[%s4749 + $0x180] sm:$0xf]
  %v4847 = vld [vmem:[%s4749 + $0x184] sm:$0xf]
  %v4848 = vld [vmem:[%s4749 + $0x188] sm:$0xf]
  %v4849 = vld [vmem:[%s4749 + $0x18c] sm:$0xf]
  %v4850 = vld [vmem:[%s4749 + $0x190] sm:$0xf]
  %v4851 = vld [vmem:[%s4749 + $0x194] sm:$0xf]
  %v4852 = vld [vmem:[%s4749 + $0x198] sm:$0xf]
  %v4853 = vld [vmem:[%s4749 + $0x19c] sm:$0xf]
  %v4854 = vld [vmem:[%s4749 + $0x1a0] sm:$0xf]
  %v4855 = vld [vmem:[%s4749 + $0x1a4] sm:$0xf]
  %v4856 = vld [vmem:[%s4749 + $0x1a8] sm:$0xf]
  %v4857 = vld [vmem:[%s4749 + $0x1ac] sm:$0xf]
  %v4858 = vld [vmem:[%s4749 + $0x1b0] sm:$0xf]
  %v4859 = vld [vmem:[%s4749 + $0x1b4] sm:$0xf]
  %v4860 = vld [vmem:[%s4749 + $0x1b8] sm:$0xf]
  %v4861 = vld [vmem:[%s4749 + $0x1bc] sm:$0xf]
  %v4974 = vunpack.c.l.b16 %v4750
  %v4975 = vunpack.c.l.b16 %v4751
  %v4976 = vunpack.c.l.b16 %v4752
  %v4977 = vunpack.c.l.b16 %v4753
  %v4978 = vunpack.c.l.b16 %v4754
  %v4979 = vunpack.c.l.b16 %v4755
  %v4980 = vunpack.c.l.b16 %v4756
  %v4981 = vunpack.c.l.b16 %v4757
  %v4982 = vunpack.c.l.b16 %v4758
  %v4983 = vunpack.c.l.b16 %v4759
  %v4984 = vunpack.c.l.b16 %v4760
  %v4985 = vunpack.c.l.b16 %v4761
  %v4986 = vunpack.c.l.b16 %v4762
  %v4987 = vunpack.c.l.b16 %v4763
  %v4988 = vunpack.c.l.b16 %v4764
  %v4989 = vunpack.c.l.b16 %v4765
  %v4990 = vunpack.c.l.b16 %v4766
  %v4991 = vunpack.c.l.b16 %v4767
  %v4992 = vunpack.c.l.b16 %v4768
  %v4993 = vunpack.c.l.b16 %v4769
  %v4994 = vunpack.c.l.b16 %v4770
  %v4995 = vunpack.c.l.b16 %v4771
  %v4996 = vunpack.c.l.b16 %v4772
  %v4997 = vunpack.c.l.b16 %v4773
  %v4998 = vunpack.c.l.b16 %v4774
  %v4999 = vunpack.c.l.b16 %v4775
  %v5000 = vunpack.c.l.b16 %v4776
  %v5001 = vunpack.c.l.b16 %v4777
  %v5002 = vunpack.c.l.b16 %v4778
  %v5003 = vunpack.c.l.b16 %v4779
  %v5004 = vunpack.c.l.b16 %v4780
  %v5005 = vunpack.c.l.b16 %v4781
  %v5006 = vunpack.c.l.b16 %v4782
  %v5007 = vunpack.c.l.b16 %v4783
  %v5008 = vunpack.c.l.b16 %v4784
  %v5009 = vunpack.c.l.b16 %v4785
  %v5010 = vunpack.c.l.b16 %v4786
  %v5011 = vunpack.c.l.b16 %v4787
  %v5012 = vunpack.c.l.b16 %v4788
  %v5013 = vunpack.c.l.b16 %v4789
  %v5014 = vunpack.c.l.b16 %v4790
  %v5015 = vunpack.c.l.b16 %v4791
  %v5016 = vunpack.c.l.b16 %v4792
  %v5017 = vunpack.c.l.b16 %v4793
  %v5018 = vunpack.c.l.b16 %v4794
  %v5019 = vunpack.c.l.b16 %v4795
  %v5020 = vunpack.c.l.b16 %v4796
  %v5021 = vunpack.c.l.b16 %v4797
  %v5022 = vunpack.c.l.b16 %v4798
  %v5023 = vunpack.c.l.b16 %v4799
  %v5024 = vunpack.c.l.b16 %v4800
  %v5025 = vunpack.c.l.b16 %v4801
  %v5026 = vunpack.c.l.b16 %v4802
  %v5027 = vunpack.c.l.b16 %v4803
  %v5028 = vunpack.c.l.b16 %v4804
  %v5029 = vunpack.c.l.b16 %v4805
  %v5030 = vunpack.c.l.b16 %v4806
  %v5031 = vunpack.c.l.b16 %v4807
  %v5032 = vunpack.c.l.b16 %v4808
  %v5033 = vunpack.c.l.b16 %v4809
  %v5034 = vunpack.c.l.b16 %v4810
  %v5035 = vunpack.c.l.b16 %v4811
  %v5036 = vunpack.c.l.b16 %v4812
  %v5037 = vunpack.c.l.b16 %v4813
  %v5038 = vunpack.c.l.b16 %v4814
  %v5039 = vunpack.c.l.b16 %v4815
  %v5040 = vunpack.c.l.b16 %v4816
  %v5041 = vunpack.c.l.b16 %v4817
  %v5042 = vunpack.c.l.b16 %v4818
  %v5043 = vunpack.c.l.b16 %v4819
  %v5044 = vunpack.c.l.b16 %v4820
  %v5045 = vunpack.c.l.b16 %v4821
  %v5046 = vunpack.c.l.b16 %v4822
  %v5047 = vunpack.c.l.b16 %v4823
  %v5048 = vunpack.c.l.b16 %v4824
  %v5049 = vunpack.c.l.b16 %v4825
  %v5050 = vunpack.c.l.b16 %v4826
  %v5051 = vunpack.c.l.b16 %v4827
  %v5052 = vunpack.c.l.b16 %v4828
  %v5053 = vunpack.c.l.b16 %v4829
  %v5054 = vunpack.c.l.b16 %v4830
  %v5055 = vunpack.c.l.b16 %v4831
  %v5056 = vunpack.c.l.b16 %v4832
  %v5057 = vunpack.c.l.b16 %v4833
  %v5058 = vunpack.c.l.b16 %v4834
  %v5059 = vunpack.c.l.b16 %v4835
  %v5060 = vunpack.c.l.b16 %v4836
  %v5061 = vunpack.c.l.b16 %v4837
  %v5062 = vunpack.c.l.b16 %v4838
  %v5063 = vunpack.c.l.b16 %v4839
  %v5064 = vunpack.c.l.b16 %v4840
  %v5065 = vunpack.c.l.b16 %v4841
  %v5066 = vunpack.c.l.b16 %v4842
  %v5067 = vunpack.c.l.b16 %v4843
  %v5068 = vunpack.c.l.b16 %v4844
  %v5069 = vunpack.c.l.b16 %v4845
  %v5070 = vunpack.c.l.b16 %v4846
  %v5071 = vunpack.c.l.b16 %v4847
  %v5072 = vunpack.c.l.b16 %v4848
  %v5073 = vunpack.c.l.b16 %v4849
  %v5074 = vunpack.c.l.b16 %v4850
  %v5075 = vunpack.c.l.b16 %v4851
  %v5076 = vunpack.c.l.b16 %v4852
  %v5077 = vunpack.c.l.b16 %v4853
  %v5078 = vunpack.c.l.b16 %v4854
  %v5079 = vunpack.c.l.b16 %v4855
  %v5080 = vunpack.c.l.b16 %v4856
  %v5081 = vunpack.c.l.b16 %v4857
  %v5082 = vunpack.c.l.b16 %v4858
  %v5083 = vunpack.c.l.b16 %v4859
  %v5084 = vunpack.c.l.b16 %v4860
  %v5085 = vunpack.c.l.b16 %v4861
  %v5086 = vpack.c.b16 %v4975, %v4974
  %v5087 = vpack.c.b16 %v4977, %v4976
  %v5088 = vpack.c.b16 %v4979, %v4978
  %v5089 = vpack.c.b16 %v4981, %v4980
  %v5090 = vpack.c.b16 %v4983, %v4982
  %v5091 = vpack.c.b16 %v4985, %v4984
  %v5092 = vpack.c.b16 %v4987, %v4986
  %v5093 = vpack.c.b16 %v4989, %v4988
  %v5094 = vpack.c.b16 %v4991, %v4990
  %v5095 = vpack.c.b16 %v4993, %v4992
  %v5096 = vpack.c.b16 %v4995, %v4994
  %v5097 = vpack.c.b16 %v4997, %v4996
  %v5098 = vpack.c.b16 %v4999, %v4998
  %v5099 = vpack.c.b16 %v5001, %v5000
  %v5100 = vpack.c.b16 %v5003, %v5002
  %v5101 = vpack.c.b16 %v5005, %v5004
  %v5102 = vpack.c.b16 %v5007, %v5006
  %v5103 = vpack.c.b16 %v5009, %v5008
  %v5104 = vpack.c.b16 %v5011, %v5010
  %v5105 = vpack.c.b16 %v5013, %v5012
  %v5106 = vpack.c.b16 %v5015, %v5014
  %v5107 = vpack.c.b16 %v5017, %v5016
  %v5108 = vpack.c.b16 %v5019, %v5018
  %v5109 = vpack.c.b16 %v5021, %v5020
  %v5110 = vpack.c.b16 %v5023, %v5022
  %v5111 = vpack.c.b16 %v5025, %v5024
  %v5112 = vpack.c.b16 %v5027, %v5026
  %v5113 = vpack.c.b16 %v5029, %v5028
  %v5114 = vpack.c.b16 %v5031, %v5030
  %v5115 = vpack.c.b16 %v5033, %v5032
  %v5116 = vpack.c.b16 %v5035, %v5034
  %v5117 = vpack.c.b16 %v5037, %v5036
  %v5118 = vpack.c.b16 %v5039, %v5038
  %v5119 = vpack.c.b16 %v5041, %v5040
  %v5120 = vpack.c.b16 %v5043, %v5042
  %v5121 = vpack.c.b16 %v5045, %v5044
  %v5122 = vpack.c.b16 %v5047, %v5046
  %v5123 = vpack.c.b16 %v5049, %v5048
  %v5124 = vpack.c.b16 %v5051, %v5050
  %v5125 = vpack.c.b16 %v5053, %v5052
  %v5126 = vpack.c.b16 %v5055, %v5054
  %v5127 = vpack.c.b16 %v5057, %v5056
  %v5128 = vpack.c.b16 %v5059, %v5058
  %v5129 = vpack.c.b16 %v5061, %v5060
  %v5130 = vpack.c.b16 %v5063, %v5062
  %v5131 = vpack.c.b16 %v5065, %v5064
  %v5132 = vpack.c.b16 %v5067, %v5066
  %v5133 = vpack.c.b16 %v5069, %v5068
  %v5134 = vpack.c.b16 %v5071, %v5070
  %v5135 = vpack.c.b16 %v5073, %v5072
  %v5136 = vpack.c.b16 %v5075, %v5074
  %v5137 = vpack.c.b16 %v5077, %v5076
  %v5138 = vpack.c.b16 %v5079, %v5078
  %v5139 = vpack.c.b16 %v5081, %v5080
  %v5140 = vpack.c.b16 %v5083, %v5082
  %v5141 = vpack.c.b16 %v5085, %v5084
  %5198 = vmatprep.subr.bf16.mxu0 0
  %5199 = vmatpush1.bf16.msra.mxu0 %v5093
  %5200 = vmatprep.subr.bf16.mxu0 0
  %5201 = vmatpush1.bf16.msra.mxu0 %v5092
  %5202 = vmatprep.subr.bf16.mxu0 0
  %5203 = vmatpush1.bf16.msra.mxu0 %v5091
  %5204 = vmatprep.subr.bf16.mxu0 0
  %5205 = vmatpush1.bf16.msra.mxu0 %v5090
  %5206 = vmatprep.subr.bf16.mxu0 0
  %5207 = vmatpush1.bf16.msra.mxu0 %v5089
  %5208 = vmatprep.subr.bf16.mxu0 0
  %5209 = vmatpush1.bf16.msra.mxu0 %v5088
  %5210 = vmatprep.subr.bf16.mxu0 0
  %5211 = vmatpush1.bf16.msra.mxu0 %v5087
  %5212 = vmatprep.subr.bf16.mxu0 0
  %5213 = vmatpush1.bf16.msra.mxu0 %v5086
  %5214 = vmatprep.subr.bf16.mxu0 0
  %5215 = vmatpush2.bf16.msra.mxu0 %v5101
  %5216 = vmatprep.subr.bf16.mxu0 0
  %5217 = vmatpush2.bf16.msra.mxu0 %v5100
  %5218 = vmatprep.subr.bf16.mxu0 0
  %5219 = vmatpush2.bf16.msra.mxu0 %v5099
  %5220 = vmatprep.subr.bf16.mxu0 0
  %5221 = vmatpush2.bf16.msra.mxu0 %v5098
  %5222 = vmatprep.subr.bf16.mxu0 0
  %5223 = vmatpush2.bf16.msra.mxu0 %v5097
  %5224 = vmatprep.subr.bf16.mxu0 0
  %5225 = vmatpush2.bf16.msra.mxu0 %v5096
  %5226 = vmatprep.subr.bf16.mxu0 0
  %5227 = vmatpush2.bf16.msra.mxu0 %v5095
  %5228 = vmatprep.subr.bf16.mxu0 0
  %5229 = vmatpush2.bf16.msra.mxu0 %v5094
  %5230 = vmatprep.mubr.bf16.mxu0 %v212
  %5231 = vmatmul.mubr.bf16.gmra.mxu0 %v211
  %v5232 = vpop.f32.mrf.mxu0
  %v5233 = vadd.f32 %v150, %v5232
  %v5234 = vpop.f32.mrf.mxu0
  %v5235 = vpop.f32.mrf.mxu0
  %v5236 = vadd.f32 %v155, %v5235
  %v5237 = vpop.f32.mrf.mxu0
  %5238 = vmatprep.mubr.bf16.mxu0 %v219
  %5239 = vmatmul.mubr.bf16.gmra.mxu0 %v218
  %v5240 = vpop.f32.mrf.mxu0
  %v5241 = vadd.f32 %v160, %v5240
  %v5242 = vpop.f32.mrf.mxu0
  %v5243 = vpop.f32.mrf.mxu0
  %v5244 = vadd.f32 %v165, %v5243
  %v5245 = vpop.f32.mrf.mxu0
  %5246 = vdwg.mxu0
  %5247 = vmatprep.subr.bf16.mxu0 0
  %5248 = vmatpush1.bf16.msra.mxu0 %v5109
  %5249 = vmatprep.subr.bf16.mxu0 0
  %5250 = vmatpush1.bf16.msra.mxu0 %v5108
  %5251 = vmatprep.subr.bf16.mxu0 0
  %5252 = vmatpush1.bf16.msra.mxu0 %v5107
  %5253 = vmatprep.subr.bf16.mxu0 0
  %5254 = vmatpush1.bf16.msra.mxu0 %v5106
  %5255 = vmatprep.subr.bf16.mxu0 0
  %5256 = vmatpush1.bf16.msra.mxu0 %v5105
  %5257 = vmatprep.subr.bf16.mxu0 0
  %5258 = vmatpush1.bf16.msra.mxu0 %v5104
  %5259 = vmatprep.subr.bf16.mxu0 0
  %5260 = vmatpush1.bf16.msra.mxu0 %v5103
  %5261 = vmatprep.subr.bf16.mxu0 0
  %5262 = vmatpush1.bf16.msra.mxu0 %v5102
  %5263 = vmatprep.subr.bf16.mxu0 0
  %5264 = vmatpush2.bf16.msra.mxu0 %v5117
  %5265 = vmatprep.subr.bf16.mxu0 0
  %5266 = vmatpush2.bf16.msra.mxu0 %v5116
  %5267 = vmatprep.subr.bf16.mxu0 0
  %5268 = vmatpush2.bf16.msra.mxu0 %v5115
  %5269 = vmatprep.subr.bf16.mxu0 0
  %5270 = vmatpush2.bf16.msra.mxu0 %v5114
  %5271 = vmatprep.subr.bf16.mxu0 0
  %5272 = vmatpush2.bf16.msra.mxu0 %v5113
  %5273 = vmatprep.subr.bf16.mxu0 0
  %5274 = vmatpush2.bf16.msra.mxu0 %v5112
  %5275 = vmatprep.subr.bf16.mxu0 0
  %5276 = vmatpush2.bf16.msra.mxu0 %v5111
  %5277 = vmatprep.subr.bf16.mxu0 0
  %5278 = vmatpush2.bf16.msra.mxu0 %v5110
  %5279 = vmatprep.mubr.bf16.mxu0 %v214
  %5280 = vmatmul.mubr.bf16.gmra.mxu0 %v213
  %v5281 = vpop.f32.mrf.mxu0
  %v5282 = vadd.f32 %v5233, %v5281
  %v5283 = vpop.f32.mrf.mxu0
  %v5284 = vpop.f32.mrf.mxu0
  %v5285 = vadd.f32 %v5236, %v5284
  %v5286 = vpop.f32.mrf.mxu0
  %5287 = vmatprep.mubr.bf16.mxu0 %v221
  %5288 = vmatmul.mubr.bf16.gmra.mxu0 %v220
  %v5289 = vpop.f32.mrf.mxu0
  %v5290 = vadd.f32 %v5241, %v5289
  %v5291 = vpop.f32.mrf.mxu0
  %v5292 = vpop.f32.mrf.mxu0
  %v5293 = vadd.f32 %v5244, %v5292
  %v5294 = vpop.f32.mrf.mxu0
  %5295 = vdwg.mxu0
  %5296 = vmatprep.subr.bf16.mxu0 0
  %5297 = vmatpush1.bf16.msra.mxu0 %v5125
  %5298 = vmatprep.subr.bf16.mxu0 0
  %5299 = vmatpush1.bf16.msra.mxu0 %v5124
  %5300 = vmatprep.subr.bf16.mxu0 0
  %5301 = vmatpush1.bf16.msra.mxu0 %v5123
  %5302 = vmatprep.subr.bf16.mxu0 0
  %5303 = vmatpush1.bf16.msra.mxu0 %v5122
  %5304 = vmatprep.subr.bf16.mxu0 0
  %5305 = vmatpush1.bf16.msra.mxu0 %v5121
  %5306 = vmatprep.subr.bf16.mxu0 0
  %5307 = vmatpush1.bf16.msra.mxu0 %v5120
  %5308 = vmatprep.subr.bf16.mxu0 0
  %5309 = vmatpush1.bf16.msra.mxu0 %v5119
  %5310 = vmatprep.subr.bf16.mxu0 0
  %5311 = vmatpush1.bf16.msra.mxu0 %v5118
  %5312 = vmatprep.subr.bf16.mxu0 0
  %5313 = vmatpush2.bf16.msra.mxu0 %v5133
  %5314 = vmatprep.subr.bf16.mxu0 0
  %5315 = vmatpush2.bf16.msra.mxu0 %v5132
  %5316 = vmatprep.subr.bf16.mxu0 0
  %5317 = vmatpush2.bf16.msra.mxu0 %v5131
  %5318 = vmatprep.subr.bf16.mxu0 0
  %5319 = vmatpush2.bf16.msra.mxu0 %v5130
  %5320 = vmatprep.subr.bf16.mxu0 0
  %5321 = vmatpush2.bf16.msra.mxu0 %v5129
  %5322 = vmatprep.subr.bf16.mxu0 0
  %5323 = vmatpush2.bf16.msra.mxu0 %v5128
  %5324 = vmatprep.subr.bf16.mxu0 0
  %5325 = vmatpush2.bf16.msra.mxu0 %v5127
  %5326 = vmatprep.subr.bf16.mxu0 0
  %5327 = vmatpush2.bf16.msra.mxu0 %v5126
  %5328 = vmatprep.mubr.bf16.mxu0 %v216
  %5329 = vmatmul.mubr.bf16.gmra.mxu0 %v215
  %v5330 = vpop.f32.mrf.mxu0
  %v5331 = vadd.f32 %v5282, %v5330
  %v5332 = vpop.f32.mrf.mxu0
  %v5333 = vpop.f32.mrf.mxu0
  %v5334 = vadd.f32 %v5285, %v5333
  %v5335 = vpop.f32.mrf.mxu0
  %5336 = vmatprep.mubr.bf16.mxu0 %v223
  %5337 = vmatmul.mubr.bf16.gmra.mxu0 %v222
  %v5338 = vpop.f32.mrf.mxu0
  %v5339 = vadd.f32 %v5290, %v5338
  %v5340 = vpop.f32.mrf.mxu0
  %v5341 = vpop.f32.mrf.mxu0
  %v5342 = vadd.f32 %v5293, %v5341
  %v5343 = vpop.f32.mrf.mxu0
  %5344 = vdwg.mxu0
  %5345 = vmatprep.subr.bf16.mxu0 0
  %5346 = vmatpush1.bf16.msra.mxu0 %v5141
  %5347 = vmatprep.subr.bf16.mxu0 0
  %5348 = vmatpush1.bf16.msra.mxu0 %v5140
  %5349 = vmatprep.subr.bf16.mxu0 0
  %5350 = vmatpush1.bf16.msra.mxu0 %v5139
  %5351 = vmatprep.subr.bf16.mxu0 0
  %5352 = vmatpush1.bf16.msra.mxu0 %v5138
  %5353 = vmatprep.subr.bf16.mxu0 0
  %5354 = vmatpush1.bf16.msra.mxu0 %v5137
  %5355 = vmatprep.subr.bf16.mxu0 0
  %5356 = vmatpush1.bf16.msra.mxu0 %v5136
  %5357 = vmatprep.subr.bf16.mxu0 0
  %5358 = vmatpush1.bf16.msra.mxu0 %v5135
  %5359 = vmatprep.subr.bf16.mxu0 0
  %5360 = vmatpush1.bf16.msra.mxu0 %v5134
  %5361 = vmatprep.subr.bf16.mxu0 0
  %5362 = vmatpush2.bf16.msra.mxu0 0
  %5363 = vmatprep.subr.bf16.mxu0 0
  %5364 = vmatpush2.bf16.msra.mxu0 0
  %5365 = vmatprep.subr.bf16.mxu0 0
  %5366 = vmatpush2.bf16.msra.mxu0 0
  %5367 = vmatprep.subr.bf16.mxu0 0
  %5368 = vmatpush2.bf16.msra.mxu0 0
  %5369 = vmatprep.subr.bf16.mxu0 0
  %5370 = vmatpush2.bf16.msra.mxu0 0
  %5371 = vmatprep.subr.bf16.mxu0 0
  %5372 = vmatpush2.bf16.msra.mxu0 0
  %5373 = vmatprep.subr.bf16.mxu0 0
  %5374 = vmatpush2.bf16.msra.mxu0 0
  %5375 = vmatprep.subr.bf16.mxu0 0
  %5376 = vmatpush2.bf16.msra.mxu0 0
  %5377 = vmatprep.mubr.bf16.mxu0 0
  %5378 = vmatmul.mubr.bf16.gmra.mxu0 %v217
  %v5379 = vpop.f32.mrf.mxu0
  %v5380 = vadd.f32 %v5331, %v5379
  %v5381 = vpop.f32.mrf.mxu0
  %v5382 = vpop.f32.mrf.mxu0
  %v5383 = vadd.f32 %v5334, %v5382
  %v5384 = vpop.f32.mrf.mxu0
  %5385 = vmatprep.mubr.bf16.mxu0 0
  %5386 = vmatmul.mubr.bf16.gmra.mxu0 %v224
  %v5387 = vpop.f32.mrf.mxu0
  %v5388 = vadd.f32 %v5339, %v5387
  %v5389 = vpop.f32.mrf.mxu0
  %v5390 = vpop.f32.mrf.mxu0
  %v5391 = vadd.f32 %v5342, %v5390
  %v5392 = vpop.f32.mrf.mxu0
  %5393 = vdwg.mxu0
  %vm5394 = vcmp.ge.f32.partialorder %v5380, 0.0
  %vm5395 = vcmp.ge.f32.partialorder %v5383, 0.0
  %vm5396 = vcmp.ge.f32.partialorder %v5388, 0.0
  %vm5397 = vcmp.ge.f32.partialorder %v5391, 0.0
  %v5398 = vmul.f32 %v5380, 0.01
  %v5399 = vmul.f32 %v5383, 0.01
  %v5400 = vmul.f32 %v5388, 0.01
  %v5401 = vmul.f32 %v5391, 0.01
  %v5402 = vsel %vm5394, %v5380, %v5398
  %v5403 = vsel %vm5395, %v5383, %v5399
  %v5404 = vsel %vm5396, %v5388, %v5400
  %v5405 = vsel %vm5397, %v5391, %v5401
  %v5406 = vmax.f32 %v4745, %v5402
  %v5407 = vmax.f32 %v4746, %v5403
  %v5408 = vmax.f32 %v4747, %v5404
  %v5409 = vmax.f32 %v4748, %v5405
  %v5410 = vpack.c.bf16 %v5407, %v5406
  %v5411 = vpack.c.bf16 %v5409, %v5408
  %v5414 = vunpack.c.l.b16 %v5410
  %v5415 = vunpack.c.h.b16 %v5410
  %v5416 = vunpack.c.l.b16 %v5411
  %v5417 = vunpack.c.h.b16 %v5411
  %v5418 = vpack.c.b16 %v5414, %v5414
  %v5419 = vpack.c.b16 %v5415, %v5415
  %v5420 = vpack.c.b16 %v5416, %v5416
  %v5421 = vpack.c.b16 %v5417, %v5417
  %vm5426 = vcmask 125952
  %5427 = vst.msk [vmem:[%s3] sm:$0xf] %vm5426, %v5418
  %5428 = vst.msk [vmem:[%s3 + $0x4] sm:$0xf] %vm5426, %v5419
  %5429 = vst.msk [vmem:[%s3 + $0x8] sm:$0xf] %vm5426, %v5420
  %5430 = vst.msk [vmem:[%s3 + $0xc] sm:$0xf] %vm5426, %v5421
  // Predicated region
  $region14: #{voxnet_forward.4} parent=0 // pred_check
    _
  $region15: #{voxnet_forward.4} parent=0 // pred_check_branch
    %5432 = sbr.rel (0) target = $region17
  $region16: #{voxnet_forward.4} parent=0 // pred_region
    _
  $region17: #{voxnet_forward.4} parent=0 // pred_fallthru
    _
  // Predicated region
  $region18: #{voxnet_forward.4} parent=0 // pred_check
    _
  $region19: #{voxnet_forward.4} parent=0 // pred_check_branch
    %5434 = sbr.rel (0) target = $region21
  $region20: #{voxnet_forward.4} parent=0 // pred_region
    _
  $region21: #{voxnet_forward.4} parent=0 // pred_fallthru
    _

</llo_original>
